<compile_context>
chip_gen: v5e
topology: v5e:2x2
jax: 0.10.0
libtpu: 0.0.40
codegen_flags: <defaults>
</compile_context>

<pallas_src>
import math

import jax
import jax.numpy as jnp
from jax import lax
from jax.experimental import pallas as pl
from jax.experimental.pallas import tpu as pltpu

LRELU_SLOPE = 0.2
BN_EPS = 1e-5
DIM = 32               # module default `dim`
L_IN = 96 * 7          # 672
GRID = 32              # per-sample position grid inside the kernel (= layer-1 length)
MATMUL_DTYPE = jnp.bfloat16   # MXU operand dtype; accumulation stays f32


def _lrelu(v):
    return jnp.where(v > 0, v, LRELU_SLOPE * v)


def _bn(z, g, bt, mask, count):
    """Train-mode BatchNorm1d (biased batch variance) over the *valid* rows.

    z: (M, C) f32 conv output on the full per-sample grid.
    mask: (M, 1) f32 {0,1} marking rows that are real conv outputs (None = all).
    Statistics are computed in f32 only.
    """
    inv = 1.0 / float(count)
    zm = z if mask is None else z * mask
    mean = jnp.sum(zm, axis=0, keepdims=True) * inv
    ex2 = jnp.sum(zm * z, axis=0, keepdims=True) * inv
    var = ex2 - mean * mean
    scale = g * lax.rsqrt(var + BN_EPS)
    return (z - mean) * scale + bt


def _conv_grid(h, pos, w, b, *, sp_in, k, pad):
    """Strided Conv1d evaluated at every grid position: im2col + one MXU matmul.

    h:   (M, C_in) f32 activations on the 32-position grid (M = N*GRID); the
         input layer's true values live at positions that are multiples of
         `sp_in`.
    pos: (M, 1) int32 position-within-sample (0..GRID-1).
    w:   (k*C_in, C_out) tap-major weight (bf16).  b: (1, C_out) f32 or None.
    """
    m, c = h.shape
    deltas = [sp_in * (j - pad) for j in range(k)]
    maxd = max(abs(d) for d in deltas)
    if maxd > 0:
        zpad = jnp.zeros((maxd, c), h.dtype)
        hp = jnp.concatenate([zpad, h, zpad], axis=0)
    else:
        hp = h
    taps = []
    for d in deltas:
        v = hp[maxd + d:maxd + d + m, :] if maxd > 0 else h
        if d != 0:
            # Per-sample conv zero-padding: the source grid position must stay
            # inside [0, GRID); this also kills rows shifted in from the
            # neighbouring sample.
            vmask = ((pos + d >= 0) & (pos + d < GRID)).astype(h.dtype)
            v = v * vmask
        taps.append(v)
    im = taps[0] if k == 1 else jnp.concatenate(taps, axis=1)
    out = jnp.dot(im.astype(MATMUL_DTYPE), w, preferred_element_type=jnp.float32)
    if b is not None:
        out = out + b
    return out


def _disc_kernel(x_ref, pos_ref, m2_ref, m3_ref, m4_ref,
                 w01_ref, b0_ref,
                 w1_ref, b1_ref, g1_ref, t1_ref,
                 w2_ref, b2_ref, g2_ref, t2_ref,
                 w3_ref, b3_ref, g3_ref, t3_ref,
                 w4_ref, b4_ref, g4_ref, t4_ref,
                 w5_ref, out_ref):
    m = out_ref.shape[0]                    # N * GRID
    pos = pos_ref[...]                      # (M, 1) int32

    # Layers 0+1: both convs are non-overlapping (stride == kernel), so they
    # are two plain matmuls on the pre-windowed (N*32, 21) input.
    h0 = _lrelu(jnp.dot(x_ref[...], w01_ref[...],
                        preferred_element_type=jnp.float32) + b0_ref[...])
    z1 = jnp.dot(h0.astype(MATMUL_DTYPE), w1_ref[...],
                 preferred_element_type=jnp.float32) + b1_ref[...]
    h1 = _lrelu(_bn(z1, g1_ref[...], t1_ref[...], None, m))        # (M, 32)

    # Layer 2: Conv1d(32,64,5,2,p=2); true outputs at pos % 2 == 0.
    z2 = _conv_grid(h1, pos, w2_ref[...], b2_ref[...], sp_in=1, k=5, pad=2)
    h2 = _lrelu(_bn(z2, g2_ref[...], t2_ref[...], m2_ref[...], m // 2))

    # Layer 3: Conv1d(64,128,5,2,p=2); true outputs at pos % 4 == 0.
    z3 = _conv_grid(h2, pos, w3_ref[...], b3_ref[...], sp_in=2, k=5, pad=2)
    h3 = _lrelu(_bn(z3, g3_ref[...], t3_ref[...], m3_ref[...], m // 4))

    # Layer 4: Conv1d(128,256,5,2,p=2); true outputs at pos % 8 == 0.
    z4 = _conv_grid(h3, pos, w4_ref[...], b4_ref[...], sp_in=4, k=5, pad=2)
    h4 = _lrelu(_bn(z4, g4_ref[...], t4_ref[...], m4_ref[...], m // 8))

    # Layer 5: Conv1d(256,1,4); the true score of sample n is row pos==0.
    out_ref[...] = _conv_grid(h4, pos, w5_ref[...], None, sp_in=8, k=4, pad=0)


def _to_matmul_weight(w):
    """torch Conv1d weight (C_out, C_in, k) -> (k*C_in, C_out), tap-major rows."""
    c_out, c_in, k = w.shape
    return jnp.transpose(w, (2, 1, 0)).reshape(k * c_in, c_out)


def _row(v):
    return v.reshape(1, -1).astype(jnp.float32)


def discriminator_forward(x, p):
    """x: (N, 672) float32 -> (N,) float32."""
    n = x.shape[0]
    assert x.shape[1] == L_IN
    m = n * GRID

    # Layers 0+1 are non-overlapping: each layer-1 output depends on a
    # contiguous 21-sample window of x.
    x21 = x.reshape(m, 21).astype(MATMUL_DTYPE)
    w0m = _to_matmul_weight(p['w0'])                      # (7, 32)
    w01 = jnp.zeros((21, 3 * DIM), jnp.float32)           # block-diag fused conv0
    for j in range(3):
        w01 = w01.at[7 * j:7 * (j + 1), DIM * j:DIM * (j + 1)].set(w0m)
    b0c = jnp.tile(p['b0'], 3).reshape(1, -1).astype(jnp.float32)

    # Precomputed per-row grid position and BN validity masks (tiny, f32/int32).
    pos = jnp.tile(jnp.arange(GRID, dtype=jnp.int32), n).reshape(m, 1)
    bnm2 = ((pos % 2) == 0).astype(jnp.float32)
    bnm3 = ((pos % 4) == 0).astype(jnp.float32)
    bnm4 = ((pos % 8) == 0).astype(jnp.float32)

    cast = lambda w: w.astype(MATMUL_DTYPE)
    args = (
        x21, pos, bnm2, bnm3, bnm4,
        cast(w01), b0c,
        cast(_to_matmul_weight(p['w1'])), _row(p['b1']), _row(p['g1']), _row(p['bt1']),
        cast(_to_matmul_weight(p['w2'])), _row(p['b2']), _row(p['g2']), _row(p['bt2']),
        cast(_to_matmul_weight(p['w3'])), _row(p['b3']), _row(p['g3']), _row(p['bt3']),
        cast(_to_matmul_weight(p['w4'])), _row(p['b4']), _row(p['g4']), _row(p['bt4']),
        cast(_to_matmul_weight(p['w5'])),
    )

    z5 = pl.pallas_call(
        _disc_kernel,
        out_shape=jax.ShapeDtypeStruct((m, 1), jnp.float32),
        in_specs=[pl.BlockSpec(memory_space=pltpu.MemorySpace.VMEM)] * len(args),
        out_specs=pl.BlockSpec(memory_space=pltpu.MemorySpace.VMEM),
        compiler_params=pltpu.CompilerParams(vmem_limit_bytes=64 * 1024 * 1024),
    )(*args)

    # Trivial epilogue: per-sample score lives at grid position 0; add b5.
    return z5.reshape(n, GRID)[:, 0] + p['b5'][0]


def init_params(key, in_dim=1, dim=DIM):
    """Deterministic params with torch layouts: conv w (C_out,C_in,k), b (C_out,)."""
    specs = [('0', dim, in_dim, 7),
             ('1', dim, dim, 3),
             ('2', dim * 2, dim, 5),
             ('3', dim * 4, dim * 2, 5),
             ('4', dim * 8, dim * 4, 5),
             ('5', 1, dim * 8, 4)]
    keys = jax.random.split(key, len(specs) * 3)
    p = {}
    for i, (name, co, ci, k) in enumerate(specs):
        kw, kb, kg = keys[3 * i], keys[3 * i + 1], keys[3 * i + 2]
        p['w' + name] = 0.02 * jax.random.normal(kw, (co, ci, k), jnp.float32)
        bound = 1.0 / math.sqrt(ci * k)
        p['b' + name] = jax.random.uniform(kb, (co,), jnp.float32, -bound, bound)
        if name in ('1', '2', '3', '4'):      # BN layers
            p['g' + name] = 1.0 + 0.02 * jax.random.normal(kg, (co,), jnp.float32)
            p['bt' + name] = jnp.zeros((co,), jnp.float32)
    return p


def reference_forward(x, p):
    """Pure-JAX (NCL) reference matching the torch module in train mode."""
    h = x[:, None, :]

    def conv(h, w, b, s, pad):
        y = jax.lax.conv_general_dilated(
            h, w, (s,), [(pad, pad)], dimension_numbers=('NCH', 'OIH', 'NCH'))
        return y + b[None, :, None]

    def bn(h, g, bt):
        mmean = jnp.mean(h, axis=(0, 2), keepdims=True)
        v = jnp.mean((h - mmean) ** 2, axis=(0, 2), keepdims=True)
        return (h - mmean) / jnp.sqrt(v + BN_EPS) * g[None, :, None] + bt[None, :, None]

    h = _lrelu(conv(h, p['w0'], p['b0'], 7, 0))
    h = _lrelu(bn(conv(h, p['w1'], p['b1'], 3, 0), p['g1'], p['bt1']))
    h = _lrelu(bn(conv(h, p['w2'], p['b2'], 2, 2), p['g2'], p['bt2']))
    h = _lrelu(bn(conv(h, p['w3'], p['b3'], 2, 2), p['g3'], p['bt3']))
    h = _lrelu(bn(conv(h, p['w4'], p['b4'], 2, 2), p['g4'], p['bt4']))
    h = conv(h, p['w5'], p['b5'], 1, 0)
    return h.reshape(-1)


if __name__ == "__main__":
    key = jax.random.PRNGKey(0)
    kx, kp = jax.random.split(key)
    N = 2
    x = jax.random.normal(kx, (N, L_IN), jnp.float32)
    params = init_params(kp)

    y = discriminator_forward(x, params)
    y = jax.block_until_ready(y)

    y_ref = reference_forward(x, params)
    assert y.shape == (N,), y.shape
    # kernel uses bf16 MXU operands with f32 accumulation -> loose-ish tolerance
    assert jnp.allclose(y, y_ref, rtol=2e-2, atol=2e-2), (y, y_ref)
    print("KERNEL_OK")
</pallas_src>

<mosaic_0001>
module attributes {stable_mosaic.version = 11 : i64} {
  func.func @_disc_kernel(%arg0: memref<64x21xbf16, #tpu.memory_space<vmem>>, %arg1: memref<64x1xi32, #tpu.memory_space<vmem>>, %arg2: memref<64x1xf32, #tpu.memory_space<vmem>>, %arg3: memref<64x1xf32, #tpu.memory_space<vmem>>, %arg4: memref<64x1xf32, #tpu.memory_space<vmem>>, %arg5: memref<21x96xbf16, #tpu.memory_space<vmem>>, %arg6: memref<1x96xf32, #tpu.memory_space<vmem>>, %arg7: memref<96x32xbf16, #tpu.memory_space<vmem>>, %arg8: memref<1x32xf32, #tpu.memory_space<vmem>>, %arg9: memref<1x32xf32, #tpu.memory_space<vmem>>, %arg10: memref<1x32xf32, #tpu.memory_space<vmem>>, %arg11: memref<160x64xbf16, #tpu.memory_space<vmem>>, %arg12: memref<1x64xf32, #tpu.memory_space<vmem>>, %arg13: memref<1x64xf32, #tpu.memory_space<vmem>>, %arg14: memref<1x64xf32, #tpu.memory_space<vmem>>, %arg15: memref<320x128xbf16, #tpu.memory_space<vmem>>, %arg16: memref<1x128xf32, #tpu.memory_space<vmem>>, %arg17: memref<1x128xf32, #tpu.memory_space<vmem>>, %arg18: memref<1x128xf32, #tpu.memory_space<vmem>>, %arg19: memref<640x256xbf16, #tpu.memory_space<vmem>>, %arg20: memref<1x256xf32, #tpu.memory_space<vmem>>, %arg21: memref<1x256xf32, #tpu.memory_space<vmem>>, %arg22: memref<1x256xf32, #tpu.memory_space<vmem>>, %arg23: memref<1024x1xbf16, #tpu.memory_space<vmem>>, %arg24: memref<64x1xf32, #tpu.memory_space<vmem>>) attributes {dimension_semantics = [], scalar_prefetch = 0 : i64, scratch_operands = 0 : i64, tpu.core_type = #tpu.core_type<tc>} {
    %c0 = arith.constant 0 : index
    %c0_0 = arith.constant 0 : index
    %0 = vector.load %arg1[%c0, %c0_0] : memref<64x1xi32, #tpu.memory_space<vmem>>, vector<64x1xi32>
    %c0_1 = arith.constant 0 : index
    %c0_2 = arith.constant 0 : index
    %1 = vector.load %arg0[%c0_1, %c0_2] : memref<64x21xbf16, #tpu.memory_space<vmem>>, vector<64x21xbf16>
    %c0_3 = arith.constant 0 : index
    %c0_4 = arith.constant 0 : index
    %2 = vector.load %arg5[%c0_3, %c0_4] : memref<21x96xbf16, #tpu.memory_space<vmem>>, vector<21x96xbf16>
    %cst = arith.constant dense<0.000000e+00> : vector<64x96xf32>
    %3 = tpu.matmul %1, %2, %cst {dimension_numbers = #tpu.dot_dimension_numbers<[1], [0], [0], [1], [0, 0, 1, 1], [], []>} : vector<64x21xbf16>, vector<21x96xbf16>, vector<64x96xf32> -> vector<64x96xf32>
    %c0_5 = arith.constant 0 : index
    %c0_6 = arith.constant 0 : index
    %4 = vector.load %arg6[%c0_5, %c0_6] : memref<1x96xf32, #tpu.memory_space<vmem>>, vector<1x96xf32>
    %5 = vector.broadcast %4 : vector<1x96xf32> to vector<64x96xf32>
    %6 = arith.addf %3, %5 : vector<64x96xf32>
    %cst_7 = arith.constant 0.000000e+00 : f32
    %7 = vector.broadcast %cst_7 : f32 to vector<64x96xf32>
    %8 = arith.cmpf ogt, %6, %7 : vector<64x96xf32>
    %cst_8 = arith.constant 2.000000e-01 : f32
    %9 = vector.broadcast %cst_8 : f32 to vector<64x96xf32>
    %10 = arith.mulf %9, %6 : vector<64x96xf32>
    %11 = arith.select %8, %6, %10 : vector<64x96xi1>, vector<64x96xf32>
    %12 = arith.truncf %11 : vector<64x96xf32> to vector<64x96xbf16>
    %c0_9 = arith.constant 0 : index
    %c0_10 = arith.constant 0 : index
    %13 = vector.load %arg7[%c0_9, %c0_10] : memref<96x32xbf16, #tpu.memory_space<vmem>>, vector<96x32xbf16>
    %cst_11 = arith.constant dense<0.000000e+00> : vector<64x32xf32>
    %14 = tpu.matmul %12, %13, %cst_11 {dimension_numbers = #tpu.dot_dimension_numbers<[1], [0], [0], [1], [0, 0, 1, 1], [], []>} : vector<64x96xbf16>, vector<96x32xbf16>, vector<64x32xf32> -> vector<64x32xf32>
    %c0_12 = arith.constant 0 : index
    %c0_13 = arith.constant 0 : index
    %15 = vector.load %arg8[%c0_12, %c0_13] : memref<1x32xf32, #tpu.memory_space<vmem>>, vector<1x32xf32>
    %16 = vector.broadcast %15 : vector<1x32xf32> to vector<64x32xf32>
    %17 = arith.addf %14, %16 : vector<64x32xf32>
    %c0_14 = arith.constant 0 : index
    %c0_15 = arith.constant 0 : index
    %18 = vector.load %arg9[%c0_14, %c0_15] : memref<1x32xf32, #tpu.memory_space<vmem>>, vector<1x32xf32>
    %c0_16 = arith.constant 0 : index
    %c0_17 = arith.constant 0 : index
    %19 = vector.load %arg10[%c0_16, %c0_17] : memref<1x32xf32, #tpu.memory_space<vmem>>, vector<1x32xf32>
    %cst_18 = arith.constant dense<0.000000e+00> : vector<32xf32>
    %20 = vector.multi_reduction <add>, %17, %cst_18 [0] : vector<64x32xf32> to vector<32xf32>
    %21 = vector.shape_cast %20 : vector<32xf32> to vector<1x32xf32>
    %cst_19 = arith.constant 1.562500e-02 : f32
    %22 = vector.broadcast %cst_19 : f32 to vector<1x32xf32>
    %23 = arith.mulf %21, %22 : vector<1x32xf32>
    %24 = arith.mulf %17, %17 : vector<64x32xf32>
    %cst_20 = arith.constant dense<0.000000e+00> : vector<32xf32>
    %25 = vector.multi_reduction <add>, %24, %cst_20 [0] : vector<64x32xf32> to vector<32xf32>
    %26 = vector.shape_cast %25 : vector<32xf32> to vector<1x32xf32>
    %cst_21 = arith.constant 1.562500e-02 : f32
    %27 = vector.broadcast %cst_21 : f32 to vector<1x32xf32>
    %28 = arith.mulf %26, %27 : vector<1x32xf32>
    %29 = arith.mulf %23, %23 : vector<1x32xf32>
    %30 = arith.subf %28, %29 : vector<1x32xf32>
    %cst_22 = arith.constant 9.99999974E-6 : f32
    %31 = vector.broadcast %cst_22 : f32 to vector<1x32xf32>
    %32 = arith.addf %30, %31 : vector<1x32xf32>
    %33 = math.rsqrt %32 : vector<1x32xf32>
    %34 = arith.mulf %18, %33 : vector<1x32xf32>
    %35 = vector.broadcast %23 : vector<1x32xf32> to vector<64x32xf32>
    %36 = arith.subf %17, %35 : vector<64x32xf32>
    %37 = vector.broadcast %34 : vector<1x32xf32> to vector<64x32xf32>
    %38 = arith.mulf %36, %37 : vector<64x32xf32>
    %39 = vector.broadcast %19 : vector<1x32xf32> to vector<64x32xf32>
    %40 = arith.addf %38, %39 : vector<64x32xf32>
    %cst_23 = arith.constant 0.000000e+00 : f32
    %41 = vector.broadcast %cst_23 : f32 to vector<64x32xf32>
    %42 = arith.cmpf ogt, %40, %41 : vector<64x32xf32>
    %cst_24 = arith.constant 2.000000e-01 : f32
    %43 = vector.broadcast %cst_24 : f32 to vector<64x32xf32>
    %44 = arith.mulf %43, %40 : vector<64x32xf32>
    %45 = arith.select %42, %40, %44 : vector<64x32xi1>, vector<64x32xf32>
    %c0_25 = arith.constant 0 : index
    %c0_26 = arith.constant 0 : index
    %46 = vector.load %arg11[%c0_25, %c0_26] : memref<160x64xbf16, #tpu.memory_space<vmem>>, vector<160x64xbf16>
    %c0_27 = arith.constant 0 : index
    %c0_28 = arith.constant 0 : index
    %47 = vector.load %arg12[%c0_27, %c0_28] : memref<1x64xf32, #tpu.memory_space<vmem>>, vector<1x64xf32>
    %cst_29 = arith.constant 0.000000e+00 : f32
    %48 = vector.broadcast %cst_29 : f32 to vector<2x32xf32>
    %49 = tpu.concatenate %48, %45, %48 in 0 : vector<2x32xf32>, vector<64x32xf32>, vector<2x32xf32> -> vector<68x32xf32>
    %50 = vector.extract_strided_slice %49 {offsets = [0, 0], sizes = [64, 32], strides = [1, 1]} : vector<68x32xf32> to vector<64x32xf32>
    %c-2_i32 = arith.constant -2 : i32
    %51 = vector.broadcast %c-2_i32 : i32 to vector<64x1xi32>
    %52 = arith.addi %0, %51 : vector<64x1xi32>
    %c0_i32 = arith.constant 0 : i32
    %53 = vector.broadcast %c0_i32 : i32 to vector<64x1xi32>
    %54 = arith.cmpi sge, %52, %53 : vector<64x1xi32>
    %c-2_i32_30 = arith.constant -2 : i32
    %55 = vector.broadcast %c-2_i32_30 : i32 to vector<64x1xi32>
    %56 = arith.addi %0, %55 : vector<64x1xi32>
    %c32_i32 = arith.constant 32 : i32
    %57 = vector.broadcast %c32_i32 : i32 to vector<64x1xi32>
    %58 = arith.cmpi slt, %56, %57 : vector<64x1xi32>
    %59 = arith.andi %54, %58 : vector<64x1xi1>
    %60 = arith.extui %59 : vector<64x1xi1> to vector<64x1xi32>
    %61 = arith.sitofp %60 : vector<64x1xi32> to vector<64x1xf32>
    %62 = vector.broadcast %61 : vector<64x1xf32> to vector<64x32xf32>
    %63 = arith.mulf %50, %62 : vector<64x32xf32>
    %64 = vector.extract_strided_slice %49 {offsets = [1, 0], sizes = [64, 32], strides = [1, 1]} : vector<68x32xf32> to vector<64x32xf32>
    %c-1_i32 = arith.constant -1 : i32
    %65 = vector.broadcast %c-1_i32 : i32 to vector<64x1xi32>
    %66 = arith.addi %0, %65 : vector<64x1xi32>
    %c0_i32_31 = arith.constant 0 : i32
    %67 = vector.broadcast %c0_i32_31 : i32 to vector<64x1xi32>
    %68 = arith.cmpi sge, %66, %67 : vector<64x1xi32>
    %c-1_i32_32 = arith.constant -1 : i32
    %69 = vector.broadcast %c-1_i32_32 : i32 to vector<64x1xi32>
    %70 = arith.addi %0, %69 : vector<64x1xi32>
    %c32_i32_33 = arith.constant 32 : i32
    %71 = vector.broadcast %c32_i32_33 : i32 to vector<64x1xi32>
    %72 = arith.cmpi slt, %70, %71 : vector<64x1xi32>
    %73 = arith.andi %68, %72 : vector<64x1xi1>
    %74 = arith.extui %73 : vector<64x1xi1> to vector<64x1xi32>
    %75 = arith.sitofp %74 : vector<64x1xi32> to vector<64x1xf32>
    %76 = vector.broadcast %75 : vector<64x1xf32> to vector<64x32xf32>
    %77 = arith.mulf %64, %76 : vector<64x32xf32>
    %78 = vector.extract_strided_slice %49 {offsets = [2, 0], sizes = [64, 32], strides = [1, 1]} : vector<68x32xf32> to vector<64x32xf32>
    %79 = vector.extract_strided_slice %49 {offsets = [3, 0], sizes = [64, 32], strides = [1, 1]} : vector<68x32xf32> to vector<64x32xf32>
    %c1_i32 = arith.constant 1 : i32
    %80 = vector.broadcast %c1_i32 : i32 to vector<64x1xi32>
    %81 = arith.addi %0, %80 : vector<64x1xi32>
    %c0_i32_34 = arith.constant 0 : i32
    %82 = vector.broadcast %c0_i32_34 : i32 to vector<64x1xi32>
    %83 = arith.cmpi sge, %81, %82 : vector<64x1xi32>
    %c1_i32_35 = arith.constant 1 : i32
    %84 = vector.broadcast %c1_i32_35 : i32 to vector<64x1xi32>
    %85 = arith.addi %0, %84 : vector<64x1xi32>
    %c32_i32_36 = arith.constant 32 : i32
    %86 = vector.broadcast %c32_i32_36 : i32 to vector<64x1xi32>
    %87 = arith.cmpi slt, %85, %86 : vector<64x1xi32>
    %88 = arith.andi %83, %87 : vector<64x1xi1>
    %89 = arith.extui %88 : vector<64x1xi1> to vector<64x1xi32>
    %90 = arith.sitofp %89 : vector<64x1xi32> to vector<64x1xf32>
    %91 = vector.broadcast %90 : vector<64x1xf32> to vector<64x32xf32>
    %92 = arith.mulf %79, %91 : vector<64x32xf32>
    %93 = vector.extract_strided_slice %49 {offsets = [4, 0], sizes = [64, 32], strides = [1, 1]} : vector<68x32xf32> to vector<64x32xf32>
    %c2_i32 = arith.constant 2 : i32
    %94 = vector.broadcast %c2_i32 : i32 to vector<64x1xi32>
    %95 = arith.addi %0, %94 : vector<64x1xi32>
    %c0_i32_37 = arith.constant 0 : i32
    %96 = vector.broadcast %c0_i32_37 : i32 to vector<64x1xi32>
    %97 = arith.cmpi sge, %95, %96 : vector<64x1xi32>
    %c2_i32_38 = arith.constant 2 : i32
    %98 = vector.broadcast %c2_i32_38 : i32 to vector<64x1xi32>
    %99 = arith.addi %0, %98 : vector<64x1xi32>
    %c32_i32_39 = arith.constant 32 : i32
    %100 = vector.broadcast %c32_i32_39 : i32 to vector<64x1xi32>
    %101 = arith.cmpi slt, %99, %100 : vector<64x1xi32>
    %102 = arith.andi %97, %101 : vector<64x1xi1>
    %103 = arith.extui %102 : vector<64x1xi1> to vector<64x1xi32>
    %104 = arith.sitofp %103 : vector<64x1xi32> to vector<64x1xf32>
    %105 = vector.broadcast %104 : vector<64x1xf32> to vector<64x32xf32>
    %106 = arith.mulf %93, %105 : vector<64x32xf32>
    %107 = tpu.concatenate %63, %77, %78, %92, %106 in 1 : vector<64x32xf32>, vector<64x32xf32>, vector<64x32xf32>, vector<64x32xf32>, vector<64x32xf32> -> vector<64x160xf32>
    %108 = arith.truncf %107 : vector<64x160xf32> to vector<64x160xbf16>
    %cst_40 = arith.constant dense<0.000000e+00> : vector<64x64xf32>
    %109 = tpu.matmul %108, %46, %cst_40 {dimension_numbers = #tpu.dot_dimension_numbers<[1], [0], [0], [1], [0, 0, 1, 1], [], []>} : vector<64x160xbf16>, vector<160x64xbf16>, vector<64x64xf32> -> vector<64x64xf32>
    %110 = vector.broadcast %47 : vector<1x64xf32> to vector<64x64xf32>
    %111 = arith.addf %109, %110 : vector<64x64xf32>
    %c0_41 = arith.constant 0 : index
    %c0_42 = arith.constant 0 : index
    %112 = vector.load %arg13[%c0_41, %c0_42] : memref<1x64xf32, #tpu.memory_space<vmem>>, vector<1x64xf32>
    %c0_43 = arith.constant 0 : index
    %c0_44 = arith.constant 0 : index
    %113 = vector.load %arg14[%c0_43, %c0_44] : memref<1x64xf32, #tpu.memory_space<vmem>>, vector<1x64xf32>
    %c0_45 = arith.constant 0 : index
    %c0_46 = arith.constant 0 : index
    %114 = vector.load %arg2[%c0_45, %c0_46] : memref<64x1xf32, #tpu.memory_space<vmem>>, vector<64x1xf32>
    %115 = vector.broadcast %114 : vector<64x1xf32> to vector<64x64xf32>
    %116 = arith.mulf %111, %115 : vector<64x64xf32>
    %cst_47 = arith.constant dense<0.000000e+00> : vector<64xf32>
    %117 = vector.multi_reduction <add>, %116, %cst_47 [0] : vector<64x64xf32> to vector<64xf32>
    %118 = vector.shape_cast %117 : vector<64xf32> to vector<1x64xf32>
    %cst_48 = arith.constant 3.125000e-02 : f32
    %119 = vector.broadcast %cst_48 : f32 to vector<1x64xf32>
    %120 = arith.mulf %118, %119 : vector<1x64xf32>
    %121 = arith.mulf %116, %111 : vector<64x64xf32>
    %cst_49 = arith.constant dense<0.000000e+00> : vector<64xf32>
    %122 = vector.multi_reduction <add>, %121, %cst_49 [0] : vector<64x64xf32> to vector<64xf32>
    %123 = vector.shape_cast %122 : vector<64xf32> to vector<1x64xf32>
    %cst_50 = arith.constant 3.125000e-02 : f32
    %124 = vector.broadcast %cst_50 : f32 to vector<1x64xf32>
    %125 = arith.mulf %123, %124 : vector<1x64xf32>
    %126 = arith.mulf %120, %120 : vector<1x64xf32>
    %127 = arith.subf %125, %126 : vector<1x64xf32>
    %cst_51 = arith.constant 9.99999974E-6 : f32
    %128 = vector.broadcast %cst_51 : f32 to vector<1x64xf32>
    %129 = arith.addf %127, %128 : vector<1x64xf32>
    %130 = math.rsqrt %129 : vector<1x64xf32>
    %131 = arith.mulf %112, %130 : vector<1x64xf32>
    %132 = vector.broadcast %120 : vector<1x64xf32> to vector<64x64xf32>
    %133 = arith.subf %111, %132 : vector<64x64xf32>
    %134 = vector.broadcast %131 : vector<1x64xf32> to vector<64x64xf32>
    %135 = arith.mulf %133, %134 : vector<64x64xf32>
    %136 = vector.broadcast %113 : vector<1x64xf32> to vector<64x64xf32>
    %137 = arith.addf %135, %136 : vector<64x64xf32>
    %cst_52 = arith.constant 0.000000e+00 : f32
    %138 = vector.broadcast %cst_52 : f32 to vector<64x64xf32>
    %139 = arith.cmpf ogt, %137, %138 : vector<64x64xf32>
    %cst_53 = arith.constant 2.000000e-01 : f32
    %140 = vector.broadcast %cst_53 : f32 to vector<64x64xf32>
    %141 = arith.mulf %140, %137 : vector<64x64xf32>
    %142 = arith.select %139, %137, %141 : vector<64x64xi1>, vector<64x64xf32>
    %c0_54 = arith.constant 0 : index
    %c0_55 = arith.constant 0 : index
    %143 = vector.load %arg15[%c0_54, %c0_55] : memref<320x128xbf16, #tpu.memory_space<vmem>>, vector<320x128xbf16>
    %c0_56 = arith.constant 0 : index
    %c0_57 = arith.constant 0 : index
    %144 = vector.load %arg16[%c0_56, %c0_57] : memref<1x128xf32, #tpu.memory_space<vmem>>, vector<1x128xf32>
    %cst_58 = arith.constant 0.000000e+00 : f32
    %145 = vector.broadcast %cst_58 : f32 to vector<4x64xf32>
    %146 = tpu.concatenate %145, %142, %145 in 0 : vector<4x64xf32>, vector<64x64xf32>, vector<4x64xf32> -> vector<72x64xf32>
    %147 = vector.extract_strided_slice %146 {offsets = [0, 0], sizes = [64, 64], strides = [1, 1]} : vector<72x64xf32> to vector<64x64xf32>
    %c-4_i32 = arith.constant -4 : i32
    %148 = vector.broadcast %c-4_i32 : i32 to vector<64x1xi32>
    %149 = arith.addi %0, %148 : vector<64x1xi32>
    %c0_i32_59 = arith.constant 0 : i32
    %150 = vector.broadcast %c0_i32_59 : i32 to vector<64x1xi32>
    %151 = arith.cmpi sge, %149, %150 : vector<64x1xi32>
    %c-4_i32_60 = arith.constant -4 : i32
    %152 = vector.broadcast %c-4_i32_60 : i32 to vector<64x1xi32>
    %153 = arith.addi %0, %152 : vector<64x1xi32>
    %c32_i32_61 = arith.constant 32 : i32
    %154 = vector.broadcast %c32_i32_61 : i32 to vector<64x1xi32>
    %155 = arith.cmpi slt, %153, %154 : vector<64x1xi32>
    %156 = arith.andi %151, %155 : vector<64x1xi1>
    %157 = arith.extui %156 : vector<64x1xi1> to vector<64x1xi32>
    %158 = arith.sitofp %157 : vector<64x1xi32> to vector<64x1xf32>
    %159 = vector.broadcast %158 : vector<64x1xf32> to vector<64x64xf32>
    %160 = arith.mulf %147, %159 : vector<64x64xf32>
    %161 = vector.extract_strided_slice %146 {offsets = [2, 0], sizes = [64, 64], strides = [1, 1]} : vector<72x64xf32> to vector<64x64xf32>
    %c-2_i32_62 = arith.constant -2 : i32
    %162 = vector.broadcast %c-2_i32_62 : i32 to vector<64x1xi32>
    %163 = arith.addi %0, %162 : vector<64x1xi32>
    %c0_i32_63 = arith.constant 0 : i32
    %164 = vector.broadcast %c0_i32_63 : i32 to vector<64x1xi32>
    %165 = arith.cmpi sge, %163, %164 : vector<64x1xi32>
    %c-2_i32_64 = arith.constant -2 : i32
    %166 = vector.broadcast %c-2_i32_64 : i32 to vector<64x1xi32>
    %167 = arith.addi %0, %166 : vector<64x1xi32>
    %c32_i32_65 = arith.constant 32 : i32
    %168 = vector.broadcast %c32_i32_65 : i32 to vector<64x1xi32>
    %169 = arith.cmpi slt, %167, %168 : vector<64x1xi32>
    %170 = arith.andi %165, %169 : vector<64x1xi1>
    %171 = arith.extui %170 : vector<64x1xi1> to vector<64x1xi32>
    %172 = arith.sitofp %171 : vector<64x1xi32> to vector<64x1xf32>
    %173 = vector.broadcast %172 : vector<64x1xf32> to vector<64x64xf32>
    %174 = arith.mulf %161, %173 : vector<64x64xf32>
    %175 = vector.extract_strided_slice %146 {offsets = [4, 0], sizes = [64, 64], strides = [1, 1]} : vector<72x64xf32> to vector<64x64xf32>
    %176 = vector.extract_strided_slice %146 {offsets = [6, 0], sizes = [64, 64], strides = [1, 1]} : vector<72x64xf32> to vector<64x64xf32>
    %c2_i32_66 = arith.constant 2 : i32
    %177 = vector.broadcast %c2_i32_66 : i32 to vector<64x1xi32>
    %178 = arith.addi %0, %177 : vector<64x1xi32>
    %c0_i32_67 = arith.constant 0 : i32
    %179 = vector.broadcast %c0_i32_67 : i32 to vector<64x1xi32>
    %180 = arith.cmpi sge, %178, %179 : vector<64x1xi32>
    %c2_i32_68 = arith.constant 2 : i32
    %181 = vector.broadcast %c2_i32_68 : i32 to vector<64x1xi32>
    %182 = arith.addi %0, %181 : vector<64x1xi32>
    %c32_i32_69 = arith.constant 32 : i32
    %183 = vector.broadcast %c32_i32_69 : i32 to vector<64x1xi32>
    %184 = arith.cmpi slt, %182, %183 : vector<64x1xi32>
    %185 = arith.andi %180, %184 : vector<64x1xi1>
    %186 = arith.extui %185 : vector<64x1xi1> to vector<64x1xi32>
    %187 = arith.sitofp %186 : vector<64x1xi32> to vector<64x1xf32>
    %188 = vector.broadcast %187 : vector<64x1xf32> to vector<64x64xf32>
    %189 = arith.mulf %176, %188 : vector<64x64xf32>
    %190 = vector.extract_strided_slice %146 {offsets = [8, 0], sizes = [64, 64], strides = [1, 1]} : vector<72x64xf32> to vector<64x64xf32>
    %c4_i32 = arith.constant 4 : i32
    %191 = vector.broadcast %c4_i32 : i32 to vector<64x1xi32>
    %192 = arith.addi %0, %191 : vector<64x1xi32>
    %c0_i32_70 = arith.constant 0 : i32
    %193 = vector.broadcast %c0_i32_70 : i32 to vector<64x1xi32>
    %194 = arith.cmpi sge, %192, %193 : vector<64x1xi32>
    %c4_i32_71 = arith.constant 4 : i32
    %195 = vector.broadcast %c4_i32_71 : i32 to vector<64x1xi32>
    %196 = arith.addi %0, %195 : vector<64x1xi32>
    %c32_i32_72 = arith.constant 32 : i32
    %197 = vector.broadcast %c32_i32_72 : i32 to vector<64x1xi32>
    %198 = arith.cmpi slt, %196, %197 : vector<64x1xi32>
    %199 = arith.andi %194, %198 : vector<64x1xi1>
    %200 = arith.extui %199 : vector<64x1xi1> to vector<64x1xi32>
    %201 = arith.sitofp %200 : vector<64x1xi32> to vector<64x1xf32>
    %202 = vector.broadcast %201 : vector<64x1xf32> to vector<64x64xf32>
    %203 = arith.mulf %190, %202 : vector<64x64xf32>
    %204 = tpu.concatenate %160, %174, %175, %189, %203 in 1 : vector<64x64xf32>, vector<64x64xf32>, vector<64x64xf32>, vector<64x64xf32>, vector<64x64xf32> -> vector<64x320xf32>
    %205 = arith.truncf %204 : vector<64x320xf32> to vector<64x320xbf16>
    %cst_73 = arith.constant dense<0.000000e+00> : vector<64x128xf32>
    %206 = tpu.matmul %205, %143, %cst_73 {dimension_numbers = #tpu.dot_dimension_numbers<[1], [0], [0], [1], [0, 0, 1, 1], [], []>} : vector<64x320xbf16>, vector<320x128xbf16>, vector<64x128xf32> -> vector<64x128xf32>
    %207 = vector.broadcast %144 : vector<1x128xf32> to vector<64x128xf32>
    %208 = arith.addf %206, %207 : vector<64x128xf32>
    %c0_74 = arith.constant 0 : index
    %c0_75 = arith.constant 0 : index
    %209 = vector.load %arg17[%c0_74, %c0_75] : memref<1x128xf32, #tpu.memory_space<vmem>>, vector<1x128xf32>
    %c0_76 = arith.constant 0 : index
    %c0_77 = arith.constant 0 : index
    %210 = vector.load %arg18[%c0_76, %c0_77] : memref<1x128xf32, #tpu.memory_space<vmem>>, vector<1x128xf32>
    %c0_78 = arith.constant 0 : index
    %c0_79 = arith.constant 0 : index
    %211 = vector.load %arg3[%c0_78, %c0_79] : memref<64x1xf32, #tpu.memory_space<vmem>>, vector<64x1xf32>
    %212 = vector.broadcast %211 : vector<64x1xf32> to vector<64x128xf32>
    %213 = arith.mulf %208, %212 : vector<64x128xf32>
    %cst_80 = arith.constant dense<0.000000e+00> : vector<128xf32>
    %214 = vector.multi_reduction <add>, %213, %cst_80 [0] : vector<64x128xf32> to vector<128xf32>
    %215 = vector.shape_cast %214 : vector<128xf32> to vector<1x128xf32>
    %cst_81 = arith.constant 6.250000e-02 : f32
    %216 = vector.broadcast %cst_81 : f32 to vector<1x128xf32>
    %217 = arith.mulf %215, %216 : vector<1x128xf32>
    %218 = arith.mulf %213, %208 : vector<64x128xf32>
    %cst_82 = arith.constant dense<0.000000e+00> : vector<128xf32>
    %219 = vector.multi_reduction <add>, %218, %cst_82 [0] : vector<64x128xf32> to vector<128xf32>
    %220 = vector.shape_cast %219 : vector<128xf32> to vector<1x128xf32>
    %cst_83 = arith.constant 6.250000e-02 : f32
    %221 = vector.broadcast %cst_83 : f32 to vector<1x128xf32>
    %222 = arith.mulf %220, %221 : vector<1x128xf32>
    %223 = arith.mulf %217, %217 : vector<1x128xf32>
    %224 = arith.subf %222, %223 : vector<1x128xf32>
    %cst_84 = arith.constant 9.99999974E-6 : f32
    %225 = vector.broadcast %cst_84 : f32 to vector<1x128xf32>
    %226 = arith.addf %224, %225 : vector<1x128xf32>
    %227 = math.rsqrt %226 : vector<1x128xf32>
    %228 = arith.mulf %209, %227 : vector<1x128xf32>
    %229 = vector.broadcast %217 : vector<1x128xf32> to vector<64x128xf32>
    %230 = arith.subf %208, %229 : vector<64x128xf32>
    %231 = vector.broadcast %228 : vector<1x128xf32> to vector<64x128xf32>
    %232 = arith.mulf %230, %231 : vector<64x128xf32>
    %233 = vector.broadcast %210 : vector<1x128xf32> to vector<64x128xf32>
    %234 = arith.addf %232, %233 : vector<64x128xf32>
    %cst_85 = arith.constant 0.000000e+00 : f32
    %235 = vector.broadcast %cst_85 : f32 to vector<64x128xf32>
    %236 = arith.cmpf ogt, %234, %235 : vector<64x128xf32>
    %cst_86 = arith.constant 2.000000e-01 : f32
    %237 = vector.broadcast %cst_86 : f32 to vector<64x128xf32>
    %238 = arith.mulf %237, %234 : vector<64x128xf32>
    %239 = arith.select %236, %234, %238 : vector<64x128xi1>, vector<64x128xf32>
    %c0_87 = arith.constant 0 : index
    %c0_88 = arith.constant 0 : index
    %240 = vector.load %arg19[%c0_87, %c0_88] : memref<640x256xbf16, #tpu.memory_space<vmem>>, vector<640x256xbf16>
    %c0_89 = arith.constant 0 : index
    %c0_90 = arith.constant 0 : index
    %241 = vector.load %arg20[%c0_89, %c0_90] : memref<1x256xf32, #tpu.memory_space<vmem>>, vector<1x256xf32>
    %cst_91 = arith.constant 0.000000e+00 : f32
    %242 = vector.broadcast %cst_91 : f32 to vector<8x128xf32>
    %243 = tpu.concatenate %242, %239, %242 in 0 : vector<8x128xf32>, vector<64x128xf32>, vector<8x128xf32> -> vector<80x128xf32>
    %244 = vector.extract_strided_slice %243 {offsets = [0, 0], sizes = [64, 128], strides = [1, 1]} : vector<80x128xf32> to vector<64x128xf32>
    %c-8_i32 = arith.constant -8 : i32
    %245 = vector.broadcast %c-8_i32 : i32 to vector<64x1xi32>
    %246 = arith.addi %0, %245 : vector<64x1xi32>
    %c0_i32_92 = arith.constant 0 : i32
    %247 = vector.broadcast %c0_i32_92 : i32 to vector<64x1xi32>
    %248 = arith.cmpi sge, %246, %247 : vector<64x1xi32>
    %c-8_i32_93 = arith.constant -8 : i32
    %249 = vector.broadcast %c-8_i32_93 : i32 to vector<64x1xi32>
    %250 = arith.addi %0, %249 : vector<64x1xi32>
    %c32_i32_94 = arith.constant 32 : i32
    %251 = vector.broadcast %c32_i32_94 : i32 to vector<64x1xi32>
    %252 = arith.cmpi slt, %250, %251 : vector<64x1xi32>
    %253 = arith.andi %248, %252 : vector<64x1xi1>
    %254 = arith.extui %253 : vector<64x1xi1> to vector<64x1xi32>
    %255 = arith.sitofp %254 : vector<64x1xi32> to vector<64x1xf32>
    %256 = vector.broadcast %255 : vector<64x1xf32> to vector<64x128xf32>
    %257 = arith.mulf %244, %256 : vector<64x128xf32>
    %258 = vector.extract_strided_slice %243 {offsets = [4, 0], sizes = [64, 128], strides = [1, 1]} : vector<80x128xf32> to vector<64x128xf32>
    %c-4_i32_95 = arith.constant -4 : i32
    %259 = vector.broadcast %c-4_i32_95 : i32 to vector<64x1xi32>
    %260 = arith.addi %0, %259 : vector<64x1xi32>
    %c0_i32_96 = arith.constant 0 : i32
    %261 = vector.broadcast %c0_i32_96 : i32 to vector<64x1xi32>
    %262 = arith.cmpi sge, %260, %261 : vector<64x1xi32>
    %c-4_i32_97 = arith.constant -4 : i32
    %263 = vector.broadcast %c-4_i32_97 : i32 to vector<64x1xi32>
    %264 = arith.addi %0, %263 : vector<64x1xi32>
    %c32_i32_98 = arith.constant 32 : i32
    %265 = vector.broadcast %c32_i32_98 : i32 to vector<64x1xi32>
    %266 = arith.cmpi slt, %264, %265 : vector<64x1xi32>
    %267 = arith.andi %262, %266 : vector<64x1xi1>
    %268 = arith.extui %267 : vector<64x1xi1> to vector<64x1xi32>
    %269 = arith.sitofp %268 : vector<64x1xi32> to vector<64x1xf32>
    %270 = vector.broadcast %269 : vector<64x1xf32> to vector<64x128xf32>
    %271 = arith.mulf %258, %270 : vector<64x128xf32>
    %272 = vector.extract_strided_slice %243 {offsets = [8, 0], sizes = [64, 128], strides = [1, 1]} : vector<80x128xf32> to vector<64x128xf32>
    %273 = vector.extract_strided_slice %243 {offsets = [12, 0], sizes = [64, 128], strides = [1, 1]} : vector<80x128xf32> to vector<64x128xf32>
    %c4_i32_99 = arith.constant 4 : i32
    %274 = vector.broadcast %c4_i32_99 : i32 to vector<64x1xi32>
    %275 = arith.addi %0, %274 : vector<64x1xi32>
    %c0_i32_100 = arith.constant 0 : i32
    %276 = vector.broadcast %c0_i32_100 : i32 to vector<64x1xi32>
    %277 = arith.cmpi sge, %275, %276 : vector<64x1xi32>
    %c4_i32_101 = arith.constant 4 : i32
    %278 = vector.broadcast %c4_i32_101 : i32 to vector<64x1xi32>
    %279 = arith.addi %0, %278 : vector<64x1xi32>
    %c32_i32_102 = arith.constant 32 : i32
    %280 = vector.broadcast %c32_i32_102 : i32 to vector<64x1xi32>
    %281 = arith.cmpi slt, %279, %280 : vector<64x1xi32>
    %282 = arith.andi %277, %281 : vector<64x1xi1>
    %283 = arith.extui %282 : vector<64x1xi1> to vector<64x1xi32>
    %284 = arith.sitofp %283 : vector<64x1xi32> to vector<64x1xf32>
    %285 = vector.broadcast %284 : vector<64x1xf32> to vector<64x128xf32>
    %286 = arith.mulf %273, %285 : vector<64x128xf32>
    %287 = vector.extract_strided_slice %243 {offsets = [16, 0], sizes = [64, 128], strides = [1, 1]} : vector<80x128xf32> to vector<64x128xf32>
    %c8_i32 = arith.constant 8 : i32
    %288 = vector.broadcast %c8_i32 : i32 to vector<64x1xi32>
    %289 = arith.addi %0, %288 : vector<64x1xi32>
    %c0_i32_103 = arith.constant 0 : i32
    %290 = vector.broadcast %c0_i32_103 : i32 to vector<64x1xi32>
    %291 = arith.cmpi sge, %289, %290 : vector<64x1xi32>
    %c8_i32_104 = arith.constant 8 : i32
    %292 = vector.broadcast %c8_i32_104 : i32 to vector<64x1xi32>
    %293 = arith.addi %0, %292 : vector<64x1xi32>
    %c32_i32_105 = arith.constant 32 : i32
    %294 = vector.broadcast %c32_i32_105 : i32 to vector<64x1xi32>
    %295 = arith.cmpi slt, %293, %294 : vector<64x1xi32>
    %296 = arith.andi %291, %295 : vector<64x1xi1>
    %297 = arith.extui %296 : vector<64x1xi1> to vector<64x1xi32>
    %298 = arith.sitofp %297 : vector<64x1xi32> to vector<64x1xf32>
    %299 = vector.broadcast %298 : vector<64x1xf32> to vector<64x128xf32>
    %300 = arith.mulf %287, %299 : vector<64x128xf32>
    %301 = tpu.concatenate %257, %271, %272, %286, %300 in 1 : vector<64x128xf32>, vector<64x128xf32>, vector<64x128xf32>, vector<64x128xf32>, vector<64x128xf32> -> vector<64x640xf32>
    %302 = arith.truncf %301 : vector<64x640xf32> to vector<64x640xbf16>
    %cst_106 = arith.constant dense<0.000000e+00> : vector<64x256xf32>
    %303 = tpu.matmul %302, %240, %cst_106 {dimension_numbers = #tpu.dot_dimension_numbers<[1], [0], [0], [1], [0, 0, 1, 1], [], []>} : vector<64x640xbf16>, vector<640x256xbf16>, vector<64x256xf32> -> vector<64x256xf32>
    %304 = vector.broadcast %241 : vector<1x256xf32> to vector<64x256xf32>
    %305 = arith.addf %303, %304 : vector<64x256xf32>
    %c0_107 = arith.constant 0 : index
    %c0_108 = arith.constant 0 : index
    %306 = vector.load %arg21[%c0_107, %c0_108] : memref<1x256xf32, #tpu.memory_space<vmem>>, vector<1x256xf32>
    %c0_109 = arith.constant 0 : index
    %c0_110 = arith.constant 0 : index
    %307 = vector.load %arg22[%c0_109, %c0_110] : memref<1x256xf32, #tpu.memory_space<vmem>>, vector<1x256xf32>
    %c0_111 = arith.constant 0 : index
    %c0_112 = arith.constant 0 : index
    %308 = vector.load %arg4[%c0_111, %c0_112] : memref<64x1xf32, #tpu.memory_space<vmem>>, vector<64x1xf32>
    %309 = vector.broadcast %308 : vector<64x1xf32> to vector<64x256xf32>
    %310 = arith.mulf %305, %309 : vector<64x256xf32>
    %cst_113 = arith.constant dense<0.000000e+00> : vector<256xf32>
    %311 = vector.multi_reduction <add>, %310, %cst_113 [0] : vector<64x256xf32> to vector<256xf32>
    %312 = vector.shape_cast %311 : vector<256xf32> to vector<1x256xf32>
    %cst_114 = arith.constant 1.250000e-01 : f32
    %313 = vector.broadcast %cst_114 : f32 to vector<1x256xf32>
    %314 = arith.mulf %312, %313 : vector<1x256xf32>
    %315 = arith.mulf %310, %305 : vector<64x256xf32>
    %cst_115 = arith.constant dense<0.000000e+00> : vector<256xf32>
    %316 = vector.multi_reduction <add>, %315, %cst_115 [0] : vector<64x256xf32> to vector<256xf32>
    %317 = vector.shape_cast %316 : vector<256xf32> to vector<1x256xf32>
    %cst_116 = arith.constant 1.250000e-01 : f32
    %318 = vector.broadcast %cst_116 : f32 to vector<1x256xf32>
    %319 = arith.mulf %317, %318 : vector<1x256xf32>
    %320 = arith.mulf %314, %314 : vector<1x256xf32>
    %321 = arith.subf %319, %320 : vector<1x256xf32>
    %cst_117 = arith.constant 9.99999974E-6 : f32
    %322 = vector.broadcast %cst_117 : f32 to vector<1x256xf32>
    %323 = arith.addf %321, %322 : vector<1x256xf32>
    %324 = math.rsqrt %323 : vector<1x256xf32>
    %325 = arith.mulf %306, %324 : vector<1x256xf32>
    %326 = vector.broadcast %314 : vector<1x256xf32> to vector<64x256xf32>
    %327 = arith.subf %305, %326 : vector<64x256xf32>
    %328 = vector.broadcast %325 : vector<1x256xf32> to vector<64x256xf32>
    %329 = arith.mulf %327, %328 : vector<64x256xf32>
    %330 = vector.broadcast %307 : vector<1x256xf32> to vector<64x256xf32>
    %331 = arith.addf %329, %330 : vector<64x256xf32>
    %cst_118 = arith.constant 0.000000e+00 : f32
    %332 = vector.broadcast %cst_118 : f32 to vector<64x256xf32>
    %333 = arith.cmpf ogt, %331, %332 : vector<64x256xf32>
    %cst_119 = arith.constant 2.000000e-01 : f32
    %334 = vector.broadcast %cst_119 : f32 to vector<64x256xf32>
    %335 = arith.mulf %334, %331 : vector<64x256xf32>
    %336 = arith.select %333, %331, %335 : vector<64x256xi1>, vector<64x256xf32>
    %c0_120 = arith.constant 0 : index
    %c0_121 = arith.constant 0 : index
    %337 = vector.load %arg23[%c0_120, %c0_121] : memref<1024x1xbf16, #tpu.memory_space<vmem>>, vector<1024x1xbf16>
    %cst_122 = arith.constant 0.000000e+00 : f32
    %338 = vector.broadcast %cst_122 : f32 to vector<24x256xf32>
    %339 = tpu.concatenate %338, %336, %338 in 0 : vector<24x256xf32>, vector<64x256xf32>, vector<24x256xf32> -> vector<112x256xf32>
    %340 = vector.extract_strided_slice %339 {offsets = [24, 0], sizes = [64, 256], strides = [1, 1]} : vector<112x256xf32> to vector<64x256xf32>
    %341 = vector.extract_strided_slice %339 {offsets = [32, 0], sizes = [64, 256], strides = [1, 1]} : vector<112x256xf32> to vector<64x256xf32>
    %c8_i32_123 = arith.constant 8 : i32
    %342 = vector.broadcast %c8_i32_123 : i32 to vector<64x1xi32>
    %343 = arith.addi %0, %342 : vector<64x1xi32>
    %c0_i32_124 = arith.constant 0 : i32
    %344 = vector.broadcast %c0_i32_124 : i32 to vector<64x1xi32>
    %345 = arith.cmpi sge, %343, %344 : vector<64x1xi32>
    %c8_i32_125 = arith.constant 8 : i32
    %346 = vector.broadcast %c8_i32_125 : i32 to vector<64x1xi32>
    %347 = arith.addi %0, %346 : vector<64x1xi32>
    %c32_i32_126 = arith.constant 32 : i32
    %348 = vector.broadcast %c32_i32_126 : i32 to vector<64x1xi32>
    %349 = arith.cmpi slt, %347, %348 : vector<64x1xi32>
    %350 = arith.andi %345, %349 : vector<64x1xi1>
    %351 = arith.extui %350 : vector<64x1xi1> to vector<64x1xi32>
    %352 = arith.sitofp %351 : vector<64x1xi32> to vector<64x1xf32>
    %353 = vector.broadcast %352 : vector<64x1xf32> to vector<64x256xf32>
    %354 = arith.mulf %341, %353 : vector<64x256xf32>
    %355 = vector.extract_strided_slice %339 {offsets = [40, 0], sizes = [64, 256], strides = [1, 1]} : vector<112x256xf32> to vector<64x256xf32>
    %c16_i32 = arith.constant 16 : i32
    %356 = vector.broadcast %c16_i32 : i32 to vector<64x1xi32>
    %357 = arith.addi %0, %356 : vector<64x1xi32>
    %c0_i32_127 = arith.constant 0 : i32
    %358 = vector.broadcast %c0_i32_127 : i32 to vector<64x1xi32>
    %359 = arith.cmpi sge, %357, %358 : vector<64x1xi32>
    %c16_i32_128 = arith.constant 16 : i32
    %360 = vector.broadcast %c16_i32_128 : i32 to vector<64x1xi32>
    %361 = arith.addi %0, %360 : vector<64x1xi32>
    %c32_i32_129 = arith.constant 32 : i32
    %362 = vector.broadcast %c32_i32_129 : i32 to vector<64x1xi32>
    %363 = arith.cmpi slt, %361, %362 : vector<64x1xi32>
    %364 = arith.andi %359, %363 : vector<64x1xi1>
    %365 = arith.extui %364 : vector<64x1xi1> to vector<64x1xi32>
    %366 = arith.sitofp %365 : vector<64x1xi32> to vector<64x1xf32>
    %367 = vector.broadcast %366 : vector<64x1xf32> to vector<64x256xf32>
    %368 = arith.mulf %355, %367 : vector<64x256xf32>
    %369 = vector.extract_strided_slice %339 {offsets = [48, 0], sizes = [64, 256], strides = [1, 1]} : vector<112x256xf32> to vector<64x256xf32>
    %c24_i32 = arith.constant 24 : i32
    %370 = vector.broadcast %c24_i32 : i32 to vector<64x1xi32>
    %371 = arith.addi %0, %370 : vector<64x1xi32>
    %c0_i32_130 = arith.constant 0 : i32
    %372 = vector.broadcast %c0_i32_130 : i32 to vector<64x1xi32>
    %373 = arith.cmpi sge, %371, %372 : vector<64x1xi32>
    %c24_i32_131 = arith.constant 24 : i32
    %374 = vector.broadcast %c24_i32_131 : i32 to vector<64x1xi32>
    %375 = arith.addi %0, %374 : vector<64x1xi32>
    %c32_i32_132 = arith.constant 32 : i32
    %376 = vector.broadcast %c32_i32_132 : i32 to vector<64x1xi32>
    %377 = arith.cmpi slt, %375, %376 : vector<64x1xi32>
    %378 = arith.andi %373, %377 : vector<64x1xi1>
    %379 = arith.extui %378 : vector<64x1xi1> to vector<64x1xi32>
    %380 = arith.sitofp %379 : vector<64x1xi32> to vector<64x1xf32>
    %381 = vector.broadcast %380 : vector<64x1xf32> to vector<64x256xf32>
    %382 = arith.mulf %369, %381 : vector<64x256xf32>
    %383 = tpu.concatenate %340, %354, %368, %382 in 1 : vector<64x256xf32>, vector<64x256xf32>, vector<64x256xf32>, vector<64x256xf32> -> vector<64x1024xf32>
    %384 = arith.truncf %383 : vector<64x1024xf32> to vector<64x1024xbf16>
    %cst_133 = arith.constant dense<0.000000e+00> : vector<64x1xf32>
    %385 = tpu.matmul %384, %337, %cst_133 {dimension_numbers = #tpu.dot_dimension_numbers<[1], [0], [0], [1], [0, 0, 1, 1], [], []>} : vector<64x1024xbf16>, vector<1024x1xbf16>, vector<64x1xf32> -> vector<64x1xf32>
    %c0_134 = arith.constant 0 : index
    %c0_135 = arith.constant 0 : index
    %386 = vector.load %arg24[%c0_134, %c0_135] : memref<64x1xf32, #tpu.memory_space<vmem>>, vector<64x1xf32>
    tpu.vector_store %arg24[%c0_134, %c0_135], %385 {strides = array<i32>} : memref<64x1xf32, #tpu.memory_space<vmem>>, vector<64x1xf32>,
    return
  }
}

</mosaic_0001>

<llo_original>
// kernel: tpu_custom_call.1
$region0: #{tpu_custom_call.1}
  #allocation0 [shape = 'u32[]', space=smem, size = 0x4, offset = 0x4, fixed_abs, tag = 'smem constant byte address 0x4 - core index']
  #allocation1 [shape = 'u32[72,128]{1,0:T(1,128)}', space=vmem, size = 0x9000, scoped, tag = 'internal scratch']
  %s0 = inlined_call_operand.vmem [shape: bf16[64,21], index: 0, kind: input, shape index: {}]
  %s1 = inlined_call_operand.vmem [shape: s32[64,1], index: 1, kind: input, shape index: {}]
  %s2 = inlined_call_operand.vmem [shape: f32[64,1], index: 2, kind: input, shape index: {}]
  %s3 = inlined_call_operand.vmem [shape: f32[64,1], index: 3, kind: input, shape index: {}]
  %s4 = inlined_call_operand.vmem [shape: f32[64,1], index: 4, kind: input, shape index: {}]
  %s5 = inlined_call_operand.vmem [shape: bf16[21,96], index: 5, kind: input, shape index: {}]
  %s6 = inlined_call_operand.vmem [shape: f32[1,96], index: 6, kind: input, shape index: {}]
  %s7 = inlined_call_operand.vmem [shape: bf16[96,32], index: 7, kind: input, shape index: {}]
  %s8 = inlined_call_operand.vmem [shape: f32[1,32], index: 8, kind: input, shape index: {}]
  %s9 = inlined_call_operand.vmem [shape: f32[1,32], index: 9, kind: input, shape index: {}]
  %s10 = inlined_call_operand.vmem [shape: f32[1,32], index: 10, kind: input, shape index: {}]
  %s11 = inlined_call_operand.vmem [shape: bf16[160,64], index: 11, kind: input, shape index: {}]
  %s12 = inlined_call_operand.vmem [shape: f32[1,64], index: 12, kind: input, shape index: {}]
  %s13 = inlined_call_operand.vmem [shape: f32[1,64], index: 13, kind: input, shape index: {}]
  %s14 = inlined_call_operand.vmem [shape: f32[1,64], index: 14, kind: input, shape index: {}]
  %s15 = inlined_call_operand.hbm [shape: bf16[320,128], index: 15, kind: input, shape index: {}]
  %s16 = inlined_call_operand.vmem [shape: f32[1,128], index: 16, kind: input, shape index: {}]
  %s17 = inlined_call_operand.vmem [shape: f32[1,128], index: 17, kind: input, shape index: {}]
  %s18 = inlined_call_operand.vmem [shape: f32[1,128], index: 18, kind: input, shape index: {}]
  %s19 = inlined_call_operand.vmem [shape: bf16[640,256], index: 19, kind: input, shape index: {}]
  %s20 = inlined_call_operand.vmem [shape: f32[1,256], index: 20, kind: input, shape index: {}]
  %s21 = inlined_call_operand.vmem [shape: f32[1,256], index: 21, kind: input, shape index: {}]
  %s22 = inlined_call_operand.vmem [shape: f32[1,256], index: 22, kind: input, shape index: {}]
  %s23 = inlined_call_operand.vmem [shape: bf16[1024,1], index: 23, kind: input, shape index: {}]
  %s24 = inlined_call_operand.vmem [shape: f32[64,1], index: 24, kind: output, shape index: {}]
  %s25 = sld [smem:[#allocation0]]
  $region110: #{tpu_custom_call.1} parent=0
    _
  %s27 = ssub.s32 1, %s25
  %s28 = scalar_select 0, %s27, %s25
  $region1: #{tpu_custom_call.1} parent=0
    #allocation2 [shape = 'u8[81920]{0}', space=vmem, size = 0x14000, scoped, tag = 'input window, operand 15, single buffered']
    #allocation3 [shape = 's32[1]{0}', space=sflag, size = 0x4, scoped, tag = 'scoped memory for tpu_custom_call.1']
    %29 = vsyncpa [#allocation3], 0
    // Predicated region
    $region2: #{tpu_custom_call.1} parent=1 // pred_check
      _
    $region3: #{tpu_custom_call.1} parent=1 // pred_check_branch
      %31 = sbr.rel (0) target = $region5
    $region4: #{tpu_custom_call.1} parent=1 // pred_region
      _
    $region5: #{tpu_custom_call.1} parent=1 // pred_fallthru
      _
    // Predicated region
    $region6: #{tpu_custom_call.1} parent=1 // pred_check
      _
    $region7: #{tpu_custom_call.1} parent=1 // pred_check_branch
      %33 = sbr.rel (0) target = $region9
    $region8: #{tpu_custom_call.1} parent=1 // pred_region
      _
    $region9: #{tpu_custom_call.1} parent=1 // pred_fallthru
      _
    // Predicated region
    $region10: #{tpu_custom_call.1} parent=1 // pred_check
      _
    $region11: #{tpu_custom_call.1} parent=1 // pred_check_branch
      %35 = sbr.rel (0) target = $region13
    $region12: #{tpu_custom_call.1} parent=1 // pred_region
      _
    $region13: #{tpu_custom_call.1} parent=1 // pred_fallthru
      _
    // Predicated region
    $region14: #{tpu_custom_call.1} parent=1 // pred_check
      _
    $region15: #{tpu_custom_call.1} parent=1 // pred_check_branch
      %37 = sbr.rel (0) target = $region17
    $region16: #{tpu_custom_call.1} parent=1 // pred_region
      _
    $region17: #{tpu_custom_call.1} parent=1 // pred_fallthru
      _
    // Predicated region
    $region18: #{tpu_custom_call.1} parent=1 // pred_check
      _
    $region19: #{tpu_custom_call.1} parent=1 // pred_check_branch
      %39 = sbr.rel (0) target = $region21
    $region20: #{tpu_custom_call.1} parent=1 // pred_region
      _
    $region21: #{tpu_custom_call.1} parent=1 // pred_fallthru
      _
    // Predicated region
    $region22: #{tpu_custom_call.1} parent=1 // pred_check
      _
    $region23: #{tpu_custom_call.1} parent=1 // pred_check_branch
      %41 = sbr.rel (0) target = $region25
    $region24: #{tpu_custom_call.1} parent=1 // pred_region
      _
    $region25: #{tpu_custom_call.1} parent=1 // pred_fallthru
      _
    // Predicated region
    $region26: #{tpu_custom_call.1} parent=1 // pred_check
      _
    $region27: #{tpu_custom_call.1} parent=1 // pred_check_branch
      %43 = sbr.rel (0) target = $region29
    $region28: #{tpu_custom_call.1} parent=1 // pred_region
      _
    $region29: #{tpu_custom_call.1} parent=1 // pred_fallthru
      _
    // Predicated region
    $region30: #{tpu_custom_call.1} parent=1 // pred_check
      _
    $region31: #{tpu_custom_call.1} parent=1 // pred_check_branch
      %45 = sbr.rel (0) target = $region33
    $region32: #{tpu_custom_call.1} parent=1 // pred_region
      _
    $region33: #{tpu_custom_call.1} parent=1 // pred_fallthru
      _
    // Predicated region
    $region34: #{tpu_custom_call.1} parent=1 // pred_check
      _
    $region35: #{tpu_custom_call.1} parent=1 // pred_check_branch
      %47 = sbr.rel (0) target = $region37
    $region36: #{tpu_custom_call.1} parent=1 // pred_region
      _
    $region37: #{tpu_custom_call.1} parent=1 // pred_fallthru
      _
    // Predicated region
    $region38: #{tpu_custom_call.1} parent=1 // pred_check
      _
    $region39: #{tpu_custom_call.1} parent=1 // pred_check_branch
      %49 = sbr.rel (0) target = $region41
    $region40: #{tpu_custom_call.1} parent=1 // pred_region
      _
    $region41: #{tpu_custom_call.1} parent=1 // pred_fallthru
      _
    // Predicated region
    $region42: #{tpu_custom_call.1} parent=1 // pred_check
      _
    $region43: #{tpu_custom_call.1} parent=1 // pred_check_branch
      %51 = sbr.rel (0) target = $region45
    $region44: #{tpu_custom_call.1} parent=1 // pred_region
      _
    $region45: #{tpu_custom_call.1} parent=1 // pred_fallthru
      _
    // Predicated region
    $region46: #{tpu_custom_call.1} parent=1 // pred_check
      _
    $region47: #{tpu_custom_call.1} parent=1 // pred_check_branch
      %53 = sbr.rel (0) target = $region49
    $region48: #{tpu_custom_call.1} parent=1 // pred_region
      _
    $region49: #{tpu_custom_call.1} parent=1 // pred_fallthru
      _
    // Predicated region
    $region50: #{tpu_custom_call.1} parent=1 // pred_check
      _
    $region51: #{tpu_custom_call.1} parent=1 // pred_check_branch
      %55 = sbr.rel (0) target = $region53
    $region52: #{tpu_custom_call.1} parent=1 // pred_region
      _
    $region53: #{tpu_custom_call.1} parent=1 // pred_fallthru
      _
    // Predicated region
    $region54: #{tpu_custom_call.1} parent=1 // pred_check
      _
    $region55: #{tpu_custom_call.1} parent=1 // pred_check_branch
      %57 = sbr.rel (0) target = $region57
    $region56: #{tpu_custom_call.1} parent=1 // pred_region
      _
    $region57: #{tpu_custom_call.1} parent=1 // pred_fallthru
      _
    // Predicated region
    $region58: #{tpu_custom_call.1} parent=1 // pred_check
      _
    $region59: #{tpu_custom_call.1} parent=1 // pred_check_branch
      %59 = sbr.rel (0) target = $region61
    $region60: #{tpu_custom_call.1} parent=1 // pred_region
      _
    $region61: #{tpu_custom_call.1} parent=1 // pred_fallthru
      _
    // Predicated region
    $region62: #{tpu_custom_call.1} parent=1 // pred_check
      _
    $region63: #{tpu_custom_call.1} parent=1 // pred_check_branch
      %61 = sbr.rel (0) target = $region65
    $region64: #{tpu_custom_call.1} parent=1 // pred_region
      %63 = vsyncadd [#allocation3], 0
      %s64 = sshll.u32 %s15, 4
      %s65 = int_to_ptr.hbm [resolvable:$true] %s64
      %s66 = sshll.u32 [#allocation2], 4
      %s67 = int_to_ptr.vmem [resolvable:$true] %s66
      %72 = dma.hbm_to_vmem [thread:$0]  %s65, 2560, %s67, [#allocation3], 64, 64, 4
    $region65: #{tpu_custom_call.1} parent=1 // pred_fallthru
      _
    // Predicated region
    $region66: #{tpu_custom_call.1} parent=1 // pred_check
      _
    $region67: #{tpu_custom_call.1} parent=1 // pred_check_branch
      %74 = sbr.rel (0) target = $region69
    $region68: #{tpu_custom_call.1} parent=1 // pred_region
      _
    $region69: #{tpu_custom_call.1} parent=1 // pred_fallthru
      _
    // Predicated region
    $region70: #{tpu_custom_call.1} parent=1 // pred_check
      _
    $region71: #{tpu_custom_call.1} parent=1 // pred_check_branch
      %76 = sbr.rel (0) target = $region73
    $region72: #{tpu_custom_call.1} parent=1 // pred_region
      _
    $region73: #{tpu_custom_call.1} parent=1 // pred_fallthru
      _
    // Predicated region
    $region74: #{tpu_custom_call.1} parent=1 // pred_check
      _
    $region75: #{tpu_custom_call.1} parent=1 // pred_check_branch
      %78 = sbr.rel (0) target = $region77
    $region76: #{tpu_custom_call.1} parent=1 // pred_region
      _
    $region77: #{tpu_custom_call.1} parent=1 // pred_fallthru
      _
    // Predicated region
    $region78: #{tpu_custom_call.1} parent=1 // pred_check
      _
    $region79: #{tpu_custom_call.1} parent=1 // pred_check_branch
      %80 = sbr.rel (0) target = $region81
    $region80: #{tpu_custom_call.1} parent=1 // pred_region
      _
    $region81: #{tpu_custom_call.1} parent=1 // pred_fallthru
      _
    // Predicated region
    $region82: #{tpu_custom_call.1} parent=1 // pred_check
      _
    $region83: #{tpu_custom_call.1} parent=1 // pred_check_branch
      %82 = sbr.rel (0) target = $region85
    $region84: #{tpu_custom_call.1} parent=1 // pred_region
      _
    $region85: #{tpu_custom_call.1} parent=1 // pred_fallthru
      _
    // Predicated region
    $region86: #{tpu_custom_call.1} parent=1 // pred_check
      _
    $region87: #{tpu_custom_call.1} parent=1 // pred_check_branch
      %84 = sbr.rel (0) target = $region89
    $region88: #{tpu_custom_call.1} parent=1 // pred_region
      _
    $region89: #{tpu_custom_call.1} parent=1 // pred_fallthru
      _
    // Predicated region
    $region90: #{tpu_custom_call.1} parent=1 // pred_check
      _
    $region91: #{tpu_custom_call.1} parent=1 // pred_check_branch
      %86 = sbr.rel (0) target = $region93
    $region92: #{tpu_custom_call.1} parent=1 // pred_region
      _
    $region93: #{tpu_custom_call.1} parent=1 // pred_fallthru
      _
    // Predicated region
    $region94: #{tpu_custom_call.1} parent=1 // pred_check
      _
    $region95: #{tpu_custom_call.1} parent=1 // pred_check_branch
      %88 = sbr.rel (0) target = $region97
    $region96: #{tpu_custom_call.1} parent=1 // pred_region
      _
    $region97: #{tpu_custom_call.1} parent=1 // pred_fallthru
      _
    // Predicated region
    $region98: #{tpu_custom_call.1} parent=1 // pred_check
      _
    $region99: #{tpu_custom_call.1} parent=1 // pred_check_branch
      %90 = sbr.rel (0) target = $region101
    $region100: #{tpu_custom_call.1} parent=1 // pred_region
      %92 = dma.done [#allocation3], 2560
    $region101: #{tpu_custom_call.1} parent=1 // pred_fallthru
      _
    %v94 = vld [vmem:[%s1] sm:$0xff]
    %v95 = vld [vmem:[%s1 + $0x8] sm:$0xff]
    %v96 = vld [vmem:[%s1 + $0x10] sm:$0xff]
    %v97 = vld [vmem:[%s1 + $0x18] sm:$0xff]
    %v98 = vld [vmem:[%s1 + $0x20] sm:$0xff]
    %v99 = vld [vmem:[%s1 + $0x28] sm:$0xff]
    %v100 = vld [vmem:[%s1 + $0x30] sm:$0xff]
    %v101 = vld [vmem:[%s1 + $0x38] sm:$0xff]
    %v102 = vld [vmem:[%s0] sm:$0xf]
    %v103 = vld [vmem:[%s0 + $0x4] sm:$0xf]
    %v104 = vld [vmem:[%s0 + $0x8] sm:$0xf]
    %v105 = vld [vmem:[%s0 + $0xc] sm:$0xf]
    %v106 = vld [vmem:[%s0 + $0x10] sm:$0xf]
    %v107 = vld [vmem:[%s0 + $0x14] sm:$0xf]
    %v108 = vld [vmem:[%s0 + $0x18] sm:$0xf]
    %v109 = vld [vmem:[%s0 + $0x1c] sm:$0xf]
    %v110 = vld [vmem:[%s5] sm:$0xf]
    %v111 = vld [vmem:[%s5 + $0x4] sm:$0xf]
    %v112 = vld [vmem:[%s5 + $0x8] sm:$0x7]
    %v113 = vld [vmem:[%s6] sm:$0x1]
    %v115 = vperm.slane %v113, 0
    %v125 = vunpack.c.l.b16 %v102
    %v126 = vunpack.c.l.b16 %v103
    %v127 = vunpack.c.l.b16 %v104
    %v128 = vunpack.c.l.b16 %v105
    %v129 = vunpack.c.l.b16 %v106
    %v130 = vunpack.c.l.b16 %v107
    %v131 = vunpack.c.l.b16 %v108
    %v132 = vunpack.c.l.b16 %v109
    %v133 = vpack.c.b16 %v126, %v125
    %v134 = vpack.c.b16 %v128, %v127
    %v135 = vpack.c.b16 %v130, %v129
    %v136 = vpack.c.b16 %v132, %v131
    %v140 = vunpack.c.l.b16 %v110
    %v141 = vunpack.c.l.b16 %v111
    %v142 = vunpack.c.l.b16 %v112
    %v143 = vpack.c.b16 %v141, %v140
    %v144 = vpack.c.b16 %v142, %v142
    %vm146 = vcmask 171008
    %v148 = vsel %vm146, %v133, 0
    %v151 = vsel %vm146, %v134, 0
    %v154 = vsel %vm146, %v135, 0
    %v157 = vsel %vm146, %v136, 0
    %vm159 = vcmask 1041408
    %vm160 = vcmask 1042432
    %v161 = vsel %vm159, 4294967295, 65535
    %v162 = vsel %vm160, %v161, 0
    %v164 = vand.u32 %v144, %v162
    %166 = vmatpush.bf16.msra.mxu0 0
    %167 = vmatpush.bf16.msra.mxu0 0
    %168 = vmatpush.bf16.msra.mxu0 0
    %169 = vmatpush.bf16.msra.mxu0 0
    %170 = vmatpush.bf16.msra.mxu0 0
    %171 = vmatpush.bf16.msra.mxu0 0
    %172 = vmatpush.bf16.msra.mxu0 %v164
    %173 = vmatpush.bf16.msra.mxu0 %v143
    %174 = vmatmul.bf16.gmra.mxu0 %v148
    %v175 = vpop.f32.mrf.mxu0
    %v176 = vadd.f32 %v115, %v175
    %v177 = vpop.f32.mrf.mxu0
    %v178 = vadd.f32 %v115, %v177
    %179 = vmatmul.bf16.gmra.mxu0 %v151
    %v180 = vpop.f32.mrf.mxu0
    %v181 = vadd.f32 %v115, %v180
    %v182 = vpop.f32.mrf.mxu0
    %v183 = vadd.f32 %v115, %v182
    %184 = vmatmul.bf16.gmra.mxu0 %v154
    %v185 = vpop.f32.mrf.mxu0
    %v186 = vadd.f32 %v115, %v185
    %v187 = vpop.f32.mrf.mxu0
    %v188 = vadd.f32 %v115, %v187
    %189 = vmatmul.bf16.gmra.mxu0 %v157
    %v190 = vpop.f32.mrf.mxu0
    %v191 = vadd.f32 %v115, %v190
    %v192 = vpop.f32.mrf.mxu0
    %v193 = vadd.f32 %v115, %v192
    %194 = vdwg.mxu0
    %vm195 = vcmp.gt.f32.partialorder %v176, 0.0
    %vm196 = vcmp.gt.f32.partialorder %v178, 0.0
    %vm197 = vcmp.gt.f32.partialorder %v181, 0.0
    %vm198 = vcmp.gt.f32.partialorder %v183, 0.0
    %vm199 = vcmp.gt.f32.partialorder %v186, 0.0
    %vm200 = vcmp.gt.f32.partialorder %v188, 0.0
    %vm201 = vcmp.gt.f32.partialorder %v191, 0.0
    %vm202 = vcmp.gt.f32.partialorder %v193, 0.0
    %v203 = vmul.f32 %v176, 0.2
    %v204 = vmul.f32 %v178, 0.2
    %v205 = vmul.f32 %v181, 0.2
    %v206 = vmul.f32 %v183, 0.2
    %v207 = vmul.f32 %v186, 0.2
    %v208 = vmul.f32 %v188, 0.2
    %v209 = vmul.f32 %v191, 0.2
    %v210 = vmul.f32 %v193, 0.2
    %v211 = vsel %vm195, %v176, %v203
    %v212 = vsel %vm196, %v178, %v204
    %v213 = vsel %vm197, %v181, %v205
    %v214 = vsel %vm198, %v183, %v206
    %v215 = vsel %vm199, %v186, %v207
    %v216 = vsel %vm200, %v188, %v208
    %v217 = vsel %vm201, %v191, %v209
    %v218 = vsel %vm202, %v193, %v210
    %v219 = vpack.c.bf16 %v212, %v211
    %v220 = vpack.c.bf16 %v214, %v213
    %v221 = vpack.c.bf16 %v216, %v215
    %v222 = vpack.c.bf16 %v218, %v217
    %v223 = vld [vmem:[%s7] sm:$0xf]
    %v224 = vld [vmem:[%s7 + $0x4] sm:$0xf]
    %v225 = vld [vmem:[%s7 + $0x8] sm:$0xf]
    %v226 = vld [vmem:[%s7 + $0xc] sm:$0xf]
    %v227 = vld [vmem:[%s7 + $0x10] sm:$0xf]
    %v228 = vld [vmem:[%s7 + $0x14] sm:$0xf]
    %v229 = vld [vmem:[%s7 + $0x18] sm:$0xf]
    %v230 = vld [vmem:[%s7 + $0x1c] sm:$0xf]
    %v231 = vld [vmem:[%s7 + $0x20] sm:$0xf]
    %v232 = vld [vmem:[%s7 + $0x24] sm:$0xf]
    %v233 = vld [vmem:[%s7 + $0x28] sm:$0xf]
    %v234 = vld [vmem:[%s7 + $0x2c] sm:$0xf]
    %v235 = vld [vmem:[%s8] sm:$0x1]
    %v237 = vperm.slane %v235, 0
    %v251 = vunpack.c.l.b16 %v223
    %v252 = vunpack.c.l.b16 %v224
    %v253 = vunpack.c.l.b16 %v225
    %v254 = vunpack.c.l.b16 %v226
    %v255 = vunpack.c.l.b16 %v227
    %v256 = vunpack.c.l.b16 %v228
    %v257 = vunpack.c.l.b16 %v229
    %v258 = vunpack.c.l.b16 %v230
    %v259 = vunpack.c.l.b16 %v231
    %v260 = vunpack.c.l.b16 %v232
    %v261 = vunpack.c.l.b16 %v233
    %v262 = vunpack.c.l.b16 %v234
    %v263 = vpack.c.b16 %v252, %v251
    %v264 = vpack.c.b16 %v254, %v253
    %v265 = vpack.c.b16 %v256, %v255
    %v266 = vpack.c.b16 %v258, %v257
    %v267 = vpack.c.b16 %v260, %v259
    %v268 = vpack.c.b16 %v262, %v261
    %vm275 = vcmask 785408
    %v277 = vsel %vm275, %v219, 0
    %v280 = vsel %vm275, %v220, 0
    %v283 = vsel %vm275, %v221, 0
    %v286 = vsel %vm275, %v222, 0
    %288 = vmatpush.bf16.msra.mxu0 0
    %289 = vmatpush.bf16.msra.mxu0 0
    %290 = vmatpush.bf16.msra.mxu0 %v268
    %291 = vmatpush.bf16.msra.mxu0 %v267
    %292 = vmatpush.bf16.msra.mxu0 %v266
    %293 = vmatpush.bf16.msra.mxu0 %v265
    %294 = vmatpush.bf16.msra.mxu0 %v264
    %295 = vmatpush.bf16.msra.mxu0 %v263
    %296 = vmatmul.bf16.gmra.mxu0 %v277
    %v297 = vpop.f32.mrf.mxu0
    %v298 = vadd.f32 %v237, %v297
    %v299 = vpop.f32.mrf.mxu0
    %v300 = vadd.f32 %v237, %v299
    %301 = vmatmul.bf16.gmra.mxu0 %v280
    %v302 = vpop.f32.mrf.mxu0
    %v303 = vadd.f32 %v237, %v302
    %v304 = vpop.f32.mrf.mxu0
    %v305 = vadd.f32 %v237, %v304
    %306 = vmatmul.bf16.gmra.mxu0 %v283
    %v307 = vpop.f32.mrf.mxu0
    %v308 = vadd.f32 %v237, %v307
    %v309 = vpop.f32.mrf.mxu0
    %v310 = vadd.f32 %v237, %v309
    %311 = vmatmul.bf16.gmra.mxu0 %v286
    %v312 = vpop.f32.mrf.mxu0
    %v313 = vadd.f32 %v237, %v312
    %v314 = vpop.f32.mrf.mxu0
    %v315 = vadd.f32 %v237, %v314
    %316 = vdwg.mxu0
    %v317 = vld [vmem:[%s9] sm:$0x1]
    %v318 = vld [vmem:[%s10] sm:$0x1]
    %vm319 = vcmask 261120
    %v320 = vsel %vm319, %v298, 0.0
    %v321 = vsel %vm319, %v300, 0.0
    %v322 = vadd.f32 %v320, %v321
    %v323 = vsel %vm319, %v303, 0.0
    %v324 = vadd.f32 %v322, %v323
    %v325 = vsel %vm319, %v305, 0.0
    %v326 = vadd.f32 %v324, %v325
    %v327 = vsel %vm319, %v308, 0.0
    %v328 = vadd.f32 %v326, %v327
    %v329 = vsel %vm319, %v310, 0.0
    %v330 = vadd.f32 %v328, %v329
    %v331 = vsel %vm319, %v313, 0.0
    %v332 = vadd.f32 %v330, %v331
    %v333 = vsel %vm319, %v315, 0.0
    %v334 = vadd.f32 %v332, %v333
    %v335 = vrot.slane %v334, 4
    %v336 = vadd.f32 %v334, %v335
    %v337 = vrot.slane %v336, 2
    %v338 = vadd.f32 %v336, %v337
    %v339 = vrot.slane %v338, 1
    %v340 = vadd.f32 %v338, %v339
    %v341 = vmul.f32 %v340, 0.015625
    %v342 = vmul.f32 %v298, %v298
    %v343 = vmul.f32 %v300, %v300
    %v344 = vmul.f32 %v303, %v303
    %v345 = vmul.f32 %v305, %v305
    %v346 = vmul.f32 %v308, %v308
    %v347 = vmul.f32 %v310, %v310
    %v348 = vmul.f32 %v313, %v313
    %v349 = vmul.f32 %v315, %v315
    %v350 = vsel %vm319, %v342, 0.0
    %v351 = vsel %vm319, %v343, 0.0
    %v352 = vadd.f32 %v350, %v351
    %v353 = vsel %vm319, %v344, 0.0
    %v354 = vadd.f32 %v352, %v353
    %v355 = vsel %vm319, %v345, 0.0
    %v356 = vadd.f32 %v354, %v355
    %v357 = vsel %vm319, %v346, 0.0
    %v358 = vadd.f32 %v356, %v357
    %v359 = vsel %vm319, %v347, 0.0
    %v360 = vadd.f32 %v358, %v359
    %v361 = vsel %vm319, %v348, 0.0
    %v362 = vadd.f32 %v360, %v361
    %v363 = vsel %vm319, %v349, 0.0
    %v364 = vadd.f32 %v362, %v363
    %v365 = vrot.slane %v364, 4
    %v366 = vadd.f32 %v364, %v365
    %v367 = vrot.slane %v366, 2
    %v368 = vadd.f32 %v366, %v367
    %v369 = vrot.slane %v368, 1
    %v370 = vadd.f32 %v368, %v369
    %v371 = vmul.f32 %v370, 0.015625
    %v372 = vmul.f32 %v341, %v341
    %v373 = vsub.f32 %v371, %v372
    %v374 = vadd.f32 %v373, 1e-05
    %v375 = vrsqrt.pop %v374
    %v376 = vmul.f32 %v375, %v374
    %v377 = vmul.f32 %v376, %v375
    %v378 = vmul.f32 0.5, %v377
    %v379 = vsub.f32 1.5, %v378
    %v380 = vmul.f32 %v375, %v379
    %vm381 = vweird.f32 %v374
    %vm382 = vweird.f32 %v375
    %vm383 = vmor %vm381, %vm382
    %v384 = vsel %vm383, %v375, %v380
    %v385 = vmul.f32 %v317, %v384
    %v386 = vsub.f32 %v298, %v341
    %v387 = vsub.f32 %v300, %v341
    %v388 = vsub.f32 %v303, %v341
    %v389 = vsub.f32 %v305, %v341
    %v390 = vsub.f32 %v308, %v341
    %v391 = vsub.f32 %v310, %v341
    %v392 = vsub.f32 %v313, %v341
    %v393 = vsub.f32 %v315, %v341
    %v395 = vperm.slane %v385, 0
    %v397 = vmul.f32 %v386, %v395
    %v398 = vmul.f32 %v387, %v395
    %v399 = vmul.f32 %v388, %v395
    %v400 = vmul.f32 %v389, %v395
    %v401 = vmul.f32 %v390, %v395
    %v402 = vmul.f32 %v391, %v395
    %v403 = vmul.f32 %v392, %v395
    %v404 = vmul.f32 %v393, %v395
    %v406 = vperm.slane %v318, 0
    %v408 = vadd.f32 %v397, %v406
    %v409 = vadd.f32 %v398, %v406
    %v410 = vadd.f32 %v399, %v406
    %v411 = vadd.f32 %v400, %v406
    %v412 = vadd.f32 %v401, %v406
    %v413 = vadd.f32 %v402, %v406
    %v414 = vadd.f32 %v403, %v406
    %v415 = vadd.f32 %v404, %v406
    %vm416 = vcmp.gt.f32.partialorder %v408, 0.0
    %vm417 = vcmp.gt.f32.partialorder %v409, 0.0
    %vm418 = vcmp.gt.f32.partialorder %v410, 0.0
    %vm419 = vcmp.gt.f32.partialorder %v411, 0.0
    %vm420 = vcmp.gt.f32.partialorder %v412, 0.0
    %vm421 = vcmp.gt.f32.partialorder %v413, 0.0
    %vm422 = vcmp.gt.f32.partialorder %v414, 0.0
    %vm423 = vcmp.gt.f32.partialorder %v415, 0.0
    %v424 = vmul.f32 %v408, 0.2
    %v425 = vmul.f32 %v409, 0.2
    %v426 = vmul.f32 %v410, 0.2
    %v427 = vmul.f32 %v411, 0.2
    %v428 = vmul.f32 %v412, 0.2
    %v429 = vmul.f32 %v413, 0.2
    %v430 = vmul.f32 %v414, 0.2
    %v431 = vmul.f32 %v415, 0.2
    %v432 = vsel %vm416, %v408, %v424
    %v433 = vsel %vm417, %v409, %v425
    %v434 = vsel %vm418, %v410, %v426
    %v435 = vsel %vm419, %v411, %v427
    %v436 = vsel %vm420, %v412, %v428
    %v437 = vsel %vm421, %v413, %v429
    %v438 = vsel %vm422, %v414, %v430
    %v439 = vsel %vm423, %v415, %v431
    %v440 = vld [vmem:[%s11] sm:$0xf]
    %v441 = vld [vmem:[%s11 + $0x4] sm:$0xf]
    %v442 = vld [vmem:[%s11 + $0x8] sm:$0xf]
    %v443 = vld [vmem:[%s11 + $0xc] sm:$0xf]
    %v444 = vld [vmem:[%s11 + $0x10] sm:$0xf]
    %v445 = vld [vmem:[%s11 + $0x14] sm:$0xf]
    %v446 = vld [vmem:[%s11 + $0x18] sm:$0xf]
    %v447 = vld [vmem:[%s11 + $0x1c] sm:$0xf]
    %v448 = vld [vmem:[%s11 + $0x20] sm:$0xf]
    %v449 = vld [vmem:[%s11 + $0x24] sm:$0xf]
    %v450 = vld [vmem:[%s11 + $0x28] sm:$0xf]
    %v451 = vld [vmem:[%s11 + $0x2c] sm:$0xf]
    %v452 = vld [vmem:[%s11 + $0x30] sm:$0xf]
    %v453 = vld [vmem:[%s11 + $0x34] sm:$0xf]
    %v454 = vld [vmem:[%s11 + $0x38] sm:$0xf]
    %v455 = vld [vmem:[%s11 + $0x3c] sm:$0xf]
    %v456 = vld [vmem:[%s11 + $0x40] sm:$0xf]
    %v457 = vld [vmem:[%s11 + $0x44] sm:$0xf]
    %v458 = vld [vmem:[%s11 + $0x48] sm:$0xf]
    %v459 = vld [vmem:[%s11 + $0x4c] sm:$0xf]
    %v460 = vld [vmem:[%s12] sm:$0x1]
    %v469 = vrot.slane %v432, 6
    %v470 = vrot.slane %v433, 6
    %v471 = vsel %vm159, %v469, %v470
    %v472 = vrot.slane %v434, 6
    %v473 = vsel %vm159, %v470, %v472
    %v474 = vrot.slane %v435, 6
    %v475 = vsel %vm159, %v472, %v474
    %v476 = vrot.slane %v436, 6
    %v477 = vsel %vm159, %v474, %v476
    %v478 = vrot.slane %v437, 6
    %v479 = vsel %vm159, %v476, %v478
    %v480 = vrot.slane %v438, 6
    %v481 = vsel %vm159, %v478, %v480
    %v482 = vrot.slane %v439, 6
    %v483 = vsel %vm159, %v480, %v482
    %v493 = vsel %vm159, 0.0, %v469
    %v494 = vsel %vm159, %v482, 0.0
    %v495 = vadd.s32 %v94, 4294967294
    %v496 = vadd.s32 %v95, 4294967294
    %v497 = vadd.s32 %v96, 4294967294
    %v498 = vadd.s32 %v97, 4294967294
    %v499 = vadd.s32 %v98, 4294967294
    %v500 = vadd.s32 %v99, 4294967294
    %v501 = vadd.s32 %v100, 4294967294
    %v502 = vadd.s32 %v101, 4294967294
    %vm503 = vcmp.ge.s32.totalorder %v495, 0
    %vm504 = vcmp.ge.s32.totalorder %v496, 0
    %vm505 = vcmp.ge.s32.totalorder %v497, 0
    %vm506 = vcmp.ge.s32.totalorder %v498, 0
    %vm507 = vcmp.ge.s32.totalorder %v499, 0
    %vm508 = vcmp.ge.s32.totalorder %v500, 0
    %vm509 = vcmp.ge.s32.totalorder %v501, 0
    %vm510 = vcmp.ge.s32.totalorder %v502, 0
    %vm511 = vcmp.lt.s32.totalorder %v495, 32
    %vm512 = vcmp.lt.s32.totalorder %v496, 32
    %vm513 = vcmp.lt.s32.totalorder %v497, 32
    %vm514 = vcmp.lt.s32.totalorder %v498, 32
    %vm515 = vcmp.lt.s32.totalorder %v499, 32
    %vm516 = vcmp.lt.s32.totalorder %v500, 32
    %vm517 = vcmp.lt.s32.totalorder %v501, 32
    %vm518 = vcmp.lt.s32.totalorder %v502, 32
    %vm519 = vmand %vm503, %vm511
    %vm520 = vmand %vm504, %vm512
    %vm521 = vmand %vm505, %vm513
    %vm522 = vmand %vm506, %vm514
    %vm523 = vmand %vm507, %vm515
    %vm524 = vmand %vm508, %vm516
    %vm525 = vmand %vm509, %vm517
    %vm526 = vmand %vm510, %vm518
    %v527 = vsel %vm519, 1, 0
    %v528 = vsel %vm520, 1, 0
    %v529 = vsel %vm521, 1, 0
    %v530 = vsel %vm522, 1, 0
    %v531 = vsel %vm523, 1, 0
    %v532 = vsel %vm524, 1, 0
    %v533 = vsel %vm525, 1, 0
    %v534 = vsel %vm526, 1, 0
    %v535 = vcvt.s32.f32 %v527
    %v536 = vcvt.s32.f32 %v528
    %v537 = vcvt.s32.f32 %v529
    %v538 = vcvt.s32.f32 %v530
    %v539 = vcvt.s32.f32 %v531
    %v540 = vcvt.s32.f32 %v532
    %v541 = vcvt.s32.f32 %v533
    %v542 = vcvt.s32.f32 %v534
    %544 = vset.pattern.permute.xlu0 0
    %545 = vperm.xlu0 %544, %v535
    %v546 = vpop.permute.xlu0 %545
    %549 = vset.pattern.permute.xlu0 0
    %550 = vperm.xlu0 %549, %v536
    %v551 = vpop.permute.xlu0 %550
    %554 = vset.pattern.permute.xlu0 0
    %555 = vperm.xlu0 %554, %v537
    %v556 = vpop.permute.xlu0 %555
    %559 = vset.pattern.permute.xlu0 0
    %560 = vperm.xlu0 %559, %v538
    %v561 = vpop.permute.xlu0 %560
    %564 = vset.pattern.permute.xlu0 0
    %565 = vperm.xlu0 %564, %v539
    %v566 = vpop.permute.xlu0 %565
    %569 = vset.pattern.permute.xlu0 0
    %570 = vperm.xlu0 %569, %v540
    %v571 = vpop.permute.xlu0 %570
    %574 = vset.pattern.permute.xlu0 0
    %575 = vperm.xlu0 %574, %v541
    %v576 = vpop.permute.xlu0 %575
    %579 = vset.pattern.permute.xlu0 0
    %580 = vperm.xlu0 %579, %v542
    %v581 = vpop.permute.xlu0 %580
    %v583 = vmul.f32 %v493, %v546
    %v584 = vmul.f32 %v471, %v551
    %v585 = vmul.f32 %v473, %v556
    %v586 = vmul.f32 %v475, %v561
    %v587 = vmul.f32 %v477, %v566
    %v588 = vmul.f32 %v479, %v571
    %v589 = vmul.f32 %v481, %v576
    %v590 = vmul.f32 %v483, %v581
    %v591 = vadd.s32 %v94, 4294967295
    %v592 = vadd.s32 %v95, 4294967295
    %v593 = vadd.s32 %v96, 4294967295
    %v594 = vadd.s32 %v97, 4294967295
    %v595 = vadd.s32 %v98, 4294967295
    %v596 = vadd.s32 %v99, 4294967295
    %v597 = vadd.s32 %v100, 4294967295
    %v598 = vadd.s32 %v101, 4294967295
    %vm599 = vcmp.ge.s32.totalorder %v591, 0
    %vm600 = vcmp.ge.s32.totalorder %v592, 0
    %vm601 = vcmp.ge.s32.totalorder %v593, 0
    %vm602 = vcmp.ge.s32.totalorder %v594, 0
    %vm603 = vcmp.ge.s32.totalorder %v595, 0
    %vm604 = vcmp.ge.s32.totalorder %v596, 0
    %vm605 = vcmp.ge.s32.totalorder %v597, 0
    %vm606 = vcmp.ge.s32.totalorder %v598, 0
    %vm607 = vcmp.lt.s32.totalorder %v591, 32
    %vm608 = vcmp.lt.s32.totalorder %v592, 32
    %vm609 = vcmp.lt.s32.totalorder %v593, 32
    %vm610 = vcmp.lt.s32.totalorder %v594, 32
    %vm611 = vcmp.lt.s32.totalorder %v595, 32
    %vm612 = vcmp.lt.s32.totalorder %v596, 32
    %vm613 = vcmp.lt.s32.totalorder %v597, 32
    %vm614 = vcmp.lt.s32.totalorder %v598, 32
    %vm615 = vmand %vm599, %vm607
    %vm616 = vmand %vm600, %vm608
    %vm617 = vmand %vm601, %vm609
    %vm618 = vmand %vm602, %vm610
    %vm619 = vmand %vm603, %vm611
    %vm620 = vmand %vm604, %vm612
    %vm621 = vmand %vm605, %vm613
    %vm622 = vmand %vm606, %vm614
    %v623 = vsel %vm615, 1, 0
    %v624 = vsel %vm616, 1, 0
    %v625 = vsel %vm617, 1, 0
    %v626 = vsel %vm618, 1, 0
    %v627 = vsel %vm619, 1, 0
    %v628 = vsel %vm620, 1, 0
    %v629 = vsel %vm621, 1, 0
    %v630 = vsel %vm622, 1, 0
    %v631 = vcvt.s32.f32 %v623
    %v632 = vcvt.s32.f32 %v624
    %v633 = vcvt.s32.f32 %v625
    %v634 = vcvt.s32.f32 %v626
    %v635 = vcvt.s32.f32 %v627
    %v636 = vcvt.s32.f32 %v628
    %v637 = vcvt.s32.f32 %v629
    %v638 = vcvt.s32.f32 %v630
    %640 = vset.pattern.permute.xlu0 0
    %641 = vperm.xlu0 %640, %v631
    %v642 = vpop.permute.xlu0 %641
    %644 = vset.pattern.permute.xlu0 0
    %645 = vperm.xlu0 %644, %v632
    %v646 = vpop.permute.xlu0 %645
    %648 = vset.pattern.permute.xlu0 0
    %649 = vperm.xlu0 %648, %v633
    %v650 = vpop.permute.xlu0 %649
    %652 = vset.pattern.permute.xlu0 0
    %653 = vperm.xlu0 %652, %v634
    %v654 = vpop.permute.xlu0 %653
    %656 = vset.pattern.permute.xlu0 0
    %657 = vperm.xlu0 %656, %v635
    %v658 = vpop.permute.xlu0 %657
    %660 = vset.pattern.permute.xlu0 0
    %661 = vperm.xlu0 %660, %v636
    %v662 = vpop.permute.xlu0 %661
    %664 = vset.pattern.permute.xlu0 0
    %665 = vperm.xlu0 %664, %v637
    %v666 = vpop.permute.xlu0 %665
    %668 = vset.pattern.permute.xlu0 0
    %669 = vperm.xlu0 %668, %v638
    %v670 = vpop.permute.xlu0 %669
    %vm671 = vcmask 1040384
    %v672 = vrot.slane %v642, 7
    %v673 = vrot.slane %v646, 7
    %v674 = vsel %vm671, %v672, %v673
    %v675 = vrot.slane %v650, 7
    %v676 = vsel %vm671, %v673, %v675
    %v677 = vrot.slane %v654, 7
    %v678 = vsel %vm671, %v675, %v677
    %v679 = vrot.slane %v658, 7
    %v680 = vsel %vm671, %v677, %v679
    %v681 = vrot.slane %v662, 7
    %v682 = vsel %vm671, %v679, %v681
    %v683 = vrot.slane %v666, 7
    %v684 = vsel %vm671, %v681, %v683
    %v685 = vrot.slane %v670, 7
    %v686 = vsel %vm671, %v683, %v685
    %v696 = vmul.f32 %v493, %v672
    %v697 = vmul.f32 %v471, %v674
    %v698 = vmul.f32 %v473, %v676
    %v699 = vmul.f32 %v475, %v678
    %v700 = vmul.f32 %v477, %v680
    %v701 = vmul.f32 %v479, %v682
    %v702 = vmul.f32 %v481, %v684
    %v703 = vmul.f32 %v483, %v686
    %v704 = vmul.f32 %v494, %v685
    %v705 = vadd.s32 %v94, 1
    %v706 = vadd.s32 %v95, 1
    %v707 = vadd.s32 %v96, 1
    %v708 = vadd.s32 %v97, 1
    %v709 = vadd.s32 %v98, 1
    %v710 = vadd.s32 %v99, 1
    %v711 = vadd.s32 %v100, 1
    %v712 = vadd.s32 %v101, 1
    %vm713 = vcmp.ge.s32.totalorder %v705, 0
    %vm714 = vcmp.ge.s32.totalorder %v706, 0
    %vm715 = vcmp.ge.s32.totalorder %v707, 0
    %vm716 = vcmp.ge.s32.totalorder %v708, 0
    %vm717 = vcmp.ge.s32.totalorder %v709, 0
    %vm718 = vcmp.ge.s32.totalorder %v710, 0
    %vm719 = vcmp.ge.s32.totalorder %v711, 0
    %vm720 = vcmp.ge.s32.totalorder %v712, 0
    %vm721 = vcmp.lt.s32.totalorder %v705, 32
    %vm722 = vcmp.lt.s32.totalorder %v706, 32
    %vm723 = vcmp.lt.s32.totalorder %v707, 32
    %vm724 = vcmp.lt.s32.totalorder %v708, 32
    %vm725 = vcmp.lt.s32.totalorder %v709, 32
    %vm726 = vcmp.lt.s32.totalorder %v710, 32
    %vm727 = vcmp.lt.s32.totalorder %v711, 32
    %vm728 = vcmp.lt.s32.totalorder %v712, 32
    %vm729 = vmand %vm713, %vm721
    %vm730 = vmand %vm714, %vm722
    %vm731 = vmand %vm715, %vm723
    %vm732 = vmand %vm716, %vm724
    %vm733 = vmand %vm717, %vm725
    %vm734 = vmand %vm718, %vm726
    %vm735 = vmand %vm719, %vm727
    %vm736 = vmand %vm720, %vm728
    %v737 = vsel %vm729, 1, 0
    %v738 = vsel %vm730, 1, 0
    %v739 = vsel %vm731, 1, 0
    %v740 = vsel %vm732, 1, 0
    %v741 = vsel %vm733, 1, 0
    %v742 = vsel %vm734, 1, 0
    %v743 = vsel %vm735, 1, 0
    %v744 = vsel %vm736, 1, 0
    %v745 = vcvt.s32.f32 %v737
    %v746 = vcvt.s32.f32 %v738
    %v747 = vcvt.s32.f32 %v739
    %v748 = vcvt.s32.f32 %v740
    %v749 = vcvt.s32.f32 %v741
    %v750 = vcvt.s32.f32 %v742
    %v751 = vcvt.s32.f32 %v743
    %v752 = vcvt.s32.f32 %v744
    %754 = vset.pattern.permute.xlu0 0
    %755 = vperm.xlu0 %754, %v745
    %v756 = vpop.permute.xlu0 %755
    %758 = vset.pattern.permute.xlu0 0
    %759 = vperm.xlu0 %758, %v746
    %v760 = vpop.permute.xlu0 %759
    %762 = vset.pattern.permute.xlu0 0
    %763 = vperm.xlu0 %762, %v747
    %v764 = vpop.permute.xlu0 %763
    %766 = vset.pattern.permute.xlu0 0
    %767 = vperm.xlu0 %766, %v748
    %v768 = vpop.permute.xlu0 %767
    %770 = vset.pattern.permute.xlu0 0
    %771 = vperm.xlu0 %770, %v749
    %v772 = vpop.permute.xlu0 %771
    %774 = vset.pattern.permute.xlu0 0
    %775 = vperm.xlu0 %774, %v750
    %v776 = vpop.permute.xlu0 %775
    %778 = vset.pattern.permute.xlu0 0
    %779 = vperm.xlu0 %778, %v751
    %v780 = vpop.permute.xlu0 %779
    %782 = vset.pattern.permute.xlu0 0
    %783 = vperm.xlu0 %782, %v752
    %v784 = vpop.permute.xlu0 %783
    %v785 = vrot.slane %v756, 5
    %v786 = vrot.slane %v760, 5
    %v787 = vsel %vm160, %v785, %v786
    %v788 = vrot.slane %v764, 5
    %v789 = vsel %vm160, %v786, %v788
    %v790 = vrot.slane %v768, 5
    %v791 = vsel %vm160, %v788, %v790
    %v792 = vrot.slane %v772, 5
    %v793 = vsel %vm160, %v790, %v792
    %v794 = vrot.slane %v776, 5
    %v795 = vsel %vm160, %v792, %v794
    %v796 = vrot.slane %v780, 5
    %v797 = vsel %vm160, %v794, %v796
    %v798 = vrot.slane %v784, 5
    %v799 = vsel %vm160, %v796, %v798
    %v809 = vmul.f32 %v493, %v785
    %v810 = vmul.f32 %v471, %v787
    %v811 = vmul.f32 %v473, %v789
    %v812 = vmul.f32 %v475, %v791
    %v813 = vmul.f32 %v477, %v793
    %v814 = vmul.f32 %v479, %v795
    %v815 = vmul.f32 %v481, %v797
    %v816 = vmul.f32 %v483, %v799
    %v817 = vmul.f32 %v494, %v798
    %v818 = vadd.s32 %v94, 2
    %v819 = vadd.s32 %v95, 2
    %v820 = vadd.s32 %v96, 2
    %v821 = vadd.s32 %v97, 2
    %v822 = vadd.s32 %v98, 2
    %v823 = vadd.s32 %v99, 2
    %v824 = vadd.s32 %v100, 2
    %v825 = vadd.s32 %v101, 2
    %vm826 = vcmp.ge.s32.totalorder %v818, 0
    %vm827 = vcmp.ge.s32.totalorder %v819, 0
    %vm828 = vcmp.ge.s32.totalorder %v820, 0
    %vm829 = vcmp.ge.s32.totalorder %v821, 0
    %vm830 = vcmp.ge.s32.totalorder %v822, 0
    %vm831 = vcmp.ge.s32.totalorder %v823, 0
    %vm832 = vcmp.ge.s32.totalorder %v824, 0
    %vm833 = vcmp.ge.s32.totalorder %v825, 0
    %vm834 = vcmp.lt.s32.totalorder %v818, 32
    %vm835 = vcmp.lt.s32.totalorder %v819, 32
    %vm836 = vcmp.lt.s32.totalorder %v820, 32
    %vm837 = vcmp.lt.s32.totalorder %v821, 32
    %vm838 = vcmp.lt.s32.totalorder %v822, 32
    %vm839 = vcmp.lt.s32.totalorder %v823, 32
    %vm840 = vcmp.lt.s32.totalorder %v824, 32
    %vm841 = vcmp.lt.s32.totalorder %v825, 32
    %vm842 = vmand %vm826, %vm834
    %vm843 = vmand %vm827, %vm835
    %vm844 = vmand %vm828, %vm836
    %vm845 = vmand %vm829, %vm837
    %vm846 = vmand %vm830, %vm838
    %vm847 = vmand %vm831, %vm839
    %vm848 = vmand %vm832, %vm840
    %vm849 = vmand %vm833, %vm841
    %v850 = vsel %vm842, 1, 0
    %v851 = vsel %vm843, 1, 0
    %v852 = vsel %vm844, 1, 0
    %v853 = vsel %vm845, 1, 0
    %v854 = vsel %vm846, 1, 0
    %v855 = vsel %vm847, 1, 0
    %v856 = vsel %vm848, 1, 0
    %v857 = vsel %vm849, 1, 0
    %v858 = vcvt.s32.f32 %v850
    %v859 = vcvt.s32.f32 %v851
    %v860 = vcvt.s32.f32 %v852
    %v861 = vcvt.s32.f32 %v853
    %v862 = vcvt.s32.f32 %v854
    %v863 = vcvt.s32.f32 %v855
    %v864 = vcvt.s32.f32 %v856
    %v865 = vcvt.s32.f32 %v857
    %867 = vset.pattern.permute.xlu0 0
    %868 = vperm.xlu0 %867, %v858
    %v869 = vpop.permute.xlu0 %868
    %871 = vset.pattern.permute.xlu0 0
    %872 = vperm.xlu0 %871, %v859
    %v873 = vpop.permute.xlu0 %872
    %875 = vset.pattern.permute.xlu0 0
    %876 = vperm.xlu0 %875, %v860
    %v877 = vpop.permute.xlu0 %876
    %879 = vset.pattern.permute.xlu0 0
    %880 = vperm.xlu0 %879, %v861
    %v881 = vpop.permute.xlu0 %880
    %883 = vset.pattern.permute.xlu0 0
    %884 = vperm.xlu0 %883, %v862
    %v885 = vpop.permute.xlu0 %884
    %887 = vset.pattern.permute.xlu0 0
    %888 = vperm.xlu0 %887, %v863
    %v889 = vpop.permute.xlu0 %888
    %891 = vset.pattern.permute.xlu0 0
    %892 = vperm.xlu0 %891, %v864
    %v893 = vpop.permute.xlu0 %892
    %895 = vset.pattern.permute.xlu0 0
    %896 = vperm.xlu0 %895, %v865
    %v897 = vpop.permute.xlu0 %896
    %vm898 = vcmask 1043456
    %v899 = vrot.slane %v869, 4
    %v900 = vrot.slane %v873, 4
    %v901 = vsel %vm898, %v899, %v900
    %v902 = vrot.slane %v877, 4
    %v903 = vsel %vm898, %v900, %v902
    %v904 = vrot.slane %v881, 4
    %v905 = vsel %vm898, %v902, %v904
    %v906 = vrot.slane %v885, 4
    %v907 = vsel %vm898, %v904, %v906
    %v908 = vrot.slane %v889, 4
    %v909 = vsel %vm898, %v906, %v908
    %v910 = vrot.slane %v893, 4
    %v911 = vsel %vm898, %v908, %v910
    %v912 = vrot.slane %v897, 4
    %v913 = vsel %vm898, %v910, %v912
    %v923 = vmul.f32 %v493, %v899
    %v924 = vmul.f32 %v471, %v901
    %v925 = vmul.f32 %v473, %v903
    %v926 = vmul.f32 %v475, %v905
    %v927 = vmul.f32 %v477, %v907
    %v928 = vmul.f32 %v479, %v909
    %v929 = vmul.f32 %v481, %v911
    %v930 = vmul.f32 %v483, %v913
    %v931 = vmul.f32 %v494, %v912
    %vm941 = vcmask 1046528
    %v942 = vrot.slane %v696, 1
    %v943 = vrot.slane %v697, 1
    %v944 = vsel %vm941, %v942, %v943
    %v945 = vrot.slane %v698, 1
    %v946 = vsel %vm941, %v943, %v945
    %v947 = vrot.slane %v699, 1
    %v948 = vsel %vm941, %v945, %v947
    %v949 = vrot.slane %v700, 1
    %v950 = vsel %vm941, %v947, %v949
    %v951 = vrot.slane %v701, 1
    %v952 = vsel %vm941, %v949, %v951
    %v953 = vrot.slane %v702, 1
    %v954 = vsel %vm941, %v951, %v953
    %v955 = vrot.slane %v703, 1
    %v956 = vsel %vm941, %v953, %v955
    %v957 = vrot.slane %v704, 1
    %v958 = vsel %vm941, %v955, %v957
    %959 = vrot.lane.b32.xlu0 %v944, 32
    %v960 = vpop.permute.xlu0 %959
    %961 = vrot.lane.b32.xlu0 %v946, 32
    %v962 = vpop.permute.xlu0 %961
    %963 = vrot.lane.b32.xlu0 %v948, 32
    %v964 = vpop.permute.xlu0 %963
    %965 = vrot.lane.b32.xlu0 %v950, 32
    %v966 = vpop.permute.xlu0 %965
    %967 = vrot.lane.b32.xlu0 %v952, 32
    %v968 = vpop.permute.xlu0 %967
    %969 = vrot.lane.b32.xlu0 %v954, 32
    %v970 = vpop.permute.xlu0 %969
    %971 = vrot.lane.b32.xlu0 %v956, 32
    %v972 = vpop.permute.xlu0 %971
    %973 = vrot.lane.b32.xlu0 %v958, 32
    %v974 = vpop.permute.xlu0 %973
    %vm985 = vcmask 1045504
    %v986 = vrot.slane %v493, 2
    %v987 = vrot.slane %v471, 2
    %v988 = vsel %vm985, %v986, %v987
    %v989 = vrot.slane %v473, 2
    %v990 = vsel %vm985, %v987, %v989
    %v991 = vrot.slane %v475, 2
    %v992 = vsel %vm985, %v989, %v991
    %v993 = vrot.slane %v477, 2
    %v994 = vsel %vm985, %v991, %v993
    %v995 = vrot.slane %v479, 2
    %v996 = vsel %vm985, %v993, %v995
    %v997 = vrot.slane %v481, 2
    %v998 = vsel %vm985, %v995, %v997
    %v999 = vrot.slane %v483, 2
    %v1000 = vsel %vm985, %v997, %v999
    %v1001 = vrot.slane %v494, 2
    %v1002 = vsel %vm985, %v999, %v1001
    %1003 = vrot.lane.b32.xlu0 %v988, 64
    %v1004 = vpop.permute.xlu0 %1003
    %1005 = vrot.lane.b32.xlu0 %v990, 64
    %v1006 = vpop.permute.xlu0 %1005
    %1007 = vrot.lane.b32.xlu0 %v992, 64
    %v1008 = vpop.permute.xlu0 %1007
    %1009 = vrot.lane.b32.xlu0 %v994, 64
    %v1010 = vpop.permute.xlu0 %1009
    %1011 = vrot.lane.b32.xlu0 %v996, 64
    %v1012 = vpop.permute.xlu0 %1011
    %1013 = vrot.lane.b32.xlu0 %v998, 64
    %v1014 = vpop.permute.xlu0 %1013
    %1015 = vrot.lane.b32.xlu0 %v1000, 64
    %v1016 = vpop.permute.xlu0 %1015
    %1017 = vrot.lane.b32.xlu0 %v1002, 64
    %v1018 = vpop.permute.xlu0 %1017
    %vm1036 = vcmask 1044480
    %v1037 = vrot.slane %v809, 3
    %v1038 = vrot.slane %v810, 3
    %v1039 = vsel %vm1036, %v1037, %v1038
    %v1040 = vrot.slane %v811, 3
    %v1041 = vsel %vm1036, %v1038, %v1040
    %v1042 = vrot.slane %v812, 3
    %v1043 = vsel %vm1036, %v1040, %v1042
    %v1044 = vrot.slane %v813, 3
    %v1045 = vsel %vm1036, %v1042, %v1044
    %v1046 = vrot.slane %v814, 3
    %v1047 = vsel %vm1036, %v1044, %v1046
    %v1048 = vrot.slane %v815, 3
    %v1049 = vsel %vm1036, %v1046, %v1048
    %v1050 = vrot.slane %v816, 3
    %v1051 = vsel %vm1036, %v1048, %v1050
    %v1052 = vrot.slane %v817, 3
    %v1053 = vsel %vm1036, %v1050, %v1052
    %1054 = vrot.lane.b32.xlu0 %v1039, 96
    %v1055 = vpop.permute.xlu0 %1054
    %1056 = vrot.lane.b32.xlu0 %v1041, 96
    %v1057 = vpop.permute.xlu0 %1056
    %1058 = vrot.lane.b32.xlu0 %v1043, 96
    %v1059 = vpop.permute.xlu0 %1058
    %1060 = vrot.lane.b32.xlu0 %v1045, 96
    %v1061 = vpop.permute.xlu0 %1060
    %1062 = vrot.lane.b32.xlu0 %v1047, 96
    %v1063 = vpop.permute.xlu0 %1062
    %1064 = vrot.lane.b32.xlu0 %v1049, 96
    %v1065 = vpop.permute.xlu0 %1064
    %1066 = vrot.lane.b32.xlu0 %v1051, 96
    %v1067 = vpop.permute.xlu0 %1066
    %1068 = vrot.lane.b32.xlu0 %v1053, 96
    %v1069 = vpop.permute.xlu0 %1068
    %v1087 = vrot.slane %v923, 4
    %v1088 = vrot.slane %v924, 4
    %v1089 = vsel %vm898, %v1087, %v1088
    %v1090 = vrot.slane %v925, 4
    %v1091 = vsel %vm898, %v1088, %v1090
    %v1092 = vrot.slane %v926, 4
    %v1093 = vsel %vm898, %v1090, %v1092
    %v1094 = vrot.slane %v927, 4
    %v1095 = vsel %vm898, %v1092, %v1094
    %v1096 = vrot.slane %v928, 4
    %v1097 = vsel %vm898, %v1094, %v1096
    %v1098 = vrot.slane %v929, 4
    %v1099 = vsel %vm898, %v1096, %v1098
    %v1100 = vrot.slane %v930, 4
    %v1101 = vsel %vm898, %v1098, %v1100
    %v1102 = vrot.slane %v931, 4
    %v1103 = vsel %vm898, %v1100, %v1102
    %v1112 = vsel %vm319, %v583, %v960
    %v1113 = vsel %vm319, %v584, %v962
    %v1114 = vsel %vm319, %v585, %v964
    %v1115 = vsel %vm319, %v586, %v966
    %v1116 = vsel %vm319, %v587, %v968
    %v1117 = vsel %vm319, %v588, %v970
    %v1118 = vsel %vm319, %v589, %v972
    %v1119 = vsel %vm319, %v590, %v974
    %vm1120 = vcmask 523264
    %v1121 = vsel %vm1120, %v1112, %v1004
    %v1122 = vsel %vm1120, %v1113, %v1006
    %v1123 = vsel %vm1120, %v1114, %v1008
    %v1124 = vsel %vm1120, %v1115, %v1010
    %v1125 = vsel %vm1120, %v1116, %v1012
    %v1126 = vsel %vm1120, %v1117, %v1014
    %v1127 = vsel %vm1120, %v1118, %v1016
    %v1128 = vsel %vm1120, %v1119, %v1018
    %v1129 = vsel %vm275, %v1121, %v1055
    %v1130 = vsel %vm275, %v1122, %v1057
    %v1131 = vsel %vm275, %v1123, %v1059
    %v1132 = vsel %vm275, %v1124, %v1061
    %v1133 = vsel %vm275, %v1125, %v1063
    %v1134 = vsel %vm275, %v1126, %v1065
    %v1135 = vsel %vm275, %v1127, %v1067
    %v1136 = vsel %vm275, %v1128, %v1069
    %v1137 = vpack.c.bf16 %v1130, %v1129
    %v1138 = vpack.c.bf16 %v1091, %v1089
    %v1139 = vpack.c.bf16 %v1132, %v1131
    %v1140 = vpack.c.bf16 %v1095, %v1093
    %v1141 = vpack.c.bf16 %v1134, %v1133
    %v1142 = vpack.c.bf16 %v1099, %v1097
    %v1143 = vpack.c.bf16 %v1136, %v1135
    %v1144 = vpack.c.bf16 %v1103, %v1101
    %v1146 = vperm.slane %v460, 0
    %v1168 = vunpack.c.l.b16 %v440
    %v1169 = vunpack.c.l.b16 %v441
    %v1170 = vunpack.c.l.b16 %v442
    %v1171 = vunpack.c.l.b16 %v443
    %v1172 = vunpack.c.l.b16 %v444
    %v1173 = vunpack.c.l.b16 %v445
    %v1174 = vunpack.c.l.b16 %v446
    %v1175 = vunpack.c.l.b16 %v447
    %v1176 = vunpack.c.l.b16 %v448
    %v1177 = vunpack.c.l.b16 %v449
    %v1178 = vunpack.c.l.b16 %v450
    %v1179 = vunpack.c.l.b16 %v451
    %v1180 = vunpack.c.l.b16 %v452
    %v1181 = vunpack.c.l.b16 %v453
    %v1182 = vunpack.c.l.b16 %v454
    %v1183 = vunpack.c.l.b16 %v455
    %v1184 = vunpack.c.l.b16 %v456
    %v1185 = vunpack.c.l.b16 %v457
    %v1186 = vunpack.c.l.b16 %v458
    %v1187 = vunpack.c.l.b16 %v459
    %v1188 = vpack.c.b16 %v1169, %v1168
    %v1189 = vpack.c.b16 %v1171, %v1170
    %v1190 = vpack.c.b16 %v1173, %v1172
    %v1191 = vpack.c.b16 %v1175, %v1174
    %v1192 = vpack.c.b16 %v1177, %v1176
    %v1193 = vpack.c.b16 %v1179, %v1178
    %v1194 = vpack.c.b16 %v1181, %v1180
    %v1195 = vpack.c.b16 %v1183, %v1182
    %v1196 = vpack.c.b16 %v1185, %v1184
    %v1197 = vpack.c.b16 %v1187, %v1186
    %v1209 = vsel %vm319, %v1138, 0
    %v1212 = vsel %vm319, %v1140, 0
    %v1215 = vsel %vm319, %v1142, 0
    %v1218 = vsel %vm319, %v1144, 0
    %1220 = vmatpush.bf16.msra.mxu0 %v1195
    %1221 = vmatpush.bf16.msra.mxu0 %v1194
    %1222 = vmatpush.bf16.msra.mxu0 %v1193
    %1223 = vmatpush.bf16.msra.mxu0 %v1192
    %1224 = vmatpush.bf16.msra.mxu0 %v1191
    %1225 = vmatpush.bf16.msra.mxu0 %v1190
    %1226 = vmatpush.bf16.msra.mxu0 %v1189
    %1227 = vmatpush.bf16.msra.mxu0 %v1188
    %1228 = vmatmul.bf16.gmra.mxu0 %v1137
    %v1229 = vpop.f32.mrf.mxu0
    %v1230 = vadd.f32 %v1146, %v1229
    %v1231 = vpop.f32.mrf.mxu0
    %v1232 = vadd.f32 %v1146, %v1231
    %1233 = vmatmul.bf16.gmra.mxu0 %v1139
    %v1234 = vpop.f32.mrf.mxu0
    %v1235 = vadd.f32 %v1146, %v1234
    %v1236 = vpop.f32.mrf.mxu0
    %v1237 = vadd.f32 %v1146, %v1236
    %1238 = vmatmul.bf16.gmra.mxu0 %v1141
    %v1239 = vpop.f32.mrf.mxu0
    %v1240 = vadd.f32 %v1146, %v1239
    %v1241 = vpop.f32.mrf.mxu0
    %v1242 = vadd.f32 %v1146, %v1241
    %1243 = vmatmul.bf16.gmra.mxu0 %v1143
    %v1244 = vpop.f32.mrf.mxu0
    %v1245 = vadd.f32 %v1146, %v1244
    %v1246 = vpop.f32.mrf.mxu0
    %v1247 = vadd.f32 %v1146, %v1246
    %1248 = vdwg.mxu0
    %1249 = vmatpush.bf16.msra.mxu0 0
    %1250 = vmatpush.bf16.msra.mxu0 0
    %1251 = vmatpush.bf16.msra.mxu0 0
    %1252 = vmatpush.bf16.msra.mxu0 0
    %1253 = vmatpush.bf16.msra.mxu0 0
    %1254 = vmatpush.bf16.msra.mxu0 0
    %1255 = vmatpush.bf16.msra.mxu0 %v1197
    %1256 = vmatpush.bf16.msra.mxu0 %v1196
    %1257 = vmatmul.bf16.gmra.mxu0 %v1209
    %v1258 = vpop.f32.mrf.mxu0
    %v1259 = vadd.f32 %v1230, %v1258
    %v1260 = vpop.f32.mrf.mxu0
    %v1261 = vadd.f32 %v1232, %v1260
    %1262 = vmatmul.bf16.gmra.mxu0 %v1212
    %v1263 = vpop.f32.mrf.mxu0
    %v1264 = vadd.f32 %v1235, %v1263
    %v1265 = vpop.f32.mrf.mxu0
    %v1266 = vadd.f32 %v1237, %v1265
    %1267 = vmatmul.bf16.gmra.mxu0 %v1215
    %v1268 = vpop.f32.mrf.mxu0
    %v1269 = vadd.f32 %v1240, %v1268
    %v1270 = vpop.f32.mrf.mxu0
    %v1271 = vadd.f32 %v1242, %v1270
    %1272 = vmatmul.bf16.gmra.mxu0 %v1218
    %v1273 = vpop.f32.mrf.mxu0
    %v1274 = vadd.f32 %v1245, %v1273
    %v1275 = vpop.f32.mrf.mxu0
    %v1276 = vadd.f32 %v1247, %v1275
    %1277 = vdwg.mxu0
    %v1278 = vld [vmem:[%s13] sm:$0x1]
    %v1279 = vld [vmem:[%s14] sm:$0x1]
    %v1280 = vld [vmem:[%s2] sm:$0xff]
    %v1281 = vld [vmem:[%s2 + $0x8] sm:$0xff]
    %v1282 = vld [vmem:[%s2 + $0x10] sm:$0xff]
    %v1283 = vld [vmem:[%s2 + $0x18] sm:$0xff]
    %v1284 = vld [vmem:[%s2 + $0x20] sm:$0xff]
    %v1285 = vld [vmem:[%s2 + $0x28] sm:$0xff]
    %v1286 = vld [vmem:[%s2 + $0x30] sm:$0xff]
    %v1287 = vld [vmem:[%s2 + $0x38] sm:$0xff]
    %1289 = vset.pattern.permute.xlu0 0
    %1290 = vperm.xlu0 %1289, %v1280
    %v1291 = vpop.permute.xlu0 %1290
    %1294 = vset.pattern.permute.xlu0 0
    %1295 = vperm.xlu0 %1294, %v1281
    %v1296 = vpop.permute.xlu0 %1295
    %1299 = vset.pattern.permute.xlu0 0
    %1300 = vperm.xlu0 %1299, %v1282
    %v1301 = vpop.permute.xlu0 %1300
    %1304 = vset.pattern.permute.xlu0 0
    %1305 = vperm.xlu0 %1304, %v1283
    %v1306 = vpop.permute.xlu0 %1305
    %1309 = vset.pattern.permute.xlu0 0
    %1310 = vperm.xlu0 %1309, %v1284
    %v1311 = vpop.permute.xlu0 %1310
    %1314 = vset.pattern.permute.xlu0 0
    %1315 = vperm.xlu0 %1314, %v1285
    %v1316 = vpop.permute.xlu0 %1315
    %1319 = vset.pattern.permute.xlu0 0
    %1320 = vperm.xlu0 %1319, %v1286
    %v1321 = vpop.permute.xlu0 %1320
    %1324 = vset.pattern.permute.xlu0 0
    %1325 = vperm.xlu0 %1324, %v1287
    %v1326 = vpop.permute.xlu0 %1325
    %v1328 = vmul.f32 %v1259, %v1291
    %v1329 = vmul.f32 %v1261, %v1296
    %v1330 = vmul.f32 %v1264, %v1301
    %v1331 = vmul.f32 %v1266, %v1306
    %v1332 = vmul.f32 %v1269, %v1311
    %v1333 = vmul.f32 %v1271, %v1316
    %v1334 = vmul.f32 %v1274, %v1321
    %v1335 = vmul.f32 %v1276, %v1326
    %v1336 = vsel %vm1120, %v1328, 0.0
    %v1337 = vsel %vm1120, %v1329, 0.0
    %v1338 = vadd.f32 %v1336, %v1337
    %v1339 = vsel %vm1120, %v1330, 0.0
    %v1340 = vadd.f32 %v1338, %v1339
    %v1341 = vsel %vm1120, %v1331, 0.0
    %v1342 = vadd.f32 %v1340, %v1341
    %v1343 = vsel %vm1120, %v1332, 0.0
    %v1344 = vadd.f32 %v1342, %v1343
    %v1345 = vsel %vm1120, %v1333, 0.0
    %v1346 = vadd.f32 %v1344, %v1345
    %v1347 = vsel %vm1120, %v1334, 0.0
    %v1348 = vadd.f32 %v1346, %v1347
    %v1349 = vsel %vm1120, %v1335, 0.0
    %v1350 = vadd.f32 %v1348, %v1349
    %v1351 = vrot.slane %v1350, 4
    %v1352 = vadd.f32 %v1350, %v1351
    %v1353 = vrot.slane %v1352, 2
    %v1354 = vadd.f32 %v1352, %v1353
    %v1355 = vrot.slane %v1354, 1
    %v1356 = vadd.f32 %v1354, %v1355
    %v1357 = vmul.f32 %v1356, 0.03125
    %v1358 = vmul.f32 %v1328, %v1259
    %v1359 = vmul.f32 %v1329, %v1261
    %v1360 = vmul.f32 %v1330, %v1264
    %v1361 = vmul.f32 %v1331, %v1266
    %v1362 = vmul.f32 %v1332, %v1269
    %v1363 = vmul.f32 %v1333, %v1271
    %v1364 = vmul.f32 %v1334, %v1274
    %v1365 = vmul.f32 %v1335, %v1276
    %v1366 = vsel %vm1120, %v1358, 0.0
    %v1367 = vsel %vm1120, %v1359, 0.0
    %v1368 = vadd.f32 %v1366, %v1367
    %v1369 = vsel %vm1120, %v1360, 0.0
    %v1370 = vadd.f32 %v1368, %v1369
    %v1371 = vsel %vm1120, %v1361, 0.0
    %v1372 = vadd.f32 %v1370, %v1371
    %v1373 = vsel %vm1120, %v1362, 0.0
    %v1374 = vadd.f32 %v1372, %v1373
    %v1375 = vsel %vm1120, %v1363, 0.0
    %v1376 = vadd.f32 %v1374, %v1375
    %v1377 = vsel %vm1120, %v1364, 0.0
    %v1378 = vadd.f32 %v1376, %v1377
    %v1379 = vsel %vm1120, %v1365, 0.0
    %v1380 = vadd.f32 %v1378, %v1379
    %v1381 = vrot.slane %v1380, 4
    %v1382 = vadd.f32 %v1380, %v1381
    %v1383 = vrot.slane %v1382, 2
    %v1384 = vadd.f32 %v1382, %v1383
    %v1385 = vrot.slane %v1384, 1
    %v1386 = vadd.f32 %v1384, %v1385
    %v1387 = vmul.f32 %v1386, 0.03125
    %v1388 = vmul.f32 %v1357, %v1357
    %v1389 = vsub.f32 %v1387, %v1388
    %v1390 = vadd.f32 %v1389, 1e-05
    %v1391 = vrsqrt.pop %v1390
    %v1392 = vmul.f32 %v1391, %v1390
    %v1393 = vmul.f32 %v1392, %v1391
    %v1394 = vmul.f32 0.5, %v1393
    %v1395 = vsub.f32 1.5, %v1394
    %v1396 = vmul.f32 %v1391, %v1395
    %vm1397 = vweird.f32 %v1390
    %vm1398 = vweird.f32 %v1391
    %vm1399 = vmor %vm1397, %vm1398
    %v1400 = vsel %vm1399, %v1391, %v1396
    %v1401 = vmul.f32 %v1278, %v1400
    %v1402 = vsub.f32 %v1259, %v1357
    %v1403 = vsub.f32 %v1261, %v1357
    %v1404 = vsub.f32 %v1264, %v1357
    %v1405 = vsub.f32 %v1266, %v1357
    %v1406 = vsub.f32 %v1269, %v1357
    %v1407 = vsub.f32 %v1271, %v1357
    %v1408 = vsub.f32 %v1274, %v1357
    %v1409 = vsub.f32 %v1276, %v1357
    %v1411 = vperm.slane %v1401, 0
    %v1413 = vmul.f32 %v1402, %v1411
    %v1414 = vmul.f32 %v1403, %v1411
    %v1415 = vmul.f32 %v1404, %v1411
    %v1416 = vmul.f32 %v1405, %v1411
    %v1417 = vmul.f32 %v1406, %v1411
    %v1418 = vmul.f32 %v1407, %v1411
    %v1419 = vmul.f32 %v1408, %v1411
    %v1420 = vmul.f32 %v1409, %v1411
    %v1422 = vperm.slane %v1279, 0
    %v1424 = vadd.f32 %v1413, %v1422
    %v1425 = vadd.f32 %v1414, %v1422
    %v1426 = vadd.f32 %v1415, %v1422
    %v1427 = vadd.f32 %v1416, %v1422
    %v1428 = vadd.f32 %v1417, %v1422
    %v1429 = vadd.f32 %v1418, %v1422
    %v1430 = vadd.f32 %v1419, %v1422
    %v1431 = vadd.f32 %v1420, %v1422
    %vm1432 = vcmp.gt.f32.partialorder %v1424, 0.0
    %vm1433 = vcmp.gt.f32.partialorder %v1425, 0.0
    %vm1434 = vcmp.gt.f32.partialorder %v1426, 0.0
    %vm1435 = vcmp.gt.f32.partialorder %v1427, 0.0
    %vm1436 = vcmp.gt.f32.partialorder %v1428, 0.0
    %vm1437 = vcmp.gt.f32.partialorder %v1429, 0.0
    %vm1438 = vcmp.gt.f32.partialorder %v1430, 0.0
    %vm1439 = vcmp.gt.f32.partialorder %v1431, 0.0
    %v1440 = vmul.f32 %v1424, 0.2
    %v1441 = vmul.f32 %v1425, 0.2
    %v1442 = vmul.f32 %v1426, 0.2
    %v1443 = vmul.f32 %v1427, 0.2
    %v1444 = vmul.f32 %v1428, 0.2
    %v1445 = vmul.f32 %v1429, 0.2
    %v1446 = vmul.f32 %v1430, 0.2
    %v1447 = vmul.f32 %v1431, 0.2
    %v1448 = vsel %vm1432, %v1424, %v1440
    %v1449 = vsel %vm1433, %v1425, %v1441
    %v1450 = vsel %vm1434, %v1426, %v1442
    %v1451 = vsel %vm1435, %v1427, %v1443
    %v1452 = vsel %vm1436, %v1428, %v1444
    %v1453 = vsel %vm1437, %v1429, %v1445
    %v1454 = vsel %vm1438, %v1430, %v1446
    %v1455 = vsel %vm1439, %v1431, %v1447
    %v1456 = vld [vmem:[#allocation2] sm:$0xf]
    %v1457 = vld [vmem:[#allocation2 + $0x4] sm:$0xf]
    %v1458 = vld [vmem:[#allocation2 + $0x8] sm:$0xf]
    %v1459 = vld [vmem:[#allocation2 + $0xc] sm:$0xf]
    %v1460 = vld [vmem:[#allocation2 + $0x10] sm:$0xf]
    %v1461 = vld [vmem:[#allocation2 + $0x14] sm:$0xf]
    %v1462 = vld [vmem:[#allocation2 + $0x18] sm:$0xf]
    %v1463 = vld [vmem:[#allocation2 + $0x1c] sm:$0xf]
    %v1464 = vld [vmem:[#allocation2 + $0x20] sm:$0xf]
    %v1465 = vld [vmem:[#allocation2 + $0x24] sm:$0xf]
    %v1466 = vld [vmem:[#allocation2 + $0x28] sm:$0xf]
    %v1467 = vld [vmem:[#allocation2 + $0x2c] sm:$0xf]
    %v1468 = vld [vmem:[#allocation2 + $0x30] sm:$0xf]
    %v1469 = vld [vmem:[#allocation2 + $0x34] sm:$0xf]
    %v1470 = vld [vmem:[#allocation2 + $0x38] sm:$0xf]
    %v1471 = vld [vmem:[#allocation2 + $0x3c] sm:$0xf]
    %v1472 = vld [vmem:[#allocation2 + $0x40] sm:$0xf]
    %v1473 = vld [vmem:[#allocation2 + $0x44] sm:$0xf]
    %v1474 = vld [vmem:[#allocation2 + $0x48] sm:$0xf]
    %v1475 = vld [vmem:[#allocation2 + $0x4c] sm:$0xf]
    %v1476 = vld [vmem:[#allocation2 + $0x50] sm:$0xf]
    %v1477 = vld [vmem:[#allocation2 + $0x54] sm:$0xf]
    %v1478 = vld [vmem:[#allocation2 + $0x58] sm:$0xf]
    %v1479 = vld [vmem:[#allocation2 + $0x5c] sm:$0xf]
    %v1480 = vld [vmem:[#allocation2 + $0x60] sm:$0xf]
    %v1481 = vld [vmem:[#allocation2 + $0x64] sm:$0xf]
    %v1482 = vld [vmem:[#allocation2 + $0x68] sm:$0xf]
    %v1483 = vld [vmem:[#allocation2 + $0x6c] sm:$0xf]
    %v1484 = vld [vmem:[#allocation2 + $0x70] sm:$0xf]
    %v1485 = vld [vmem:[#allocation2 + $0x74] sm:$0xf]
    %v1486 = vld [vmem:[#allocation2 + $0x78] sm:$0xf]
    %v1487 = vld [vmem:[#allocation2 + $0x7c] sm:$0xf]
    %v1488 = vld [vmem:[#allocation2 + $0x80] sm:$0xf]
    %v1489 = vld [vmem:[#allocation2 + $0x84] sm:$0xf]
    %v1490 = vld [vmem:[#allocation2 + $0x88] sm:$0xf]
    %v1491 = vld [vmem:[#allocation2 + $0x8c] sm:$0xf]
    %v1492 = vld [vmem:[#allocation2 + $0x90] sm:$0xf]
    %v1493 = vld [vmem:[#allocation2 + $0x94] sm:$0xf]
    %v1494 = vld [vmem:[#allocation2 + $0x98] sm:$0xf]
    %v1495 = vld [vmem:[#allocation2 + $0x9c] sm:$0xf]
    %v1496 = vld [vmem:[%s16] sm:$0x1]
    %v1505 = vrot.slane %v1448, 4
    %v1506 = vrot.slane %v1449, 4
    %v1507 = vsel %vm898, %v1505, %v1506
    %v1508 = vrot.slane %v1450, 4
    %v1509 = vsel %vm898, %v1506, %v1508
    %v1510 = vrot.slane %v1451, 4
    %v1511 = vsel %vm898, %v1508, %v1510
    %v1512 = vrot.slane %v1452, 4
    %v1513 = vsel %vm898, %v1510, %v1512
    %v1514 = vrot.slane %v1453, 4
    %v1515 = vsel %vm898, %v1512, %v1514
    %v1516 = vrot.slane %v1454, 4
    %v1517 = vsel %vm898, %v1514, %v1516
    %v1518 = vrot.slane %v1455, 4
    %v1519 = vsel %vm898, %v1516, %v1518
    %v1529 = vsel %vm898, 0.0, %v1505
    %v1530 = vsel %vm898, %v1518, 0.0
    %v1531 = vadd.s32 %v94, 4294967292
    %v1532 = vadd.s32 %v95, 4294967292
    %v1533 = vadd.s32 %v96, 4294967292
    %v1534 = vadd.s32 %v97, 4294967292
    %v1535 = vadd.s32 %v98, 4294967292
    %v1536 = vadd.s32 %v99, 4294967292
    %v1537 = vadd.s32 %v100, 4294967292
    %v1538 = vadd.s32 %v101, 4294967292
    %vm1539 = vcmp.ge.s32.totalorder %v1531, 0
    %vm1540 = vcmp.ge.s32.totalorder %v1532, 0
    %vm1541 = vcmp.ge.s32.totalorder %v1533, 0
    %vm1542 = vcmp.ge.s32.totalorder %v1534, 0
    %vm1543 = vcmp.ge.s32.totalorder %v1535, 0
    %vm1544 = vcmp.ge.s32.totalorder %v1536, 0
    %vm1545 = vcmp.ge.s32.totalorder %v1537, 0
    %vm1546 = vcmp.ge.s32.totalorder %v1538, 0
    %vm1547 = vcmp.lt.s32.totalorder %v1531, 32
    %vm1548 = vcmp.lt.s32.totalorder %v1532, 32
    %vm1549 = vcmp.lt.s32.totalorder %v1533, 32
    %vm1550 = vcmp.lt.s32.totalorder %v1534, 32
    %vm1551 = vcmp.lt.s32.totalorder %v1535, 32
    %vm1552 = vcmp.lt.s32.totalorder %v1536, 32
    %vm1553 = vcmp.lt.s32.totalorder %v1537, 32
    %vm1554 = vcmp.lt.s32.totalorder %v1538, 32
    %vm1555 = vmand %vm1539, %vm1547
    %vm1556 = vmand %vm1540, %vm1548
    %vm1557 = vmand %vm1541, %vm1549
    %vm1558 = vmand %vm1542, %vm1550
    %vm1559 = vmand %vm1543, %vm1551
    %vm1560 = vmand %vm1544, %vm1552
    %vm1561 = vmand %vm1545, %vm1553
    %vm1562 = vmand %vm1546, %vm1554
    %v1563 = vsel %vm1555, 1, 0
    %v1564 = vsel %vm1556, 1, 0
    %v1565 = vsel %vm1557, 1, 0
    %v1566 = vsel %vm1558, 1, 0
    %v1567 = vsel %vm1559, 1, 0
    %v1568 = vsel %vm1560, 1, 0
    %v1569 = vsel %vm1561, 1, 0
    %v1570 = vsel %vm1562, 1, 0
    %v1571 = vcvt.s32.f32 %v1563
    %v1572 = vcvt.s32.f32 %v1564
    %v1573 = vcvt.s32.f32 %v1565
    %v1574 = vcvt.s32.f32 %v1566
    %v1575 = vcvt.s32.f32 %v1567
    %v1576 = vcvt.s32.f32 %v1568
    %v1577 = vcvt.s32.f32 %v1569
    %v1578 = vcvt.s32.f32 %v1570
    %1580 = vset.pattern.permute.xlu0 0
    %1581 = vperm.xlu0 %1580, %v1571
    %v1582 = vpop.permute.xlu0 %1581
    %1585 = vset.pattern.permute.xlu0 0
    %1586 = vperm.xlu0 %1585, %v1572
    %v1587 = vpop.permute.xlu0 %1586
    %1590 = vset.pattern.permute.xlu0 0
    %1591 = vperm.xlu0 %1590, %v1573
    %v1592 = vpop.permute.xlu0 %1591
    %1595 = vset.pattern.permute.xlu0 0
    %1596 = vperm.xlu0 %1595, %v1574
    %v1597 = vpop.permute.xlu0 %1596
    %1600 = vset.pattern.permute.xlu0 0
    %1601 = vperm.xlu0 %1600, %v1575
    %v1602 = vpop.permute.xlu0 %1601
    %1605 = vset.pattern.permute.xlu0 0
    %1606 = vperm.xlu0 %1605, %v1576
    %v1607 = vpop.permute.xlu0 %1606
    %1610 = vset.pattern.permute.xlu0 0
    %1611 = vperm.xlu0 %1610, %v1577
    %v1612 = vpop.permute.xlu0 %1611
    %1615 = vset.pattern.permute.xlu0 0
    %1616 = vperm.xlu0 %1615, %v1578
    %v1617 = vpop.permute.xlu0 %1616
    %v1619 = vmul.f32 %v1529, %v1582
    %v1620 = vmul.f32 %v1507, %v1587
    %v1621 = vmul.f32 %v1509, %v1592
    %v1622 = vmul.f32 %v1511, %v1597
    %v1623 = vmul.f32 %v1513, %v1602
    %v1624 = vmul.f32 %v1515, %v1607
    %v1625 = vmul.f32 %v1517, %v1612
    %v1626 = vmul.f32 %v1519, %v1617
    %v1627 = vrot.slane %v546, 6
    %v1628 = vrot.slane %v551, 6
    %v1629 = vsel %vm159, %v1627, %v1628
    %v1630 = vrot.slane %v556, 6
    %v1631 = vsel %vm159, %v1628, %v1630
    %v1632 = vrot.slane %v561, 6
    %v1633 = vsel %vm159, %v1630, %v1632
    %v1634 = vrot.slane %v566, 6
    %v1635 = vsel %vm159, %v1632, %v1634
    %v1636 = vrot.slane %v571, 6
    %v1637 = vsel %vm159, %v1634, %v1636
    %v1638 = vrot.slane %v576, 6
    %v1639 = vsel %vm159, %v1636, %v1638
    %v1640 = vrot.slane %v581, 6
    %v1641 = vsel %vm159, %v1638, %v1640
    %v1651 = vmul.f32 %v1529, %v1627
    %v1652 = vmul.f32 %v1507, %v1629
    %v1653 = vmul.f32 %v1509, %v1631
    %v1654 = vmul.f32 %v1511, %v1633
    %v1655 = vmul.f32 %v1513, %v1635
    %v1656 = vmul.f32 %v1515, %v1637
    %v1657 = vmul.f32 %v1517, %v1639
    %v1658 = vmul.f32 %v1519, %v1641
    %v1659 = vmul.f32 %v1530, %v1640
    %v1660 = vrot.slane %v869, 2
    %v1661 = vrot.slane %v873, 2
    %v1662 = vsel %vm985, %v1660, %v1661
    %v1663 = vrot.slane %v877, 2
    %v1664 = vsel %vm985, %v1661, %v1663
    %v1665 = vrot.slane %v881, 2
    %v1666 = vsel %vm985, %v1663, %v1665
    %v1667 = vrot.slane %v885, 2
    %v1668 = vsel %vm985, %v1665, %v1667
    %v1669 = vrot.slane %v889, 2
    %v1670 = vsel %vm985, %v1667, %v1669
    %v1671 = vrot.slane %v893, 2
    %v1672 = vsel %vm985, %v1669, %v1671
    %v1673 = vrot.slane %v897, 2
    %v1674 = vsel %vm985, %v1671, %v1673
    %v1684 = vmul.f32 %v1529, %v1660
    %v1685 = vmul.f32 %v1507, %v1662
    %v1686 = vmul.f32 %v1509, %v1664
    %v1687 = vmul.f32 %v1511, %v1666
    %v1688 = vmul.f32 %v1513, %v1668
    %v1689 = vmul.f32 %v1515, %v1670
    %v1690 = vmul.f32 %v1517, %v1672
    %v1691 = vmul.f32 %v1519, %v1674
    %v1692 = vmul.f32 %v1530, %v1673
    %v1693 = vadd.s32 %v94, 4
    %v1694 = vadd.s32 %v95, 4
    %v1695 = vadd.s32 %v96, 4
    %v1696 = vadd.s32 %v97, 4
    %v1697 = vadd.s32 %v98, 4
    %v1698 = vadd.s32 %v99, 4
    %v1699 = vadd.s32 %v100, 4
    %v1700 = vadd.s32 %v101, 4
    %vm1701 = vcmp.ge.s32.totalorder %v1693, 0
    %vm1702 = vcmp.ge.s32.totalorder %v1694, 0
    %vm1703 = vcmp.ge.s32.totalorder %v1695, 0
    %vm1704 = vcmp.ge.s32.totalorder %v1696, 0
    %vm1705 = vcmp.ge.s32.totalorder %v1697, 0
    %vm1706 = vcmp.ge.s32.totalorder %v1698, 0
    %vm1707 = vcmp.ge.s32.totalorder %v1699, 0
    %vm1708 = vcmp.ge.s32.totalorder %v1700, 0
    %vm1709 = vcmp.lt.s32.totalorder %v1693, 32
    %vm1710 = vcmp.lt.s32.totalorder %v1694, 32
    %vm1711 = vcmp.lt.s32.totalorder %v1695, 32
    %vm1712 = vcmp.lt.s32.totalorder %v1696, 32
    %vm1713 = vcmp.lt.s32.totalorder %v1697, 32
    %vm1714 = vcmp.lt.s32.totalorder %v1698, 32
    %vm1715 = vcmp.lt.s32.totalorder %v1699, 32
    %vm1716 = vcmp.lt.s32.totalorder %v1700, 32
    %vm1717 = vmand %vm1701, %vm1709
    %vm1718 = vmand %vm1702, %vm1710
    %vm1719 = vmand %vm1703, %vm1711
    %vm1720 = vmand %vm1704, %vm1712
    %vm1721 = vmand %vm1705, %vm1713
    %vm1722 = vmand %vm1706, %vm1714
    %vm1723 = vmand %vm1707, %vm1715
    %vm1724 = vmand %vm1708, %vm1716
    %v1725 = vsel %vm1717, 1, 0
    %v1726 = vsel %vm1718, 1, 0
    %v1727 = vsel %vm1719, 1, 0
    %v1728 = vsel %vm1720, 1, 0
    %v1729 = vsel %vm1721, 1, 0
    %v1730 = vsel %vm1722, 1, 0
    %v1731 = vsel %vm1723, 1, 0
    %v1732 = vsel %vm1724, 1, 0
    %v1733 = vcvt.s32.f32 %v1725
    %v1734 = vcvt.s32.f32 %v1726
    %v1735 = vcvt.s32.f32 %v1727
    %v1736 = vcvt.s32.f32 %v1728
    %v1737 = vcvt.s32.f32 %v1729
    %v1738 = vcvt.s32.f32 %v1730
    %v1739 = vcvt.s32.f32 %v1731
    %v1740 = vcvt.s32.f32 %v1732
    %1742 = vset.pattern.permute.xlu0 0
    %1743 = vperm.xlu0 %1742, %v1733
    %v1744 = vpop.permute.xlu0 %1743
    %1747 = vset.pattern.permute.xlu0 0
    %1748 = vperm.xlu0 %1747, %v1734
    %v1749 = vpop.permute.xlu0 %1748
    %1752 = vset.pattern.permute.xlu0 0
    %1753 = vperm.xlu0 %1752, %v1735
    %v1754 = vpop.permute.xlu0 %1753
    %1757 = vset.pattern.permute.xlu0 0
    %1758 = vperm.xlu0 %1757, %v1736
    %v1759 = vpop.permute.xlu0 %1758
    %1762 = vset.pattern.permute.xlu0 0
    %1763 = vperm.xlu0 %1762, %v1737
    %v1764 = vpop.permute.xlu0 %1763
    %1767 = vset.pattern.permute.xlu0 0
    %1768 = vperm.xlu0 %1767, %v1738
    %v1769 = vpop.permute.xlu0 %1768
    %1772 = vset.pattern.permute.xlu0 0
    %1773 = vperm.xlu0 %1772, %v1739
    %v1774 = vpop.permute.xlu0 %1773
    %1777 = vset.pattern.permute.xlu0 0
    %1778 = vperm.xlu0 %1777, %v1740
    %v1779 = vpop.permute.xlu0 %1778
    %v1781 = vmul.f32 %v1507, %v1744
    %v1782 = vmul.f32 %v1509, %v1749
    %v1783 = vmul.f32 %v1511, %v1754
    %v1784 = vmul.f32 %v1513, %v1759
    %v1785 = vmul.f32 %v1515, %v1764
    %v1786 = vmul.f32 %v1517, %v1769
    %v1787 = vmul.f32 %v1519, %v1774
    %v1788 = vmul.f32 %v1530, %v1779
    %v1798 = vrot.slane %v1651, 2
    %v1799 = vrot.slane %v1652, 2
    %v1800 = vsel %vm985, %v1798, %v1799
    %v1801 = vrot.slane %v1653, 2
    %v1802 = vsel %vm985, %v1799, %v1801
    %v1803 = vrot.slane %v1654, 2
    %v1804 = vsel %vm985, %v1801, %v1803
    %v1805 = vrot.slane %v1655, 2
    %v1806 = vsel %vm985, %v1803, %v1805
    %v1807 = vrot.slane %v1656, 2
    %v1808 = vsel %vm985, %v1805, %v1807
    %v1809 = vrot.slane %v1657, 2
    %v1810 = vsel %vm985, %v1807, %v1809
    %v1811 = vrot.slane %v1658, 2
    %v1812 = vsel %vm985, %v1809, %v1811
    %v1813 = vrot.slane %v1659, 2
    %v1814 = vsel %vm985, %v1811, %v1813
    %1815 = vrot.lane.b32.xlu0 %v1800, 64
    %v1816 = vpop.permute.xlu0 %1815
    %1817 = vrot.lane.b32.xlu0 %v1802, 64
    %v1818 = vpop.permute.xlu0 %1817
    %1819 = vrot.lane.b32.xlu0 %v1804, 64
    %v1820 = vpop.permute.xlu0 %1819
    %1821 = vrot.lane.b32.xlu0 %v1806, 64
    %v1822 = vpop.permute.xlu0 %1821
    %1823 = vrot.lane.b32.xlu0 %v1808, 64
    %v1824 = vpop.permute.xlu0 %1823
    %1825 = vrot.lane.b32.xlu0 %v1810, 64
    %v1826 = vpop.permute.xlu0 %1825
    %1827 = vrot.lane.b32.xlu0 %v1812, 64
    %v1828 = vpop.permute.xlu0 %1827
    %1829 = vrot.lane.b32.xlu0 %v1814, 64
    %v1830 = vpop.permute.xlu0 %1829
    %v1841 = vrot.slane %v1529, 4
    %v1842 = vrot.slane %v1507, 4
    %v1843 = vsel %vm898, %v1841, %v1842
    %v1844 = vrot.slane %v1509, 4
    %v1845 = vsel %vm898, %v1842, %v1844
    %v1846 = vrot.slane %v1511, 4
    %v1847 = vsel %vm898, %v1844, %v1846
    %v1848 = vrot.slane %v1513, 4
    %v1849 = vsel %vm898, %v1846, %v1848
    %v1850 = vrot.slane %v1515, 4
    %v1851 = vsel %vm898, %v1848, %v1850
    %v1852 = vrot.slane %v1517, 4
    %v1853 = vsel %vm898, %v1850, %v1852
    %v1854 = vrot.slane %v1519, 4
    %v1855 = vsel %vm898, %v1852, %v1854
    %v1856 = vrot.slane %v1530, 4
    %v1857 = vsel %vm898, %v1854, %v1856
    %v1875 = vrot.slane %v1684, 6
    %v1876 = vrot.slane %v1685, 6
    %v1877 = vsel %vm159, %v1875, %v1876
    %v1878 = vrot.slane %v1686, 6
    %v1879 = vsel %vm159, %v1876, %v1878
    %v1880 = vrot.slane %v1687, 6
    %v1881 = vsel %vm159, %v1878, %v1880
    %v1882 = vrot.slane %v1688, 6
    %v1883 = vsel %vm159, %v1880, %v1882
    %v1884 = vrot.slane %v1689, 6
    %v1885 = vsel %vm159, %v1882, %v1884
    %v1886 = vrot.slane %v1690, 6
    %v1887 = vsel %vm159, %v1884, %v1886
    %v1888 = vrot.slane %v1691, 6
    %v1889 = vsel %vm159, %v1886, %v1888
    %v1890 = vrot.slane %v1692, 6
    %v1891 = vsel %vm159, %v1888, %v1890
    %1892 = vrot.lane.b32.xlu0 %v1877, 64
    %v1893 = vpop.permute.xlu0 %1892
    %1894 = vrot.lane.b32.xlu0 %v1879, 64
    %v1895 = vpop.permute.xlu0 %1894
    %1896 = vrot.lane.b32.xlu0 %v1881, 64
    %v1897 = vpop.permute.xlu0 %1896
    %1898 = vrot.lane.b32.xlu0 %v1883, 64
    %v1899 = vpop.permute.xlu0 %1898
    %1900 = vrot.lane.b32.xlu0 %v1885, 64
    %v1901 = vpop.permute.xlu0 %1900
    %1902 = vrot.lane.b32.xlu0 %v1887, 64
    %v1903 = vpop.permute.xlu0 %1902
    %1904 = vrot.lane.b32.xlu0 %v1889, 64
    %v1905 = vpop.permute.xlu0 %1904
    %1906 = vrot.lane.b32.xlu0 %v1891, 64
    %v1907 = vpop.permute.xlu0 %1906
    %v1916 = vsel %vm1120, %v1619, %v1816
    %v1917 = vsel %vm1120, %v1620, %v1818
    %v1918 = vsel %vm1120, %v1621, %v1820
    %v1919 = vsel %vm1120, %v1622, %v1822
    %v1920 = vsel %vm1120, %v1623, %v1824
    %v1921 = vsel %vm1120, %v1624, %v1826
    %v1922 = vsel %vm1120, %v1625, %v1828
    %v1923 = vsel %vm1120, %v1626, %v1830
    %v1924 = vsel %vm1120, %v1843, %v1893
    %v1925 = vsel %vm1120, %v1845, %v1895
    %v1926 = vsel %vm1120, %v1847, %v1897
    %v1927 = vsel %vm1120, %v1849, %v1899
    %v1928 = vsel %vm1120, %v1851, %v1901
    %v1929 = vsel %vm1120, %v1853, %v1903
    %v1930 = vsel %vm1120, %v1855, %v1905
    %v1931 = vsel %vm1120, %v1857, %v1907
    %v1932 = vpack.c.bf16 %v1917, %v1916
    %v1933 = vpack.c.bf16 %v1925, %v1924
    %v1934 = vpack.c.bf16 %v1782, %v1781
    %v1935 = vpack.c.bf16 %v1919, %v1918
    %v1936 = vpack.c.bf16 %v1927, %v1926
    %v1937 = vpack.c.bf16 %v1784, %v1783
    %v1938 = vpack.c.bf16 %v1921, %v1920
    %v1939 = vpack.c.bf16 %v1929, %v1928
    %v1940 = vpack.c.bf16 %v1786, %v1785
    %v1941 = vpack.c.bf16 %v1923, %v1922
    %v1942 = vpack.c.bf16 %v1931, %v1930
    %v1943 = vpack.c.bf16 %v1788, %v1787
    %v1945 = vperm.slane %v1496, 0
    %v1987 = vunpack.c.l.b16 %v1456
    %v1988 = vunpack.c.l.b16 %v1457
    %v1989 = vunpack.c.l.b16 %v1458
    %v1990 = vunpack.c.l.b16 %v1459
    %v1991 = vunpack.c.l.b16 %v1460
    %v1992 = vunpack.c.l.b16 %v1461
    %v1993 = vunpack.c.l.b16 %v1462
    %v1994 = vunpack.c.l.b16 %v1463
    %v1995 = vunpack.c.l.b16 %v1464
    %v1996 = vunpack.c.l.b16 %v1465
    %v1997 = vunpack.c.l.b16 %v1466
    %v1998 = vunpack.c.l.b16 %v1467
    %v1999 = vunpack.c.l.b16 %v1468
    %v2000 = vunpack.c.l.b16 %v1469
    %v2001 = vunpack.c.l.b16 %v1470
    %v2002 = vunpack.c.l.b16 %v1471
    %v2003 = vunpack.c.l.b16 %v1472
    %v2004 = vunpack.c.l.b16 %v1473
    %v2005 = vunpack.c.l.b16 %v1474
    %v2006 = vunpack.c.l.b16 %v1475
    %v2007 = vunpack.c.l.b16 %v1476
    %v2008 = vunpack.c.l.b16 %v1477
    %v2009 = vunpack.c.l.b16 %v1478
    %v2010 = vunpack.c.l.b16 %v1479
    %v2011 = vunpack.c.l.b16 %v1480
    %v2012 = vunpack.c.l.b16 %v1481
    %v2013 = vunpack.c.l.b16 %v1482
    %v2014 = vunpack.c.l.b16 %v1483
    %v2015 = vunpack.c.l.b16 %v1484
    %v2016 = vunpack.c.l.b16 %v1485
    %v2017 = vunpack.c.l.b16 %v1486
    %v2018 = vunpack.c.l.b16 %v1487
    %v2019 = vunpack.c.l.b16 %v1488
    %v2020 = vunpack.c.l.b16 %v1489
    %v2021 = vunpack.c.l.b16 %v1490
    %v2022 = vunpack.c.l.b16 %v1491
    %v2023 = vunpack.c.l.b16 %v1492
    %v2024 = vunpack.c.l.b16 %v1493
    %v2025 = vunpack.c.l.b16 %v1494
    %v2026 = vunpack.c.l.b16 %v1495
    %v2027 = vpack.c.b16 %v1988, %v1987
    %v2028 = vpack.c.b16 %v1990, %v1989
    %v2029 = vpack.c.b16 %v1992, %v1991
    %v2030 = vpack.c.b16 %v1994, %v1993
    %v2031 = vpack.c.b16 %v1996, %v1995
    %v2032 = vpack.c.b16 %v1998, %v1997
    %v2033 = vpack.c.b16 %v2000, %v1999
    %v2034 = vpack.c.b16 %v2002, %v2001
    %v2035 = vpack.c.b16 %v2004, %v2003
    %v2036 = vpack.c.b16 %v2006, %v2005
    %v2037 = vpack.c.b16 %v2008, %v2007
    %v2038 = vpack.c.b16 %v2010, %v2009
    %v2039 = vpack.c.b16 %v2012, %v2011
    %v2040 = vpack.c.b16 %v2014, %v2013
    %v2041 = vpack.c.b16 %v2016, %v2015
    %v2042 = vpack.c.b16 %v2018, %v2017
    %v2043 = vpack.c.b16 %v2020, %v2019
    %v2044 = vpack.c.b16 %v2022, %v2021
    %v2045 = vpack.c.b16 %v2024, %v2023
    %v2046 = vpack.c.b16 %v2026, %v2025
    %v2068 = vsel %vm1120, %v1934, 0
    %v2071 = vsel %vm1120, %v1937, 0
    %v2074 = vsel %vm1120, %v1940, 0
    %v2077 = vsel %vm1120, %v1943, 0
    %2079 = vmatpush.bf16.msra.mxu0 %v2034
    %2080 = vmatpush.bf16.msra.mxu0 %v2033
    %2081 = vmatpush.bf16.msra.mxu0 %v2032
    %2082 = vmatpush.bf16.msra.mxu0 %v2031
    %2083 = vmatpush.bf16.msra.mxu0 %v2030
    %2084 = vmatpush.bf16.msra.mxu0 %v2029
    %2085 = vmatpush.bf16.msra.mxu0 %v2028
    %2086 = vmatpush.bf16.msra.mxu0 %v2027
    %2087 = vmatmul.bf16.gmra.mxu0 %v1932
    %v2088 = vpop.f32.mrf.mxu0
    %v2089 = vadd.f32 %v1945, %v2088
    %v2090 = vpop.f32.mrf.mxu0
    %v2091 = vadd.f32 %v1945, %v2090
    %2092 = vmatmul.bf16.gmra.mxu0 %v1935
    %v2093 = vpop.f32.mrf.mxu0
    %v2094 = vadd.f32 %v1945, %v2093
    %v2095 = vpop.f32.mrf.mxu0
    %v2096 = vadd.f32 %v1945, %v2095
    %2097 = vmatmul.bf16.gmra.mxu0 %v1938
    %v2098 = vpop.f32.mrf.mxu0
    %v2099 = vadd.f32 %v1945, %v2098
    %v2100 = vpop.f32.mrf.mxu0
    %v2101 = vadd.f32 %v1945, %v2100
    %2102 = vmatmul.bf16.gmra.mxu0 %v1941
    %v2103 = vpop.f32.mrf.mxu0
    %v2104 = vadd.f32 %v1945, %v2103
    %v2105 = vpop.f32.mrf.mxu0
    %v2106 = vadd.f32 %v1945, %v2105
    %2107 = vdwg.mxu0
    %2108 = vmatpush.bf16.msra.mxu0 %v2042
    %2109 = vmatpush.bf16.msra.mxu0 %v2041
    %2110 = vmatpush.bf16.msra.mxu0 %v2040
    %2111 = vmatpush.bf16.msra.mxu0 %v2039
    %2112 = vmatpush.bf16.msra.mxu0 %v2038
    %2113 = vmatpush.bf16.msra.mxu0 %v2037
    %2114 = vmatpush.bf16.msra.mxu0 %v2036
    %2115 = vmatpush.bf16.msra.mxu0 %v2035
    %2116 = vmatmul.bf16.gmra.mxu0 %v1933
    %v2117 = vpop.f32.mrf.mxu0
    %v2118 = vadd.f32 %v2089, %v2117
    %v2119 = vpop.f32.mrf.mxu0
    %v2120 = vadd.f32 %v2091, %v2119
    %2121 = vmatmul.bf16.gmra.mxu0 %v1936
    %v2122 = vpop.f32.mrf.mxu0
    %v2123 = vadd.f32 %v2094, %v2122
    %v2124 = vpop.f32.mrf.mxu0
    %v2125 = vadd.f32 %v2096, %v2124
    %2126 = vmatmul.bf16.gmra.mxu0 %v1939
    %v2127 = vpop.f32.mrf.mxu0
    %v2128 = vadd.f32 %v2099, %v2127
    %v2129 = vpop.f32.mrf.mxu0
    %v2130 = vadd.f32 %v2101, %v2129
    %2131 = vmatmul.bf16.gmra.mxu0 %v1942
    %v2132 = vpop.f32.mrf.mxu0
    %v2133 = vadd.f32 %v2104, %v2132
    %v2134 = vpop.f32.mrf.mxu0
    %v2135 = vadd.f32 %v2106, %v2134
    %2136 = vdwg.mxu0
    %2137 = vmatpush.bf16.msra.mxu0 0
    %2138 = vmatpush.bf16.msra.mxu0 0
    %2139 = vmatpush.bf16.msra.mxu0 0
    %2140 = vmatpush.bf16.msra.mxu0 0
    %2141 = vmatpush.bf16.msra.mxu0 %v2046
    %2142 = vmatpush.bf16.msra.mxu0 %v2045
    %2143 = vmatpush.bf16.msra.mxu0 %v2044
    %2144 = vmatpush.bf16.msra.mxu0 %v2043
    %2145 = vmatmul.bf16.gmra.mxu0 %v2068
    %v2146 = vpop.f32.mrf.mxu0
    %v2147 = vadd.f32 %v2118, %v2146
    %v2148 = vpop.f32.mrf.mxu0
    %v2149 = vadd.f32 %v2120, %v2148
    %2150 = vmatmul.bf16.gmra.mxu0 %v2071
    %v2151 = vpop.f32.mrf.mxu0
    %v2152 = vadd.f32 %v2123, %v2151
    %v2153 = vpop.f32.mrf.mxu0
    %v2154 = vadd.f32 %v2125, %v2153
    %2155 = vmatmul.bf16.gmra.mxu0 %v2074
    %v2156 = vpop.f32.mrf.mxu0
    %v2157 = vadd.f32 %v2128, %v2156
    %v2158 = vpop.f32.mrf.mxu0
    %v2159 = vadd.f32 %v2130, %v2158
    %2160 = vmatmul.bf16.gmra.mxu0 %v2077
    %v2161 = vpop.f32.mrf.mxu0
    %v2162 = vadd.f32 %v2133, %v2161
    %v2163 = vpop.f32.mrf.mxu0
    %v2164 = vadd.f32 %v2135, %v2163
    %2165 = vdwg.mxu0
    %v2166 = vld [vmem:[%s17] sm:$0x1]
    %v2167 = vld [vmem:[%s18] sm:$0x1]
    %v2168 = vld [vmem:[%s3] sm:$0xff]
    %v2169 = vld [vmem:[%s3 + $0x8] sm:$0xff]
    %v2170 = vld [vmem:[%s3 + $0x10] sm:$0xff]
    %v2171 = vld [vmem:[%s3 + $0x18] sm:$0xff]
    %v2172 = vld [vmem:[%s3 + $0x20] sm:$0xff]
    %v2173 = vld [vmem:[%s3 + $0x28] sm:$0xff]
    %v2174 = vld [vmem:[%s3 + $0x30] sm:$0xff]
    %v2175 = vld [vmem:[%s3 + $0x38] sm:$0xff]
    %2177 = vset.pattern.permute.xlu0 0
    %2178 = vperm.xlu0 %2177, %v2168
    %v2179 = vpop.permute.xlu0 %2178
    %2182 = vset.pattern.permute.xlu0 0
    %2183 = vperm.xlu0 %2182, %v2169
    %v2184 = vpop.permute.xlu0 %2183
    %2187 = vset.pattern.permute.xlu0 0
    %2188 = vperm.xlu0 %2187, %v2170
    %v2189 = vpop.permute.xlu0 %2188
    %2192 = vset.pattern.permute.xlu0 0
    %2193 = vperm.xlu0 %2192, %v2171
    %v2194 = vpop.permute.xlu0 %2193
    %2197 = vset.pattern.permute.xlu0 0
    %2198 = vperm.xlu0 %2197, %v2172
    %v2199 = vpop.permute.xlu0 %2198
    %2202 = vset.pattern.permute.xlu0 0
    %2203 = vperm.xlu0 %2202, %v2173
    %v2204 = vpop.permute.xlu0 %2203
    %2207 = vset.pattern.permute.xlu0 0
    %2208 = vperm.xlu0 %2207, %v2174
    %v2209 = vpop.permute.xlu0 %2208
    %2212 = vset.pattern.permute.xlu0 0
    %2213 = vperm.xlu0 %2212, %v2175
    %v2214 = vpop.permute.xlu0 %2213
    %v2216 = vmul.f32 %v2147, %v2179
    %v2217 = vmul.f32 %v2149, %v2184
    %v2218 = vmul.f32 %v2152, %v2189
    %v2219 = vmul.f32 %v2154, %v2194
    %v2220 = vmul.f32 %v2157, %v2199
    %v2221 = vmul.f32 %v2159, %v2204
    %v2222 = vmul.f32 %v2162, %v2209
    %v2223 = vmul.f32 %v2164, %v2214
    %v2224 = vadd.f32 %v2216, %v2217
    %v2225 = vadd.f32 %v2224, %v2218
    %v2226 = vadd.f32 %v2225, %v2219
    %v2227 = vadd.f32 %v2226, %v2220
    %v2228 = vadd.f32 %v2227, %v2221
    %v2229 = vadd.f32 %v2228, %v2222
    %v2230 = vadd.f32 %v2229, %v2223
    %v2231 = vrot.slane %v2230, 4
    %v2232 = vadd.f32 %v2230, %v2231
    %v2233 = vrot.slane %v2232, 2
    %v2234 = vadd.f32 %v2232, %v2233
    %v2235 = vrot.slane %v2234, 1
    %v2236 = vadd.f32 %v2234, %v2235
    %v2237 = vmul.f32 %v2236, 0.0625
    %v2238 = vmul.f32 %v2216, %v2147
    %v2239 = vmul.f32 %v2217, %v2149
    %v2240 = vmul.f32 %v2218, %v2152
    %v2241 = vmul.f32 %v2219, %v2154
    %v2242 = vmul.f32 %v2220, %v2157
    %v2243 = vmul.f32 %v2221, %v2159
    %v2244 = vmul.f32 %v2222, %v2162
    %v2245 = vmul.f32 %v2223, %v2164
    %v2246 = vadd.f32 %v2238, %v2239
    %v2247 = vadd.f32 %v2246, %v2240
    %v2248 = vadd.f32 %v2247, %v2241
    %v2249 = vadd.f32 %v2248, %v2242
    %v2250 = vadd.f32 %v2249, %v2243
    %v2251 = vadd.f32 %v2250, %v2244
    %v2252 = vadd.f32 %v2251, %v2245
    %v2253 = vrot.slane %v2252, 4
    %v2254 = vadd.f32 %v2252, %v2253
    %v2255 = vrot.slane %v2254, 2
    %v2256 = vadd.f32 %v2254, %v2255
    %v2257 = vrot.slane %v2256, 1
    %v2258 = vadd.f32 %v2256, %v2257
    %v2259 = vmul.f32 %v2258, 0.0625
    %v2260 = vmul.f32 %v2237, %v2237
    %v2261 = vsub.f32 %v2259, %v2260
    %v2262 = vadd.f32 %v2261, 1e-05
    %v2263 = vrsqrt.pop %v2262
    %v2264 = vmul.f32 %v2263, %v2262
    %v2265 = vmul.f32 %v2264, %v2263
    %v2266 = vmul.f32 0.5, %v2265
    %v2267 = vsub.f32 1.5, %v2266
    %v2268 = vmul.f32 %v2263, %v2267
    %vm2269 = vweird.f32 %v2262
    %vm2270 = vweird.f32 %v2263
    %vm2271 = vmor %vm2269, %vm2270
    %v2272 = vsel %vm2271, %v2263, %v2268
    %v2273 = vmul.f32 %v2166, %v2272
    %v2274 = vsub.f32 %v2147, %v2237
    %v2275 = vsub.f32 %v2149, %v2237
    %v2276 = vsub.f32 %v2152, %v2237
    %v2277 = vsub.f32 %v2154, %v2237
    %v2278 = vsub.f32 %v2157, %v2237
    %v2279 = vsub.f32 %v2159, %v2237
    %v2280 = vsub.f32 %v2162, %v2237
    %v2281 = vsub.f32 %v2164, %v2237
    %v2283 = vperm.slane %v2273, 0
    %v2285 = vmul.f32 %v2274, %v2283
    %v2286 = vmul.f32 %v2275, %v2283
    %v2287 = vmul.f32 %v2276, %v2283
    %v2288 = vmul.f32 %v2277, %v2283
    %v2289 = vmul.f32 %v2278, %v2283
    %v2290 = vmul.f32 %v2279, %v2283
    %v2291 = vmul.f32 %v2280, %v2283
    %v2292 = vmul.f32 %v2281, %v2283
    %v2294 = vperm.slane %v2167, 0
    %v2296 = vadd.f32 %v2285, %v2294
    %v2297 = vadd.f32 %v2286, %v2294
    %v2298 = vadd.f32 %v2287, %v2294
    %v2299 = vadd.f32 %v2288, %v2294
    %v2300 = vadd.f32 %v2289, %v2294
    %v2301 = vadd.f32 %v2290, %v2294
    %v2302 = vadd.f32 %v2291, %v2294
    %v2303 = vadd.f32 %v2292, %v2294
    %vm2304 = vcmp.gt.f32.partialorder %v2296, 0.0
    %vm2305 = vcmp.gt.f32.partialorder %v2297, 0.0
    %vm2306 = vcmp.gt.f32.partialorder %v2298, 0.0
    %vm2307 = vcmp.gt.f32.partialorder %v2299, 0.0
    %vm2308 = vcmp.gt.f32.partialorder %v2300, 0.0
    %vm2309 = vcmp.gt.f32.partialorder %v2301, 0.0
    %vm2310 = vcmp.gt.f32.partialorder %v2302, 0.0
    %vm2311 = vcmp.gt.f32.partialorder %v2303, 0.0
    %v2312 = vmul.f32 %v2296, 0.2
    %v2313 = vmul.f32 %v2297, 0.2
    %v2314 = vmul.f32 %v2298, 0.2
    %v2315 = vmul.f32 %v2299, 0.2
    %v2316 = vmul.f32 %v2300, 0.2
    %v2317 = vmul.f32 %v2301, 0.2
    %v2318 = vmul.f32 %v2302, 0.2
    %v2319 = vmul.f32 %v2303, 0.2
    %v2320 = vsel %vm2304, %v2296, %v2312
    %v2321 = vsel %vm2305, %v2297, %v2313
    %v2322 = vsel %vm2306, %v2298, %v2314
    %v2323 = vsel %vm2307, %v2299, %v2315
    %v2324 = vsel %vm2308, %v2300, %v2316
    %v2325 = vsel %vm2309, %v2301, %v2317
    %v2326 = vsel %vm2310, %v2302, %v2318
    %v2327 = vsel %vm2311, %v2303, %v2319
    %v2328 = vld [vmem:[%s19] sm:$0xff]
    %v2329 = vld [vmem:[%s19 + $0x8] sm:$0xff]
    %v2330 = vld [vmem:[%s19 + $0x10] sm:$0xff]
    %v2331 = vld [vmem:[%s19 + $0x18] sm:$0xff]
    %v2332 = vld [vmem:[%s19 + $0x20] sm:$0xff]
    %v2333 = vld [vmem:[%s19 + $0x28] sm:$0xff]
    %v2334 = vld [vmem:[%s19 + $0x30] sm:$0xff]
    %v2335 = vld [vmem:[%s19 + $0x38] sm:$0xff]
    %v2336 = vld [vmem:[%s19 + $0x40] sm:$0xff]
    %v2337 = vld [vmem:[%s19 + $0x48] sm:$0xff]
    %v2338 = vld [vmem:[%s19 + $0x50] sm:$0xff]
    %v2339 = vld [vmem:[%s19 + $0x58] sm:$0xff]
    %v2340 = vld [vmem:[%s19 + $0x60] sm:$0xff]
    %v2341 = vld [vmem:[%s19 + $0x68] sm:$0xff]
    %v2342 = vld [vmem:[%s19 + $0x70] sm:$0xff]
    %v2343 = vld [vmem:[%s19 + $0x78] sm:$0xff]
    %v2344 = vld [vmem:[%s19 + $0x80] sm:$0xff]
    %v2345 = vld [vmem:[%s19 + $0x88] sm:$0xff]
    %v2346 = vld [vmem:[%s19 + $0x90] sm:$0xff]
    %v2347 = vld [vmem:[%s19 + $0x98] sm:$0xff]
    %v2348 = vld [vmem:[%s19 + $0xa0] sm:$0xff]
    %v2349 = vld [vmem:[%s19 + $0xa8] sm:$0xff]
    %v2350 = vld [vmem:[%s19 + $0xb0] sm:$0xff]
    %v2351 = vld [vmem:[%s19 + $0xb8] sm:$0xff]
    %v2352 = vld [vmem:[%s19 + $0xc0] sm:$0xff]
    %v2353 = vld [vmem:[%s19 + $0xc8] sm:$0xff]
    %v2354 = vld [vmem:[%s19 + $0xd0] sm:$0xff]
    %v2355 = vld [vmem:[%s19 + $0xd8] sm:$0xff]
    %v2356 = vld [vmem:[%s19 + $0xe0] sm:$0xff]
    %v2357 = vld [vmem:[%s19 + $0xe8] sm:$0xff]
    %v2358 = vld [vmem:[%s19 + $0xf0] sm:$0xff]
    %v2359 = vld [vmem:[%s19 + $0xf8] sm:$0xff]
    %v2360 = vld [vmem:[%s19 + $0x100] sm:$0xff]
    %v2361 = vld [vmem:[%s19 + $0x108] sm:$0xff]
    %v2362 = vld [vmem:[%s19 + $0x110] sm:$0xff]
    %v2363 = vld [vmem:[%s19 + $0x118] sm:$0xff]
    %v2364 = vld [vmem:[%s19 + $0x120] sm:$0xff]
    %v2365 = vld [vmem:[%s19 + $0x128] sm:$0xff]
    %v2366 = vld [vmem:[%s19 + $0x130] sm:$0xff]
    %v2367 = vld [vmem:[%s19 + $0x138] sm:$0xff]
    %v2368 = vld [vmem:[%s19 + $0x140] sm:$0xff]
    %v2369 = vld [vmem:[%s19 + $0x148] sm:$0xff]
    %v2370 = vld [vmem:[%s19 + $0x150] sm:$0xff]
    %v2371 = vld [vmem:[%s19 + $0x158] sm:$0xff]
    %v2372 = vld [vmem:[%s19 + $0x160] sm:$0xff]
    %v2373 = vld [vmem:[%s19 + $0x168] sm:$0xff]
    %v2374 = vld [vmem:[%s19 + $0x170] sm:$0xff]
    %v2375 = vld [vmem:[%s19 + $0x178] sm:$0xff]
    %v2376 = vld [vmem:[%s19 + $0x180] sm:$0xff]
    %v2377 = vld [vmem:[%s19 + $0x188] sm:$0xff]
    %v2378 = vld [vmem:[%s19 + $0x190] sm:$0xff]
    %v2379 = vld [vmem:[%s19 + $0x198] sm:$0xff]
    %v2380 = vld [vmem:[%s19 + $0x1a0] sm:$0xff]
    %v2381 = vld [vmem:[%s19 + $0x1a8] sm:$0xff]
    %v2382 = vld [vmem:[%s19 + $0x1b0] sm:$0xff]
    %v2383 = vld [vmem:[%s19 + $0x1b8] sm:$0xff]
    %v2384 = vld [vmem:[%s19 + $0x1c0] sm:$0xff]
    %v2385 = vld [vmem:[%s19 + $0x1c8] sm:$0xff]
    %v2386 = vld [vmem:[%s19 + $0x1d0] sm:$0xff]
    %v2387 = vld [vmem:[%s19 + $0x1d8] sm:$0xff]
    %v2388 = vld [vmem:[%s19 + $0x1e0] sm:$0xff]
    %v2389 = vld [vmem:[%s19 + $0x1e8] sm:$0xff]
    %v2390 = vld [vmem:[%s19 + $0x1f0] sm:$0xff]
    %v2391 = vld [vmem:[%s19 + $0x1f8] sm:$0xff]
    %v2392 = vld [vmem:[%s19 + $0x200] sm:$0xff]
    %v2393 = vld [vmem:[%s19 + $0x208] sm:$0xff]
    %v2394 = vld [vmem:[%s19 + $0x210] sm:$0xff]
    %v2395 = vld [vmem:[%s19 + $0x218] sm:$0xff]
    %v2396 = vld [vmem:[%s19 + $0x220] sm:$0xff]
    %v2397 = vld [vmem:[%s19 + $0x228] sm:$0xff]
    %v2398 = vld [vmem:[%s19 + $0x230] sm:$0xff]
    %v2399 = vld [vmem:[%s19 + $0x238] sm:$0xff]
    %v2400 = vld [vmem:[%s19 + $0x240] sm:$0xff]
    %v2401 = vld [vmem:[%s19 + $0x248] sm:$0xff]
    %v2402 = vld [vmem:[%s19 + $0x250] sm:$0xff]
    %v2403 = vld [vmem:[%s19 + $0x258] sm:$0xff]
    %v2404 = vld [vmem:[%s19 + $0x260] sm:$0xff]
    %v2405 = vld [vmem:[%s19 + $0x268] sm:$0xff]
    %v2406 = vld [vmem:[%s19 + $0x270] sm:$0xff]
    %v2407 = vld [vmem:[%s19 + $0x278] sm:$0xff]
    %v2408 = vld [vmem:[%s20] sm:$0x3]
    %v2409 = vadd.s32 %v94, 4294967288
    %v2410 = vadd.s32 %v95, 4294967288
    %v2411 = vadd.s32 %v96, 4294967288
    %v2412 = vadd.s32 %v97, 4294967288
    %v2413 = vadd.s32 %v98, 4294967288
    %v2414 = vadd.s32 %v99, 4294967288
    %v2415 = vadd.s32 %v100, 4294967288
    %v2416 = vadd.s32 %v101, 4294967288
    %vm2417 = vcmp.ge.s32.totalorder %v2409, 0
    %vm2418 = vcmp.ge.s32.totalorder %v2410, 0
    %vm2419 = vcmp.ge.s32.totalorder %v2411, 0
    %vm2420 = vcmp.ge.s32.totalorder %v2412, 0
    %vm2421 = vcmp.ge.s32.totalorder %v2413, 0
    %vm2422 = vcmp.ge.s32.totalorder %v2414, 0
    %vm2423 = vcmp.ge.s32.totalorder %v2415, 0
    %vm2424 = vcmp.ge.s32.totalorder %v2416, 0
    %vm2425 = vcmp.lt.s32.totalorder %v2409, 32
    %vm2426 = vcmp.lt.s32.totalorder %v2410, 32
    %vm2427 = vcmp.lt.s32.totalorder %v2411, 32
    %vm2428 = vcmp.lt.s32.totalorder %v2412, 32
    %vm2429 = vcmp.lt.s32.totalorder %v2413, 32
    %vm2430 = vcmp.lt.s32.totalorder %v2414, 32
    %vm2431 = vcmp.lt.s32.totalorder %v2415, 32
    %vm2432 = vcmp.lt.s32.totalorder %v2416, 32
    %vm2433 = vmand %vm2417, %vm2425
    %vm2434 = vmand %vm2418, %vm2426
    %vm2435 = vmand %vm2419, %vm2427
    %vm2436 = vmand %vm2420, %vm2428
    %vm2437 = vmand %vm2421, %vm2429
    %vm2438 = vmand %vm2422, %vm2430
    %vm2439 = vmand %vm2423, %vm2431
    %vm2440 = vmand %vm2424, %vm2432
    %v2441 = vsel %vm2433, 1, 0
    %v2442 = vsel %vm2434, 1, 0
    %v2443 = vsel %vm2435, 1, 0
    %v2444 = vsel %vm2436, 1, 0
    %v2445 = vsel %vm2437, 1, 0
    %v2446 = vsel %vm2438, 1, 0
    %v2447 = vsel %vm2439, 1, 0
    %v2448 = vsel %vm2440, 1, 0
    %v2449 = vcvt.s32.f32 %v2441
    %v2450 = vcvt.s32.f32 %v2442
    %v2451 = vcvt.s32.f32 %v2443
    %v2452 = vcvt.s32.f32 %v2444
    %v2453 = vcvt.s32.f32 %v2445
    %v2454 = vcvt.s32.f32 %v2446
    %v2455 = vcvt.s32.f32 %v2447
    %v2456 = vcvt.s32.f32 %v2448
    %2458 = vset.pattern.permute.xlu0 0
    %2459 = vperm.xlu0 %2458, %v2449
    %v2460 = vpop.permute.xlu0 %2459
    %2463 = vset.pattern.permute.xlu0 0
    %2464 = vperm.xlu0 %2463, %v2450
    %v2465 = vpop.permute.xlu0 %2464
    %2468 = vset.pattern.permute.xlu0 0
    %2469 = vperm.xlu0 %2468, %v2451
    %v2470 = vpop.permute.xlu0 %2469
    %2473 = vset.pattern.permute.xlu0 0
    %2474 = vperm.xlu0 %2473, %v2452
    %v2475 = vpop.permute.xlu0 %2474
    %2478 = vset.pattern.permute.xlu0 0
    %2479 = vperm.xlu0 %2478, %v2453
    %v2480 = vpop.permute.xlu0 %2479
    %2483 = vset.pattern.permute.xlu0 0
    %2484 = vperm.xlu0 %2483, %v2454
    %v2485 = vpop.permute.xlu0 %2484
    %2488 = vset.pattern.permute.xlu0 0
    %2489 = vperm.xlu0 %2488, %v2455
    %v2490 = vpop.permute.xlu0 %2489
    %2493 = vset.pattern.permute.xlu0 0
    %2494 = vperm.xlu0 %2493, %v2456
    %v2495 = vpop.permute.xlu0 %2494
    %v2497 = vmul.f32 %v2460, 0.0
    %v2498 = vmul.f32 %v2320, %v2465
    %v2499 = vmul.f32 %v2321, %v2470
    %v2500 = vmul.f32 %v2322, %v2475
    %v2501 = vmul.f32 %v2323, %v2480
    %v2502 = vmul.f32 %v2324, %v2485
    %v2503 = vmul.f32 %v2325, %v2490
    %v2504 = vmul.f32 %v2326, %v2495
    %v2505 = vrot.slane %v1582, 4
    %v2506 = vrot.slane %v1587, 4
    %v2507 = vsel %vm898, %v2505, %v2506
    %v2508 = vrot.slane %v1592, 4
    %v2509 = vsel %vm898, %v2506, %v2508
    %v2510 = vrot.slane %v1597, 4
    %v2511 = vsel %vm898, %v2508, %v2510
    %v2512 = vrot.slane %v1602, 4
    %v2513 = vsel %vm898, %v2510, %v2512
    %v2514 = vrot.slane %v1607, 4
    %v2515 = vsel %vm898, %v2512, %v2514
    %v2516 = vrot.slane %v1612, 4
    %v2517 = vsel %vm898, %v2514, %v2516
    %v2518 = vrot.slane %v1617, 4
    %v2519 = vsel %vm898, %v2516, %v2518
    %v2529 = vmul.f32 %v2505, 0.0
    %v2530 = vmul.f32 %v2320, %v2507
    %v2531 = vmul.f32 %v2321, %v2509
    %v2532 = vmul.f32 %v2322, %v2511
    %v2533 = vmul.f32 %v2323, %v2513
    %v2534 = vmul.f32 %v2324, %v2515
    %v2535 = vmul.f32 %v2325, %v2517
    %v2536 = vmul.f32 %v2326, %v2519
    %v2537 = vmul.f32 %v2327, %v2518
    %v2538 = vrot.slane %v1744, 4
    %v2539 = vrot.slane %v1749, 4
    %v2540 = vsel %vm898, %v2538, %v2539
    %v2541 = vrot.slane %v1754, 4
    %v2542 = vsel %vm898, %v2539, %v2541
    %v2543 = vrot.slane %v1759, 4
    %v2544 = vsel %vm898, %v2541, %v2543
    %v2545 = vrot.slane %v1764, 4
    %v2546 = vsel %vm898, %v2543, %v2545
    %v2547 = vrot.slane %v1769, 4
    %v2548 = vsel %vm898, %v2545, %v2547
    %v2549 = vrot.slane %v1774, 4
    %v2550 = vsel %vm898, %v2547, %v2549
    %v2551 = vrot.slane %v1779, 4
    %v2552 = vsel %vm898, %v2549, %v2551
    %v2562 = vmul.f32 %v2320, %v2538
    %v2563 = vmul.f32 %v2321, %v2540
    %v2564 = vmul.f32 %v2322, %v2542
    %v2565 = vmul.f32 %v2323, %v2544
    %v2566 = vmul.f32 %v2324, %v2546
    %v2567 = vmul.f32 %v2325, %v2548
    %v2568 = vmul.f32 %v2326, %v2550
    %v2569 = vmul.f32 %v2327, %v2552
    %v2570 = vmul.f32 %v2551, 0.0
    %v2571 = vadd.s32 %v94, 8
    %v2572 = vadd.s32 %v95, 8
    %v2573 = vadd.s32 %v96, 8
    %v2574 = vadd.s32 %v97, 8
    %v2575 = vadd.s32 %v98, 8
    %v2576 = vadd.s32 %v99, 8
    %v2577 = vadd.s32 %v100, 8
    %v2578 = vadd.s32 %v101, 8
    %vm2579 = vcmp.ge.s32.totalorder %v2571, 0
    %vm2580 = vcmp.ge.s32.totalorder %v2572, 0
    %vm2581 = vcmp.ge.s32.totalorder %v2573, 0
    %vm2582 = vcmp.ge.s32.totalorder %v2574, 0
    %vm2583 = vcmp.ge.s32.totalorder %v2575, 0
    %vm2584 = vcmp.ge.s32.totalorder %v2576, 0
    %vm2585 = vcmp.ge.s32.totalorder %v2577, 0
    %vm2586 = vcmp.ge.s32.totalorder %v2578, 0
    %vm2587 = vcmp.lt.s32.totalorder %v2571, 32
    %vm2588 = vcmp.lt.s32.totalorder %v2572, 32
    %vm2589 = vcmp.lt.s32.totalorder %v2573, 32
    %vm2590 = vcmp.lt.s32.totalorder %v2574, 32
    %vm2591 = vcmp.lt.s32.totalorder %v2575, 32
    %vm2592 = vcmp.lt.s32.totalorder %v2576, 32
    %vm2593 = vcmp.lt.s32.totalorder %v2577, 32
    %vm2594 = vcmp.lt.s32.totalorder %v2578, 32
    %vm2595 = vmand %vm2579, %vm2587
    %vm2596 = vmand %vm2580, %vm2588
    %vm2597 = vmand %vm2581, %vm2589
    %vm2598 = vmand %vm2582, %vm2590
    %vm2599 = vmand %vm2583, %vm2591
    %vm2600 = vmand %vm2584, %vm2592
    %vm2601 = vmand %vm2585, %vm2593
    %vm2602 = vmand %vm2586, %vm2594
    %v2603 = vsel %vm2595, 1, 0
    %v2604 = vsel %vm2596, 1, 0
    %v2605 = vsel %vm2597, 1, 0
    %v2606 = vsel %vm2598, 1, 0
    %v2607 = vsel %vm2599, 1, 0
    %v2608 = vsel %vm2600, 1, 0
    %v2609 = vsel %vm2601, 1, 0
    %v2610 = vsel %vm2602, 1, 0
    %v2611 = vcvt.s32.f32 %v2603
    %v2612 = vcvt.s32.f32 %v2604
    %v2613 = vcvt.s32.f32 %v2605
    %v2614 = vcvt.s32.f32 %v2606
    %v2615 = vcvt.s32.f32 %v2607
    %v2616 = vcvt.s32.f32 %v2608
    %v2617 = vcvt.s32.f32 %v2609
    %v2618 = vcvt.s32.f32 %v2610
    %2620 = vset.pattern.permute.xlu0 0
    %2621 = vperm.xlu0 %2620, %v2611
    %v2622 = vpop.permute.xlu0 %2621
    %2625 = vset.pattern.permute.xlu0 0
    %2626 = vperm.xlu0 %2625, %v2612
    %v2627 = vpop.permute.xlu0 %2626
    %2630 = vset.pattern.permute.xlu0 0
    %2631 = vperm.xlu0 %2630, %v2613
    %v2632 = vpop.permute.xlu0 %2631
    %2635 = vset.pattern.permute.xlu0 0
    %2636 = vperm.xlu0 %2635, %v2614
    %v2637 = vpop.permute.xlu0 %2636
    %2640 = vset.pattern.permute.xlu0 0
    %2641 = vperm.xlu0 %2640, %v2615
    %v2642 = vpop.permute.xlu0 %2641
    %2645 = vset.pattern.permute.xlu0 0
    %2646 = vperm.xlu0 %2645, %v2616
    %v2647 = vpop.permute.xlu0 %2646
    %2650 = vset.pattern.permute.xlu0 0
    %2651 = vperm.xlu0 %2650, %v2617
    %v2652 = vpop.permute.xlu0 %2651
    %2655 = vset.pattern.permute.xlu0 0
    %2656 = vperm.xlu0 %2655, %v2618
    %v2657 = vpop.permute.xlu0 %2656
    %v2659 = vmul.f32 %v2321, %v2622
    %v2660 = vmul.f32 %v2322, %v2627
    %v2661 = vmul.f32 %v2323, %v2632
    %v2662 = vmul.f32 %v2324, %v2637
    %v2663 = vmul.f32 %v2325, %v2642
    %v2664 = vmul.f32 %v2326, %v2647
    %v2665 = vmul.f32 %v2327, %v2652
    %v2666 = vmul.f32 %v2657, 0.0
    %v2676 = vrot.slane %v2529, 4
    %v2677 = vrot.slane %v2530, 4
    %v2678 = vsel %vm898, %v2676, %v2677
    %v2679 = vrot.slane %v2531, 4
    %v2680 = vsel %vm898, %v2677, %v2679
    %v2681 = vrot.slane %v2532, 4
    %v2682 = vsel %vm898, %v2679, %v2681
    %v2683 = vrot.slane %v2533, 4
    %v2684 = vsel %vm898, %v2681, %v2683
    %v2685 = vrot.slane %v2534, 4
    %v2686 = vsel %vm898, %v2683, %v2685
    %v2687 = vrot.slane %v2535, 4
    %v2688 = vsel %vm898, %v2685, %v2687
    %v2689 = vrot.slane %v2536, 4
    %v2690 = vsel %vm898, %v2687, %v2689
    %v2691 = vrot.slane %v2537, 4
    %v2692 = vsel %vm898, %v2689, %v2691
    %v2710 = vrot.slane %v2562, 4
    %v2711 = vrot.slane %v2563, 4
    %v2712 = vsel %vm898, %v2710, %v2711
    %v2713 = vrot.slane %v2564, 4
    %v2714 = vsel %vm898, %v2711, %v2713
    %v2715 = vrot.slane %v2565, 4
    %v2716 = vsel %vm898, %v2713, %v2715
    %v2717 = vrot.slane %v2566, 4
    %v2718 = vsel %vm898, %v2715, %v2717
    %v2719 = vrot.slane %v2567, 4
    %v2720 = vsel %vm898, %v2717, %v2719
    %v2721 = vrot.slane %v2568, 4
    %v2722 = vsel %vm898, %v2719, %v2721
    %v2723 = vrot.slane %v2569, 4
    %v2724 = vsel %vm898, %v2721, %v2723
    %v2725 = vrot.slane %v2570, 4
    %v2726 = vsel %vm898, %v2723, %v2725
    %v2735 = vpack.c.bf16 %v2498, %v2497
    %v2736 = vpack.c.bf16 %v2680, %v2678
    %v2737 = vpack.c.bf16 %v2321, %v2320
    %v2738 = vpack.c.bf16 %v2714, %v2712
    %v2739 = vpack.c.bf16 %v2660, %v2659
    %v2740 = vpack.c.bf16 %v2500, %v2499
    %v2741 = vpack.c.bf16 %v2684, %v2682
    %v2742 = vpack.c.bf16 %v2323, %v2322
    %v2743 = vpack.c.bf16 %v2718, %v2716
    %v2744 = vpack.c.bf16 %v2662, %v2661
    %v2745 = vpack.c.bf16 %v2502, %v2501
    %v2746 = vpack.c.bf16 %v2688, %v2686
    %v2747 = vpack.c.bf16 %v2325, %v2324
    %v2748 = vpack.c.bf16 %v2722, %v2720
    %v2749 = vpack.c.bf16 %v2664, %v2663
    %v2750 = vpack.c.bf16 %v2504, %v2503
    %v2751 = vpack.c.bf16 %v2692, %v2690
    %v2752 = vpack.c.bf16 %v2327, %v2326
    %v2753 = vpack.c.bf16 %v2726, %v2724
    %v2754 = vpack.c.bf16 %v2666, %v2665
    %v2756 = vperm.slane %v2408, 0
    %v2757 = vperm.slane %v2408, 1
    %v2840 = vunpack.c.l.b16 %v2328
    %v2841 = vunpack.c.h.b16 %v2328
    %v2842 = vunpack.c.l.b16 %v2329
    %v2843 = vunpack.c.h.b16 %v2329
    %v2844 = vunpack.c.l.b16 %v2330
    %v2845 = vunpack.c.h.b16 %v2330
    %v2846 = vunpack.c.l.b16 %v2331
    %v2847 = vunpack.c.h.b16 %v2331
    %v2848 = vunpack.c.l.b16 %v2332
    %v2849 = vunpack.c.h.b16 %v2332
    %v2850 = vunpack.c.l.b16 %v2333
    %v2851 = vunpack.c.h.b16 %v2333
    %v2852 = vunpack.c.l.b16 %v2334
    %v2853 = vunpack.c.h.b16 %v2334
    %v2854 = vunpack.c.l.b16 %v2335
    %v2855 = vunpack.c.h.b16 %v2335
    %v2856 = vunpack.c.l.b16 %v2336
    %v2857 = vunpack.c.h.b16 %v2336
    %v2858 = vunpack.c.l.b16 %v2337
    %v2859 = vunpack.c.h.b16 %v2337
    %v2860 = vunpack.c.l.b16 %v2338
    %v2861 = vunpack.c.h.b16 %v2338
    %v2862 = vunpack.c.l.b16 %v2339
    %v2863 = vunpack.c.h.b16 %v2339
    %v2864 = vunpack.c.l.b16 %v2340
    %v2865 = vunpack.c.h.b16 %v2340
    %v2866 = vunpack.c.l.b16 %v2341
    %v2867 = vunpack.c.h.b16 %v2341
    %v2868 = vunpack.c.l.b16 %v2342
    %v2869 = vunpack.c.h.b16 %v2342
    %v2870 = vunpack.c.l.b16 %v2343
    %v2871 = vunpack.c.h.b16 %v2343
    %v2872 = vunpack.c.l.b16 %v2344
    %v2873 = vunpack.c.h.b16 %v2344
    %v2874 = vunpack.c.l.b16 %v2345
    %v2875 = vunpack.c.h.b16 %v2345
    %v2876 = vunpack.c.l.b16 %v2346
    %v2877 = vunpack.c.h.b16 %v2346
    %v2878 = vunpack.c.l.b16 %v2347
    %v2879 = vunpack.c.h.b16 %v2347
    %v2880 = vunpack.c.l.b16 %v2348
    %v2881 = vunpack.c.h.b16 %v2348
    %v2882 = vunpack.c.l.b16 %v2349
    %v2883 = vunpack.c.h.b16 %v2349
    %v2884 = vunpack.c.l.b16 %v2350
    %v2885 = vunpack.c.h.b16 %v2350
    %v2886 = vunpack.c.l.b16 %v2351
    %v2887 = vunpack.c.h.b16 %v2351
    %v2888 = vunpack.c.l.b16 %v2352
    %v2889 = vunpack.c.h.b16 %v2352
    %v2890 = vunpack.c.l.b16 %v2353
    %v2891 = vunpack.c.h.b16 %v2353
    %v2892 = vunpack.c.l.b16 %v2354
    %v2893 = vunpack.c.h.b16 %v2354
    %v2894 = vunpack.c.l.b16 %v2355
    %v2895 = vunpack.c.h.b16 %v2355
    %v2896 = vunpack.c.l.b16 %v2356
    %v2897 = vunpack.c.h.b16 %v2356
    %v2898 = vunpack.c.l.b16 %v2357
    %v2899 = vunpack.c.h.b16 %v2357
    %v2900 = vunpack.c.l.b16 %v2358
    %v2901 = vunpack.c.h.b16 %v2358
    %v2902 = vunpack.c.l.b16 %v2359
    %v2903 = vunpack.c.h.b16 %v2359
    %v2904 = vunpack.c.l.b16 %v2360
    %v2905 = vunpack.c.h.b16 %v2360
    %v2906 = vunpack.c.l.b16 %v2361
    %v2907 = vunpack.c.h.b16 %v2361
    %v2908 = vunpack.c.l.b16 %v2362
    %v2909 = vunpack.c.h.b16 %v2362
    %v2910 = vunpack.c.l.b16 %v2363
    %v2911 = vunpack.c.h.b16 %v2363
    %v2912 = vunpack.c.l.b16 %v2364
    %v2913 = vunpack.c.h.b16 %v2364
    %v2914 = vunpack.c.l.b16 %v2365
    %v2915 = vunpack.c.h.b16 %v2365
    %v2916 = vunpack.c.l.b16 %v2366
    %v2917 = vunpack.c.h.b16 %v2366
    %v2918 = vunpack.c.l.b16 %v2367
    %v2919 = vunpack.c.h.b16 %v2367
    %v2920 = vunpack.c.l.b16 %v2368
    %v2921 = vunpack.c.h.b16 %v2368
    %v2922 = vunpack.c.l.b16 %v2369
    %v2923 = vunpack.c.h.b16 %v2369
    %v2924 = vunpack.c.l.b16 %v2370
    %v2925 = vunpack.c.h.b16 %v2370
    %v2926 = vunpack.c.l.b16 %v2371
    %v2927 = vunpack.c.h.b16 %v2371
    %v2928 = vunpack.c.l.b16 %v2372
    %v2929 = vunpack.c.h.b16 %v2372
    %v2930 = vunpack.c.l.b16 %v2373
    %v2931 = vunpack.c.h.b16 %v2373
    %v2932 = vunpack.c.l.b16 %v2374
    %v2933 = vunpack.c.h.b16 %v2374
    %v2934 = vunpack.c.l.b16 %v2375
    %v2935 = vunpack.c.h.b16 %v2375
    %v2936 = vunpack.c.l.b16 %v2376
    %v2937 = vunpack.c.h.b16 %v2376
    %v2938 = vunpack.c.l.b16 %v2377
    %v2939 = vunpack.c.h.b16 %v2377
    %v2940 = vunpack.c.l.b16 %v2378
    %v2941 = vunpack.c.h.b16 %v2378
    %v2942 = vunpack.c.l.b16 %v2379
    %v2943 = vunpack.c.h.b16 %v2379
    %v2944 = vunpack.c.l.b16 %v2380
    %v2945 = vunpack.c.h.b16 %v2380
    %v2946 = vunpack.c.l.b16 %v2381
    %v2947 = vunpack.c.h.b16 %v2381
    %v2948 = vunpack.c.l.b16 %v2382
    %v2949 = vunpack.c.h.b16 %v2382
    %v2950 = vunpack.c.l.b16 %v2383
    %v2951 = vunpack.c.h.b16 %v2383
    %v2952 = vunpack.c.l.b16 %v2384
    %v2953 = vunpack.c.h.b16 %v2384
    %v2954 = vunpack.c.l.b16 %v2385
    %v2955 = vunpack.c.h.b16 %v2385
    %v2956 = vunpack.c.l.b16 %v2386
    %v2957 = vunpack.c.h.b16 %v2386
    %v2958 = vunpack.c.l.b16 %v2387
    %v2959 = vunpack.c.h.b16 %v2387
    %v2960 = vunpack.c.l.b16 %v2388
    %v2961 = vunpack.c.h.b16 %v2388
    %v2962 = vunpack.c.l.b16 %v2389
    %v2963 = vunpack.c.h.b16 %v2389
    %v2964 = vunpack.c.l.b16 %v2390
    %v2965 = vunpack.c.h.b16 %v2390
    %v2966 = vunpack.c.l.b16 %v2391
    %v2967 = vunpack.c.h.b16 %v2391
    %v2968 = vunpack.c.l.b16 %v2392
    %v2969 = vunpack.c.h.b16 %v2392
    %v2970 = vunpack.c.l.b16 %v2393
    %v2971 = vunpack.c.h.b16 %v2393
    %v2972 = vunpack.c.l.b16 %v2394
    %v2973 = vunpack.c.h.b16 %v2394
    %v2974 = vunpack.c.l.b16 %v2395
    %v2975 = vunpack.c.h.b16 %v2395
    %v2976 = vunpack.c.l.b16 %v2396
    %v2977 = vunpack.c.h.b16 %v2396
    %v2978 = vunpack.c.l.b16 %v2397
    %v2979 = vunpack.c.h.b16 %v2397
    %v2980 = vunpack.c.l.b16 %v2398
    %v2981 = vunpack.c.h.b16 %v2398
    %v2982 = vunpack.c.l.b16 %v2399
    %v2983 = vunpack.c.h.b16 %v2399
    %v2984 = vunpack.c.l.b16 %v2400
    %v2985 = vunpack.c.h.b16 %v2400
    %v2986 = vunpack.c.l.b16 %v2401
    %v2987 = vunpack.c.h.b16 %v2401
    %v2988 = vunpack.c.l.b16 %v2402
    %v2989 = vunpack.c.h.b16 %v2402
    %v2990 = vunpack.c.l.b16 %v2403
    %v2991 = vunpack.c.h.b16 %v2403
    %v2992 = vunpack.c.l.b16 %v2404
    %v2993 = vunpack.c.h.b16 %v2404
    %v2994 = vunpack.c.l.b16 %v2405
    %v2995 = vunpack.c.h.b16 %v2405
    %v2996 = vunpack.c.l.b16 %v2406
    %v2997 = vunpack.c.h.b16 %v2406
    %v2998 = vunpack.c.l.b16 %v2407
    %v2999 = vunpack.c.h.b16 %v2407
    %v3000 = vpack.c.b16 %v2842, %v2840
    %v3001 = vpack.c.b16 %v2843, %v2841
    %v3002 = vpack.c.b16 %v2846, %v2844
    %v3003 = vpack.c.b16 %v2847, %v2845
    %v3004 = vpack.c.b16 %v2850, %v2848
    %v3005 = vpack.c.b16 %v2851, %v2849
    %v3006 = vpack.c.b16 %v2854, %v2852
    %v3007 = vpack.c.b16 %v2855, %v2853
    %v3008 = vpack.c.b16 %v2858, %v2856
    %v3009 = vpack.c.b16 %v2859, %v2857
    %v3010 = vpack.c.b16 %v2862, %v2860
    %v3011 = vpack.c.b16 %v2863, %v2861
    %v3012 = vpack.c.b16 %v2866, %v2864
    %v3013 = vpack.c.b16 %v2867, %v2865
    %v3014 = vpack.c.b16 %v2870, %v2868
    %v3015 = vpack.c.b16 %v2871, %v2869
    %v3016 = vpack.c.b16 %v2874, %v2872
    %v3017 = vpack.c.b16 %v2875, %v2873
    %v3018 = vpack.c.b16 %v2878, %v2876
    %v3019 = vpack.c.b16 %v2879, %v2877
    %v3020 = vpack.c.b16 %v2882, %v2880
    %v3021 = vpack.c.b16 %v2883, %v2881
    %v3022 = vpack.c.b16 %v2886, %v2884
    %v3023 = vpack.c.b16 %v2887, %v2885
    %v3024 = vpack.c.b16 %v2890, %v2888
    %v3025 = vpack.c.b16 %v2891, %v2889
    %v3026 = vpack.c.b16 %v2894, %v2892
    %v3027 = vpack.c.b16 %v2895, %v2893
    %v3028 = vpack.c.b16 %v2898, %v2896
    %v3029 = vpack.c.b16 %v2899, %v2897
    %v3030 = vpack.c.b16 %v2902, %v2900
    %v3031 = vpack.c.b16 %v2903, %v2901
    %v3032 = vpack.c.b16 %v2906, %v2904
    %v3033 = vpack.c.b16 %v2907, %v2905
    %v3034 = vpack.c.b16 %v2910, %v2908
    %v3035 = vpack.c.b16 %v2911, %v2909
    %v3036 = vpack.c.b16 %v2914, %v2912
    %v3037 = vpack.c.b16 %v2915, %v2913
    %v3038 = vpack.c.b16 %v2918, %v2916
    %v3039 = vpack.c.b16 %v2919, %v2917
    %v3040 = vpack.c.b16 %v2922, %v2920
    %v3041 = vpack.c.b16 %v2923, %v2921
    %v3042 = vpack.c.b16 %v2926, %v2924
    %v3043 = vpack.c.b16 %v2927, %v2925
    %v3044 = vpack.c.b16 %v2930, %v2928
    %v3045 = vpack.c.b16 %v2931, %v2929
    %v3046 = vpack.c.b16 %v2934, %v2932
    %v3047 = vpack.c.b16 %v2935, %v2933
    %v3048 = vpack.c.b16 %v2938, %v2936
    %v3049 = vpack.c.b16 %v2939, %v2937
    %v3050 = vpack.c.b16 %v2942, %v2940
    %v3051 = vpack.c.b16 %v2943, %v2941
    %v3052 = vpack.c.b16 %v2946, %v2944
    %v3053 = vpack.c.b16 %v2947, %v2945
    %v3054 = vpack.c.b16 %v2950, %v2948
    %v3055 = vpack.c.b16 %v2951, %v2949
    %v3056 = vpack.c.b16 %v2954, %v2952
    %v3057 = vpack.c.b16 %v2955, %v2953
    %v3058 = vpack.c.b16 %v2958, %v2956
    %v3059 = vpack.c.b16 %v2959, %v2957
    %v3060 = vpack.c.b16 %v2962, %v2960
    %v3061 = vpack.c.b16 %v2963, %v2961
    %v3062 = vpack.c.b16 %v2966, %v2964
    %v3063 = vpack.c.b16 %v2967, %v2965
    %v3064 = vpack.c.b16 %v2970, %v2968
    %v3065 = vpack.c.b16 %v2971, %v2969
    %v3066 = vpack.c.b16 %v2974, %v2972
    %v3067 = vpack.c.b16 %v2975, %v2973
    %v3068 = vpack.c.b16 %v2978, %v2976
    %v3069 = vpack.c.b16 %v2979, %v2977
    %v3070 = vpack.c.b16 %v2982, %v2980
    %v3071 = vpack.c.b16 %v2983, %v2981
    %v3072 = vpack.c.b16 %v2986, %v2984
    %v3073 = vpack.c.b16 %v2987, %v2985
    %v3074 = vpack.c.b16 %v2990, %v2988
    %v3075 = vpack.c.b16 %v2991, %v2989
    %v3076 = vpack.c.b16 %v2994, %v2992
    %v3077 = vpack.c.b16 %v2995, %v2993
    %v3078 = vpack.c.b16 %v2998, %v2996
    %v3079 = vpack.c.b16 %v2999, %v2997
    %3160 = vmatpush.bf16.msra.mxu0 %v3014
    %3161 = vmatpush.bf16.msra.mxu0 %v3012
    %3162 = vmatpush.bf16.msra.mxu0 %v3010
    %3163 = vmatpush.bf16.msra.mxu0 %v3008
    %3164 = vmatpush.bf16.msra.mxu0 %v3006
    %3165 = vmatpush.bf16.msra.mxu0 %v3004
    %3166 = vmatpush.bf16.msra.mxu0 %v3002
    %3167 = vmatpush.bf16.msra.mxu0 %v3000
    %3168 = vmatmul.bf16.gmra.mxu0 %v2735
    %v3169 = vpop.f32.mrf.mxu0
    %v3170 = vadd.f32 %v2756, %v3169
    %v3171 = vpop.f32.mrf.mxu0
    %v3172 = vadd.f32 %v2756, %v3171
    %3173 = vmatmul.bf16.gmra.mxu0 %v2740
    %v3174 = vpop.f32.mrf.mxu0
    %v3175 = vadd.f32 %v2756, %v3174
    %v3176 = vpop.f32.mrf.mxu0
    %v3177 = vadd.f32 %v2756, %v3176
    %3178 = vmatmul.bf16.gmra.mxu0 %v2745
    %v3179 = vpop.f32.mrf.mxu0
    %v3180 = vadd.f32 %v2756, %v3179
    %v3181 = vpop.f32.mrf.mxu0
    %v3182 = vadd.f32 %v2756, %v3181
    %3183 = vmatmul.bf16.gmra.mxu0 %v2750
    %v3184 = vpop.f32.mrf.mxu0
    %v3185 = vadd.f32 %v2756, %v3184
    %v3186 = vpop.f32.mrf.mxu0
    %v3187 = vadd.f32 %v2756, %v3186
    %3188 = vdwg.mxu0
    %3189 = vmatpush.bf16.msra.mxu0 %v3030
    %3190 = vmatpush.bf16.msra.mxu0 %v3028
    %3191 = vmatpush.bf16.msra.mxu0 %v3026
    %3192 = vmatpush.bf16.msra.mxu0 %v3024
    %3193 = vmatpush.bf16.msra.mxu0 %v3022
    %3194 = vmatpush.bf16.msra.mxu0 %v3020
    %3195 = vmatpush.bf16.msra.mxu0 %v3018
    %3196 = vmatpush.bf16.msra.mxu0 %v3016
    %3197 = vmatmul.bf16.gmra.mxu0 %v2736
    %v3198 = vpop.f32.mrf.mxu0
    %v3199 = vadd.f32 %v3170, %v3198
    %v3200 = vpop.f32.mrf.mxu0
    %v3201 = vadd.f32 %v3172, %v3200
    %3202 = vmatmul.bf16.gmra.mxu0 %v2741
    %v3203 = vpop.f32.mrf.mxu0
    %v3204 = vadd.f32 %v3175, %v3203
    %v3205 = vpop.f32.mrf.mxu0
    %v3206 = vadd.f32 %v3177, %v3205
    %3207 = vmatmul.bf16.gmra.mxu0 %v2746
    %v3208 = vpop.f32.mrf.mxu0
    %v3209 = vadd.f32 %v3180, %v3208
    %v3210 = vpop.f32.mrf.mxu0
    %v3211 = vadd.f32 %v3182, %v3210
    %3212 = vmatmul.bf16.gmra.mxu0 %v2751
    %v3213 = vpop.f32.mrf.mxu0
    %v3214 = vadd.f32 %v3185, %v3213
    %v3215 = vpop.f32.mrf.mxu0
    %v3216 = vadd.f32 %v3187, %v3215
    %3217 = vdwg.mxu0
    %3218 = vmatpush.bf16.msra.mxu0 %v3046
    %3219 = vmatpush.bf16.msra.mxu0 %v3044
    %3220 = vmatpush.bf16.msra.mxu0 %v3042
    %3221 = vmatpush.bf16.msra.mxu0 %v3040
    %3222 = vmatpush.bf16.msra.mxu0 %v3038
    %3223 = vmatpush.bf16.msra.mxu0 %v3036
    %3224 = vmatpush.bf16.msra.mxu0 %v3034
    %3225 = vmatpush.bf16.msra.mxu0 %v3032
    %3226 = vmatmul.bf16.gmra.mxu0 %v2737
    %v3227 = vpop.f32.mrf.mxu0
    %v3228 = vadd.f32 %v3199, %v3227
    %v3229 = vpop.f32.mrf.mxu0
    %v3230 = vadd.f32 %v3201, %v3229
    %3231 = vmatmul.bf16.gmra.mxu0 %v2742
    %v3232 = vpop.f32.mrf.mxu0
    %v3233 = vadd.f32 %v3204, %v3232
    %v3234 = vpop.f32.mrf.mxu0
    %v3235 = vadd.f32 %v3206, %v3234
    %3236 = vmatmul.bf16.gmra.mxu0 %v2747
    %v3237 = vpop.f32.mrf.mxu0
    %v3238 = vadd.f32 %v3209, %v3237
    %v3239 = vpop.f32.mrf.mxu0
    %v3240 = vadd.f32 %v3211, %v3239
    %3241 = vmatmul.bf16.gmra.mxu0 %v2752
    %v3242 = vpop.f32.mrf.mxu0
    %v3243 = vadd.f32 %v3214, %v3242
    %v3244 = vpop.f32.mrf.mxu0
    %v3245 = vadd.f32 %v3216, %v3244
    %3246 = vdwg.mxu0
    %3247 = vmatpush.bf16.msra.mxu0 %v3062
    %3248 = vmatpush.bf16.msra.mxu0 %v3060
    %3249 = vmatpush.bf16.msra.mxu0 %v3058
    %3250 = vmatpush.bf16.msra.mxu0 %v3056
    %3251 = vmatpush.bf16.msra.mxu0 %v3054
    %3252 = vmatpush.bf16.msra.mxu0 %v3052
    %3253 = vmatpush.bf16.msra.mxu0 %v3050
    %3254 = vmatpush.bf16.msra.mxu0 %v3048
    %3255 = vmatmul.bf16.gmra.mxu0 %v2738
    %v3256 = vpop.f32.mrf.mxu0
    %v3257 = vadd.f32 %v3228, %v3256
    %v3258 = vpop.f32.mrf.mxu0
    %v3259 = vadd.f32 %v3230, %v3258
    %3260 = vmatmul.bf16.gmra.mxu0 %v2743
    %v3261 = vpop.f32.mrf.mxu0
    %v3262 = vadd.f32 %v3233, %v3261
    %v3263 = vpop.f32.mrf.mxu0
    %v3264 = vadd.f32 %v3235, %v3263
    %3265 = vmatmul.bf16.gmra.mxu0 %v2748
    %v3266 = vpop.f32.mrf.mxu0
    %v3267 = vadd.f32 %v3238, %v3266
    %v3268 = vpop.f32.mrf.mxu0
    %v3269 = vadd.f32 %v3240, %v3268
    %3270 = vmatmul.bf16.gmra.mxu0 %v2753
    %v3271 = vpop.f32.mrf.mxu0
    %v3272 = vadd.f32 %v3243, %v3271
    %v3273 = vpop.f32.mrf.mxu0
    %v3274 = vadd.f32 %v3245, %v3273
    %3275 = vdwg.mxu0
    %3276 = vmatpush.bf16.msra.mxu0 %v3078
    %3277 = vmatpush.bf16.msra.mxu0 %v3076
    %3278 = vmatpush.bf16.msra.mxu0 %v3074
    %3279 = vmatpush.bf16.msra.mxu0 %v3072
    %3280 = vmatpush.bf16.msra.mxu0 %v3070
    %3281 = vmatpush.bf16.msra.mxu0 %v3068
    %3282 = vmatpush.bf16.msra.mxu0 %v3066
    %3283 = vmatpush.bf16.msra.mxu0 %v3064
    %3284 = vmatmul.bf16.gmra.mxu0 %v2739
    %v3285 = vpop.f32.mrf.mxu0
    %v3286 = vadd.f32 %v3257, %v3285
    %v3287 = vpop.f32.mrf.mxu0
    %v3288 = vadd.f32 %v3259, %v3287
    %3289 = vmatmul.bf16.gmra.mxu0 %v2744
    %v3290 = vpop.f32.mrf.mxu0
    %v3291 = vadd.f32 %v3262, %v3290
    %v3292 = vpop.f32.mrf.mxu0
    %v3293 = vadd.f32 %v3264, %v3292
    %3294 = vmatmul.bf16.gmra.mxu0 %v2749
    %v3295 = vpop.f32.mrf.mxu0
    %v3296 = vadd.f32 %v3267, %v3295
    %v3297 = vpop.f32.mrf.mxu0
    %v3298 = vadd.f32 %v3269, %v3297
    %3299 = vmatmul.bf16.gmra.mxu0 %v2754
    %v3300 = vpop.f32.mrf.mxu0
    %v3301 = vadd.f32 %v3272, %v3300
    %v3302 = vpop.f32.mrf.mxu0
    %v3303 = vadd.f32 %v3274, %v3302
    %3304 = vdwg.mxu0
    %3305 = vmatpush.bf16.msra.mxu0 %v3015
    %3306 = vmatpush.bf16.msra.mxu0 %v3013
    %3307 = vmatpush.bf16.msra.mxu0 %v3011
    %3308 = vmatpush.bf16.msra.mxu0 %v3009
    %3309 = vmatpush.bf16.msra.mxu0 %v3007
    %3310 = vmatpush.bf16.msra.mxu0 %v3005
    %3311 = vmatpush.bf16.msra.mxu0 %v3003
    %3312 = vmatpush.bf16.msra.mxu0 %v3001
    %3313 = vmatmul.bf16.gmra.mxu0 %v2735
    %v3314 = vpop.f32.mrf.mxu0
    %v3315 = vadd.f32 %v2757, %v3314
    %v3316 = vpop.f32.mrf.mxu0
    %v3317 = vadd.f32 %v2757, %v3316
    %3318 = vmatmul.bf16.gmra.mxu0 %v2740
    %v3319 = vpop.f32.mrf.mxu0
    %v3320 = vadd.f32 %v2757, %v3319
    %v3321 = vpop.f32.mrf.mxu0
    %v3322 = vadd.f32 %v2757, %v3321
    %3323 = vmatmul.bf16.gmra.mxu0 %v2745
    %v3324 = vpop.f32.mrf.mxu0
    %v3325 = vadd.f32 %v2757, %v3324
    %v3326 = vpop.f32.mrf.mxu0
    %v3327 = vadd.f32 %v2757, %v3326
    %3328 = vmatmul.bf16.gmra.mxu0 %v2750
    %v3329 = vpop.f32.mrf.mxu0
    %v3330 = vadd.f32 %v2757, %v3329
    %v3331 = vpop.f32.mrf.mxu0
    %v3332 = vadd.f32 %v2757, %v3331
    %3333 = vdwg.mxu0
    %3334 = vmatpush.bf16.msra.mxu0 %v3031
    %3335 = vmatpush.bf16.msra.mxu0 %v3029
    %3336 = vmatpush.bf16.msra.mxu0 %v3027
    %3337 = vmatpush.bf16.msra.mxu0 %v3025
    %3338 = vmatpush.bf16.msra.mxu0 %v3023
    %3339 = vmatpush.bf16.msra.mxu0 %v3021
    %3340 = vmatpush.bf16.msra.mxu0 %v3019
    %3341 = vmatpush.bf16.msra.mxu0 %v3017
    %3342 = vmatmul.bf16.gmra.mxu0 %v2736
    %v3343 = vpop.f32.mrf.mxu0
    %v3344 = vadd.f32 %v3315, %v3343
    %v3345 = vpop.f32.mrf.mxu0
    %v3346 = vadd.f32 %v3317, %v3345
    %3347 = vmatmul.bf16.gmra.mxu0 %v2741
    %v3348 = vpop.f32.mrf.mxu0
    %v3349 = vadd.f32 %v3320, %v3348
    %v3350 = vpop.f32.mrf.mxu0
    %v3351 = vadd.f32 %v3322, %v3350
    %3352 = vmatmul.bf16.gmra.mxu0 %v2746
    %v3353 = vpop.f32.mrf.mxu0
    %v3354 = vadd.f32 %v3325, %v3353
    %v3355 = vpop.f32.mrf.mxu0
    %v3356 = vadd.f32 %v3327, %v3355
    %3357 = vmatmul.bf16.gmra.mxu0 %v2751
    %v3358 = vpop.f32.mrf.mxu0
    %v3359 = vadd.f32 %v3330, %v3358
    %v3360 = vpop.f32.mrf.mxu0
    %v3361 = vadd.f32 %v3332, %v3360
    %3362 = vdwg.mxu0
    %3363 = vmatpush.bf16.msra.mxu0 %v3047
    %3364 = vmatpush.bf16.msra.mxu0 %v3045
    %3365 = vmatpush.bf16.msra.mxu0 %v3043
    %3366 = vmatpush.bf16.msra.mxu0 %v3041
    %3367 = vmatpush.bf16.msra.mxu0 %v3039
    %3368 = vmatpush.bf16.msra.mxu0 %v3037
    %3369 = vmatpush.bf16.msra.mxu0 %v3035
    %3370 = vmatpush.bf16.msra.mxu0 %v3033
    %3371 = vmatmul.bf16.gmra.mxu0 %v2737
    %v3372 = vpop.f32.mrf.mxu0
    %v3373 = vadd.f32 %v3344, %v3372
    %v3374 = vpop.f32.mrf.mxu0
    %v3375 = vadd.f32 %v3346, %v3374
    %3376 = vmatmul.bf16.gmra.mxu0 %v2742
    %v3377 = vpop.f32.mrf.mxu0
    %v3378 = vadd.f32 %v3349, %v3377
    %v3379 = vpop.f32.mrf.mxu0
    %v3380 = vadd.f32 %v3351, %v3379
    %3381 = vmatmul.bf16.gmra.mxu0 %v2747
    %v3382 = vpop.f32.mrf.mxu0
    %v3383 = vadd.f32 %v3354, %v3382
    %v3384 = vpop.f32.mrf.mxu0
    %v3385 = vadd.f32 %v3356, %v3384
    %3386 = vmatmul.bf16.gmra.mxu0 %v2752
    %v3387 = vpop.f32.mrf.mxu0
    %v3388 = vadd.f32 %v3359, %v3387
    %v3389 = vpop.f32.mrf.mxu0
    %v3390 = vadd.f32 %v3361, %v3389
    %3391 = vdwg.mxu0
    %3392 = vmatpush.bf16.msra.mxu0 %v3063
    %3393 = vmatpush.bf16.msra.mxu0 %v3061
    %3394 = vmatpush.bf16.msra.mxu0 %v3059
    %3395 = vmatpush.bf16.msra.mxu0 %v3057
    %3396 = vmatpush.bf16.msra.mxu0 %v3055
    %3397 = vmatpush.bf16.msra.mxu0 %v3053
    %3398 = vmatpush.bf16.msra.mxu0 %v3051
    %3399 = vmatpush.bf16.msra.mxu0 %v3049
    %3400 = vmatmul.bf16.gmra.mxu0 %v2738
    %v3401 = vpop.f32.mrf.mxu0
    %v3402 = vadd.f32 %v3373, %v3401
    %v3403 = vpop.f32.mrf.mxu0
    %v3404 = vadd.f32 %v3375, %v3403
    %3405 = vmatmul.bf16.gmra.mxu0 %v2743
    %v3406 = vpop.f32.mrf.mxu0
    %v3407 = vadd.f32 %v3378, %v3406
    %v3408 = vpop.f32.mrf.mxu0
    %v3409 = vadd.f32 %v3380, %v3408
    %3410 = vmatmul.bf16.gmra.mxu0 %v2748
    %v3411 = vpop.f32.mrf.mxu0
    %v3412 = vadd.f32 %v3383, %v3411
    %v3413 = vpop.f32.mrf.mxu0
    %v3414 = vadd.f32 %v3385, %v3413
    %3415 = vmatmul.bf16.gmra.mxu0 %v2753
    %v3416 = vpop.f32.mrf.mxu0
    %v3417 = vadd.f32 %v3388, %v3416
    %v3418 = vpop.f32.mrf.mxu0
    %v3419 = vadd.f32 %v3390, %v3418
    %3420 = vdwg.mxu0
    %3421 = vmatpush.bf16.msra.mxu0 %v3079
    %3422 = vmatpush.bf16.msra.mxu0 %v3077
    %3423 = vmatpush.bf16.msra.mxu0 %v3075
    %3424 = vmatpush.bf16.msra.mxu0 %v3073
    %3425 = vmatpush.bf16.msra.mxu0 %v3071
    %3426 = vmatpush.bf16.msra.mxu0 %v3069
    %3427 = vmatpush.bf16.msra.mxu0 %v3067
    %3428 = vmatpush.bf16.msra.mxu0 %v3065
    %3429 = vmatmul.bf16.gmra.mxu0 %v2739
    %v3430 = vpop.f32.mrf.mxu0
    %v3431 = vadd.f32 %v3402, %v3430
    %v3432 = vpop.f32.mrf.mxu0
    %v3433 = vadd.f32 %v3404, %v3432
    %3434 = vmatmul.bf16.gmra.mxu0 %v2744
    %v3435 = vpop.f32.mrf.mxu0
    %v3436 = vadd.f32 %v3407, %v3435
    %v3437 = vpop.f32.mrf.mxu0
    %v3438 = vadd.f32 %v3409, %v3437
    %3439 = vmatmul.bf16.gmra.mxu0 %v2749
    %v3440 = vpop.f32.mrf.mxu0
    %v3441 = vadd.f32 %v3412, %v3440
    %v3442 = vpop.f32.mrf.mxu0
    %v3443 = vadd.f32 %v3414, %v3442
    %3444 = vmatmul.bf16.gmra.mxu0 %v2754
    %v3445 = vpop.f32.mrf.mxu0
    %v3446 = vadd.f32 %v3417, %v3445
    %v3447 = vpop.f32.mrf.mxu0
    %v3448 = vadd.f32 %v3419, %v3447
    %3449 = vdwg.mxu0
    %v3450 = vld [vmem:[%s21] sm:$0x3]
    %v3451 = vld [vmem:[%s22] sm:$0x3]
    %v3452 = vld [vmem:[%s4] sm:$0xff]
    %v3453 = vld [vmem:[%s4 + $0x8] sm:$0xff]
    %v3454 = vld [vmem:[%s4 + $0x10] sm:$0xff]
    %v3455 = vld [vmem:[%s4 + $0x18] sm:$0xff]
    %v3456 = vld [vmem:[%s4 + $0x20] sm:$0xff]
    %v3457 = vld [vmem:[%s4 + $0x28] sm:$0xff]
    %v3458 = vld [vmem:[%s4 + $0x30] sm:$0xff]
    %v3459 = vld [vmem:[%s4 + $0x38] sm:$0xff]
    %3461 = vset.pattern.permute.xlu0 0
    %3462 = vperm.xlu0 %3461, %v3452
    %v3463 = vpop.permute.xlu0 %3462
    %3466 = vset.pattern.permute.xlu0 0
    %3467 = vperm.xlu0 %3466, %v3453
    %v3468 = vpop.permute.xlu0 %3467
    %3471 = vset.pattern.permute.xlu0 0
    %3472 = vperm.xlu0 %3471, %v3454
    %v3473 = vpop.permute.xlu0 %3472
    %3476 = vset.pattern.permute.xlu0 0
    %3477 = vperm.xlu0 %3476, %v3455
    %v3478 = vpop.permute.xlu0 %3477
    %3481 = vset.pattern.permute.xlu0 0
    %3482 = vperm.xlu0 %3481, %v3456
    %v3483 = vpop.permute.xlu0 %3482
    %3486 = vset.pattern.permute.xlu0 0
    %3487 = vperm.xlu0 %3486, %v3457
    %v3488 = vpop.permute.xlu0 %3487
    %3491 = vset.pattern.permute.xlu0 0
    %3492 = vperm.xlu0 %3491, %v3458
    %v3493 = vpop.permute.xlu0 %3492
    %3496 = vset.pattern.permute.xlu0 0
    %3497 = vperm.xlu0 %3496, %v3459
    %v3498 = vpop.permute.xlu0 %3497
    %v3500 = vmul.f32 %v3286, %v3463
    %v3501 = vmul.f32 %v3431, %v3463
    %v3502 = vmul.f32 %v3288, %v3468
    %v3503 = vmul.f32 %v3433, %v3468
    %v3504 = vmul.f32 %v3291, %v3473
    %v3505 = vmul.f32 %v3436, %v3473
    %v3506 = vmul.f32 %v3293, %v3478
    %v3507 = vmul.f32 %v3438, %v3478
    %v3508 = vmul.f32 %v3296, %v3483
    %v3509 = vmul.f32 %v3441, %v3483
    %v3510 = vmul.f32 %v3298, %v3488
    %v3511 = vmul.f32 %v3443, %v3488
    %v3512 = vmul.f32 %v3301, %v3493
    %v3513 = vmul.f32 %v3446, %v3493
    %v3514 = vmul.f32 %v3303, %v3498
    %v3515 = vmul.f32 %v3448, %v3498
    %v3516 = vadd.f32 %v3500, %v3502
    %v3517 = vadd.f32 %v3516, %v3504
    %v3518 = vadd.f32 %v3517, %v3506
    %v3519 = vadd.f32 %v3518, %v3508
    %v3520 = vadd.f32 %v3519, %v3510
    %v3521 = vadd.f32 %v3520, %v3512
    %v3522 = vadd.f32 %v3521, %v3514
    %v3523 = vrot.slane %v3522, 4
    %v3524 = vadd.f32 %v3522, %v3523
    %v3525 = vrot.slane %v3524, 2
    %v3526 = vadd.f32 %v3524, %v3525
    %v3527 = vrot.slane %v3526, 1
    %v3528 = vadd.f32 %v3526, %v3527
    %v3529 = vadd.f32 %v3501, %v3503
    %v3530 = vadd.f32 %v3529, %v3505
    %v3531 = vadd.f32 %v3530, %v3507
    %v3532 = vadd.f32 %v3531, %v3509
    %v3533 = vadd.f32 %v3532, %v3511
    %v3534 = vadd.f32 %v3533, %v3513
    %v3535 = vadd.f32 %v3534, %v3515
    %v3536 = vrot.slane %v3535, 4
    %v3537 = vadd.f32 %v3535, %v3536
    %v3538 = vrot.slane %v3537, 2
    %v3539 = vadd.f32 %v3537, %v3538
    %v3540 = vrot.slane %v3539, 1
    %v3541 = vadd.f32 %v3539, %v3540
    %v3542 = vmul.f32 %v3528, 0.125
    %v3543 = vmul.f32 %v3541, 0.125
    %v3544 = vmul.f32 %v3500, %v3286
    %v3545 = vmul.f32 %v3501, %v3431
    %v3546 = vmul.f32 %v3502, %v3288
    %v3547 = vmul.f32 %v3503, %v3433
    %v3548 = vmul.f32 %v3504, %v3291
    %v3549 = vmul.f32 %v3505, %v3436
    %v3550 = vmul.f32 %v3506, %v3293
    %v3551 = vmul.f32 %v3507, %v3438
    %v3552 = vmul.f32 %v3508, %v3296
    %v3553 = vmul.f32 %v3509, %v3441
    %v3554 = vmul.f32 %v3510, %v3298
    %v3555 = vmul.f32 %v3511, %v3443
    %v3556 = vmul.f32 %v3512, %v3301
    %v3557 = vmul.f32 %v3513, %v3446
    %v3558 = vmul.f32 %v3514, %v3303
    %v3559 = vmul.f32 %v3515, %v3448
    %v3560 = vadd.f32 %v3544, %v3546
    %v3561 = vadd.f32 %v3560, %v3548
    %v3562 = vadd.f32 %v3561, %v3550
    %v3563 = vadd.f32 %v3562, %v3552
    %v3564 = vadd.f32 %v3563, %v3554
    %v3565 = vadd.f32 %v3564, %v3556
    %v3566 = vadd.f32 %v3565, %v3558
    %v3567 = vrot.slane %v3566, 4
    %v3568 = vadd.f32 %v3566, %v3567
    %v3569 = vrot.slane %v3568, 2
    %v3570 = vadd.f32 %v3568, %v3569
    %v3571 = vrot.slane %v3570, 1
    %v3572 = vadd.f32 %v3570, %v3571
    %v3573 = vadd.f32 %v3545, %v3547
    %v3574 = vadd.f32 %v3573, %v3549
    %v3575 = vadd.f32 %v3574, %v3551
    %v3576 = vadd.f32 %v3575, %v3553
    %v3577 = vadd.f32 %v3576, %v3555
    %v3578 = vadd.f32 %v3577, %v3557
    %v3579 = vadd.f32 %v3578, %v3559
    %v3580 = vrot.slane %v3579, 4
    %v3581 = vadd.f32 %v3579, %v3580
    %v3582 = vrot.slane %v3581, 2
    %v3583 = vadd.f32 %v3581, %v3582
    %v3584 = vrot.slane %v3583, 1
    %v3585 = vadd.f32 %v3583, %v3584
    %v3586 = vmul.f32 %v3572, 0.125
    %v3587 = vmul.f32 %v3585, 0.125
    %v3588 = vmul.f32 %v3542, %v3542
    %v3589 = vmul.f32 %v3543, %v3543
    %v3590 = vsub.f32 %v3586, %v3588
    %v3591 = vsub.f32 %v3587, %v3589
    %v3592 = vadd.f32 %v3590, 1e-05
    %v3593 = vadd.f32 %v3591, 1e-05
    %v3594 = vrsqrt.pop %v3592
    %v3595 = vmul.f32 %v3594, %v3592
    %v3596 = vmul.f32 %v3595, %v3594
    %v3597 = vmul.f32 0.5, %v3596
    %v3598 = vsub.f32 1.5, %v3597
    %v3599 = vmul.f32 %v3594, %v3598
    %vm3600 = vweird.f32 %v3592
    %vm3601 = vweird.f32 %v3594
    %vm3602 = vmor %vm3600, %vm3601
    %v3603 = vsel %vm3602, %v3594, %v3599
    %v3604 = vrsqrt.pop %v3593
    %v3605 = vmul.f32 %v3604, %v3593
    %v3606 = vmul.f32 %v3605, %v3604
    %v3607 = vmul.f32 0.5, %v3606
    %v3608 = vsub.f32 1.5, %v3607
    %v3609 = vmul.f32 %v3604, %v3608
    %vm3610 = vweird.f32 %v3593
    %vm3611 = vweird.f32 %v3604
    %vm3612 = vmor %vm3610, %vm3611
    %v3613 = vsel %vm3612, %v3604, %v3609
    %v3616 = vrot.slane %v3613, 7
    %v3617 = vsel %vm671, %v3603, %v3616
    %v3619 = vmul.f32 %v3450, %v3617
    %v3620 = vsub.f32 %v3286, %v3542
    %v3621 = vsub.f32 %v3431, %v3543
    %v3622 = vsub.f32 %v3288, %v3542
    %v3623 = vsub.f32 %v3433, %v3543
    %v3624 = vsub.f32 %v3291, %v3542
    %v3625 = vsub.f32 %v3436, %v3543
    %v3626 = vsub.f32 %v3293, %v3542
    %v3627 = vsub.f32 %v3438, %v3543
    %v3628 = vsub.f32 %v3296, %v3542
    %v3629 = vsub.f32 %v3441, %v3543
    %v3630 = vsub.f32 %v3298, %v3542
    %v3631 = vsub.f32 %v3443, %v3543
    %v3632 = vsub.f32 %v3301, %v3542
    %v3633 = vsub.f32 %v3446, %v3543
    %v3634 = vsub.f32 %v3303, %v3542
    %v3635 = vsub.f32 %v3448, %v3543
    %v3637 = vperm.slane %v3619, 0
    %v3638 = vperm.slane %v3619, 1
    %v3641 = vmul.f32 %v3620, %v3637
    %v3642 = vmul.f32 %v3621, %v3638
    %v3643 = vmul.f32 %v3622, %v3637
    %v3644 = vmul.f32 %v3623, %v3638
    %v3645 = vmul.f32 %v3624, %v3637
    %v3646 = vmul.f32 %v3625, %v3638
    %v3647 = vmul.f32 %v3626, %v3637
    %v3648 = vmul.f32 %v3627, %v3638
    %v3649 = vmul.f32 %v3628, %v3637
    %v3650 = vmul.f32 %v3629, %v3638
    %v3651 = vmul.f32 %v3630, %v3637
    %v3652 = vmul.f32 %v3631, %v3638
    %v3653 = vmul.f32 %v3632, %v3637
    %v3654 = vmul.f32 %v3633, %v3638
    %v3655 = vmul.f32 %v3634, %v3637
    %v3656 = vmul.f32 %v3635, %v3638
    %v3658 = vperm.slane %v3451, 0
    %v3659 = vperm.slane %v3451, 1
    %v3662 = vadd.f32 %v3641, %v3658
    %v3663 = vadd.f32 %v3642, %v3659
    %v3664 = vadd.f32 %v3643, %v3658
    %v3665 = vadd.f32 %v3644, %v3659
    %v3666 = vadd.f32 %v3645, %v3658
    %v3667 = vadd.f32 %v3646, %v3659
    %v3668 = vadd.f32 %v3647, %v3658
    %v3669 = vadd.f32 %v3648, %v3659
    %v3670 = vadd.f32 %v3649, %v3658
    %v3671 = vadd.f32 %v3650, %v3659
    %v3672 = vadd.f32 %v3651, %v3658
    %v3673 = vadd.f32 %v3652, %v3659
    %v3674 = vadd.f32 %v3653, %v3658
    %v3675 = vadd.f32 %v3654, %v3659
    %v3676 = vadd.f32 %v3655, %v3658
    %v3677 = vadd.f32 %v3656, %v3659
    %vm3678 = vcmp.gt.f32.partialorder %v3662, 0.0
    %vm3679 = vcmp.gt.f32.partialorder %v3663, 0.0
    %vm3680 = vcmp.gt.f32.partialorder %v3664, 0.0
    %vm3681 = vcmp.gt.f32.partialorder %v3665, 0.0
    %vm3682 = vcmp.gt.f32.partialorder %v3666, 0.0
    %vm3683 = vcmp.gt.f32.partialorder %v3667, 0.0
    %vm3684 = vcmp.gt.f32.partialorder %v3668, 0.0
    %vm3685 = vcmp.gt.f32.partialorder %v3669, 0.0
    %vm3686 = vcmp.gt.f32.partialorder %v3670, 0.0
    %vm3687 = vcmp.gt.f32.partialorder %v3671, 0.0
    %vm3688 = vcmp.gt.f32.partialorder %v3672, 0.0
    %vm3689 = vcmp.gt.f32.partialorder %v3673, 0.0
    %vm3690 = vcmp.gt.f32.partialorder %v3674, 0.0
    %vm3691 = vcmp.gt.f32.partialorder %v3675, 0.0
    %vm3692 = vcmp.gt.f32.partialorder %v3676, 0.0
    %vm3693 = vcmp.gt.f32.partialorder %v3677, 0.0
    %v3694 = vmul.f32 %v3662, 0.2
    %v3695 = vmul.f32 %v3663, 0.2
    %v3696 = vmul.f32 %v3664, 0.2
    %v3697 = vmul.f32 %v3665, 0.2
    %v3698 = vmul.f32 %v3666, 0.2
    %v3699 = vmul.f32 %v3667, 0.2
    %v3700 = vmul.f32 %v3668, 0.2
    %v3701 = vmul.f32 %v3669, 0.2
    %v3702 = vmul.f32 %v3670, 0.2
    %v3703 = vmul.f32 %v3671, 0.2
    %v3704 = vmul.f32 %v3672, 0.2
    %v3705 = vmul.f32 %v3673, 0.2
    %v3706 = vmul.f32 %v3674, 0.2
    %v3707 = vmul.f32 %v3675, 0.2
    %v3708 = vmul.f32 %v3676, 0.2
    %v3709 = vmul.f32 %v3677, 0.2
    %v3710 = vsel %vm3678, %v3662, %v3694
    %v3711 = vsel %vm3679, %v3663, %v3695
    %v3712 = vsel %vm3680, %v3664, %v3696
    %v3713 = vsel %vm3681, %v3665, %v3697
    %v3714 = vsel %vm3682, %v3666, %v3698
    %v3715 = vsel %vm3683, %v3667, %v3699
    %v3716 = vsel %vm3684, %v3668, %v3700
    %v3717 = vsel %vm3685, %v3669, %v3701
    %v3718 = vsel %vm3686, %v3670, %v3702
    %v3719 = vsel %vm3687, %v3671, %v3703
    %v3720 = vsel %vm3688, %v3672, %v3704
    %v3721 = vsel %vm3689, %v3673, %v3705
    %v3722 = vsel %vm3690, %v3674, %v3706
    %v3723 = vsel %vm3691, %v3675, %v3707
    %v3724 = vsel %vm3692, %v3676, %v3708
    %v3725 = vsel %vm3693, %v3677, %v3709
    %v3726 = vld [vmem:[%s23] sm:$0xf]
    %v3727 = vld [vmem:[%s23 + $0x4] sm:$0xf]
    %v3728 = vld [vmem:[%s23 + $0x8] sm:$0xf]
    %v3729 = vld [vmem:[%s23 + $0xc] sm:$0xf]
    %v3730 = vld [vmem:[%s23 + $0x10] sm:$0xf]
    %v3731 = vld [vmem:[%s23 + $0x14] sm:$0xf]
    %v3732 = vld [vmem:[%s23 + $0x18] sm:$0xf]
    %v3733 = vld [vmem:[%s23 + $0x1c] sm:$0xf]
    %v3734 = vld [vmem:[%s23 + $0x20] sm:$0xf]
    %v3735 = vld [vmem:[%s23 + $0x24] sm:$0xf]
    %v3736 = vld [vmem:[%s23 + $0x28] sm:$0xf]
    %v3737 = vld [vmem:[%s23 + $0x2c] sm:$0xf]
    %v3738 = vld [vmem:[%s23 + $0x30] sm:$0xf]
    %v3739 = vld [vmem:[%s23 + $0x34] sm:$0xf]
    %v3740 = vld [vmem:[%s23 + $0x38] sm:$0xf]
    %v3741 = vld [vmem:[%s23 + $0x3c] sm:$0xf]
    %v3742 = vld [vmem:[%s23 + $0x40] sm:$0xf]
    %v3743 = vld [vmem:[%s23 + $0x44] sm:$0xf]
    %v3744 = vld [vmem:[%s23 + $0x48] sm:$0xf]
    %v3745 = vld [vmem:[%s23 + $0x4c] sm:$0xf]
    %v3746 = vld [vmem:[%s23 + $0x50] sm:$0xf]
    %v3747 = vld [vmem:[%s23 + $0x54] sm:$0xf]
    %v3748 = vld [vmem:[%s23 + $0x58] sm:$0xf]
    %v3749 = vld [vmem:[%s23 + $0x5c] sm:$0xf]
    %v3750 = vld [vmem:[%s23 + $0x60] sm:$0xf]
    %v3751 = vld [vmem:[%s23 + $0x64] sm:$0xf]
    %v3752 = vld [vmem:[%s23 + $0x68] sm:$0xf]
    %v3753 = vld [vmem:[%s23 + $0x6c] sm:$0xf]
    %v3754 = vld [vmem:[%s23 + $0x70] sm:$0xf]
    %v3755 = vld [vmem:[%s23 + $0x74] sm:$0xf]
    %v3756 = vld [vmem:[%s23 + $0x78] sm:$0xf]
    %v3757 = vld [vmem:[%s23 + $0x7c] sm:$0xf]
    %v3758 = vld [vmem:[%s23 + $0x80] sm:$0xf]
    %v3759 = vld [vmem:[%s23 + $0x84] sm:$0xf]
    %v3760 = vld [vmem:[%s23 + $0x88] sm:$0xf]
    %v3761 = vld [vmem:[%s23 + $0x8c] sm:$0xf]
    %v3762 = vld [vmem:[%s23 + $0x90] sm:$0xf]
    %v3763 = vld [vmem:[%s23 + $0x94] sm:$0xf]
    %v3764 = vld [vmem:[%s23 + $0x98] sm:$0xf]
    %v3765 = vld [vmem:[%s23 + $0x9c] sm:$0xf]
    %v3766 = vld [vmem:[%s23 + $0xa0] sm:$0xf]
    %v3767 = vld [vmem:[%s23 + $0xa4] sm:$0xf]
    %v3768 = vld [vmem:[%s23 + $0xa8] sm:$0xf]
    %v3769 = vld [vmem:[%s23 + $0xac] sm:$0xf]
    %v3770 = vld [vmem:[%s23 + $0xb0] sm:$0xf]
    %v3771 = vld [vmem:[%s23 + $0xb4] sm:$0xf]
    %v3772 = vld [vmem:[%s23 + $0xb8] sm:$0xf]
    %v3773 = vld [vmem:[%s23 + $0xbc] sm:$0xf]
    %v3774 = vld [vmem:[%s23 + $0xc0] sm:$0xf]
    %v3775 = vld [vmem:[%s23 + $0xc4] sm:$0xf]
    %v3776 = vld [vmem:[%s23 + $0xc8] sm:$0xf]
    %v3777 = vld [vmem:[%s23 + $0xcc] sm:$0xf]
    %v3778 = vld [vmem:[%s23 + $0xd0] sm:$0xf]
    %v3779 = vld [vmem:[%s23 + $0xd4] sm:$0xf]
    %v3780 = vld [vmem:[%s23 + $0xd8] sm:$0xf]
    %v3781 = vld [vmem:[%s23 + $0xdc] sm:$0xf]
    %v3782 = vld [vmem:[%s23 + $0xe0] sm:$0xf]
    %v3783 = vld [vmem:[%s23 + $0xe4] sm:$0xf]
    %v3784 = vld [vmem:[%s23 + $0xe8] sm:$0xf]
    %v3785 = vld [vmem:[%s23 + $0xec] sm:$0xf]
    %v3786 = vld [vmem:[%s23 + $0xf0] sm:$0xf]
    %v3787 = vld [vmem:[%s23 + $0xf4] sm:$0xf]
    %v3788 = vld [vmem:[%s23 + $0xf8] sm:$0xf]
    %v3789 = vld [vmem:[%s23 + $0xfc] sm:$0xf]
    %v3790 = vld [vmem:[%s23 + $0x100] sm:$0xf]
    %v3791 = vld [vmem:[%s23 + $0x104] sm:$0xf]
    %v3792 = vld [vmem:[%s23 + $0x108] sm:$0xf]
    %v3793 = vld [vmem:[%s23 + $0x10c] sm:$0xf]
    %v3794 = vld [vmem:[%s23 + $0x110] sm:$0xf]
    %v3795 = vld [vmem:[%s23 + $0x114] sm:$0xf]
    %v3796 = vld [vmem:[%s23 + $0x118] sm:$0xf]
    %v3797 = vld [vmem:[%s23 + $0x11c] sm:$0xf]
    %v3798 = vld [vmem:[%s23 + $0x120] sm:$0xf]
    %v3799 = vld [vmem:[%s23 + $0x124] sm:$0xf]
    %v3800 = vld [vmem:[%s23 + $0x128] sm:$0xf]
    %v3801 = vld [vmem:[%s23 + $0x12c] sm:$0xf]
    %v3802 = vld [vmem:[%s23 + $0x130] sm:$0xf]
    %v3803 = vld [vmem:[%s23 + $0x134] sm:$0xf]
    %v3804 = vld [vmem:[%s23 + $0x138] sm:$0xf]
    %v3805 = vld [vmem:[%s23 + $0x13c] sm:$0xf]
    %v3806 = vld [vmem:[%s23 + $0x140] sm:$0xf]
    %v3807 = vld [vmem:[%s23 + $0x144] sm:$0xf]
    %v3808 = vld [vmem:[%s23 + $0x148] sm:$0xf]
    %v3809 = vld [vmem:[%s23 + $0x14c] sm:$0xf]
    %v3810 = vld [vmem:[%s23 + $0x150] sm:$0xf]
    %v3811 = vld [vmem:[%s23 + $0x154] sm:$0xf]
    %v3812 = vld [vmem:[%s23 + $0x158] sm:$0xf]
    %v3813 = vld [vmem:[%s23 + $0x15c] sm:$0xf]
    %v3814 = vld [vmem:[%s23 + $0x160] sm:$0xf]
    %v3815 = vld [vmem:[%s23 + $0x164] sm:$0xf]
    %v3816 = vld [vmem:[%s23 + $0x168] sm:$0xf]
    %v3817 = vld [vmem:[%s23 + $0x16c] sm:$0xf]
    %v3818 = vld [vmem:[%s23 + $0x170] sm:$0xf]
    %v3819 = vld [vmem:[%s23 + $0x174] sm:$0xf]
    %v3820 = vld [vmem:[%s23 + $0x178] sm:$0xf]
    %v3821 = vld [vmem:[%s23 + $0x17c] sm:$0xf]
    %v3822 = vld [vmem:[%s23 + $0x180] sm:$0xf]
    %v3823 = vld [vmem:[%s23 + $0x184] sm:$0xf]
    %v3824 = vld [vmem:[%s23 + $0x188] sm:$0xf]
    %v3825 = vld [vmem:[%s23 + $0x18c] sm:$0xf]
    %v3826 = vld [vmem:[%s23 + $0x190] sm:$0xf]
    %v3827 = vld [vmem:[%s23 + $0x194] sm:$0xf]
    %v3828 = vld [vmem:[%s23 + $0x198] sm:$0xf]
    %v3829 = vld [vmem:[%s23 + $0x19c] sm:$0xf]
    %v3830 = vld [vmem:[%s23 + $0x1a0] sm:$0xf]
    %v3831 = vld [vmem:[%s23 + $0x1a4] sm:$0xf]
    %v3832 = vld [vmem:[%s23 + $0x1a8] sm:$0xf]
    %v3833 = vld [vmem:[%s23 + $0x1ac] sm:$0xf]
    %v3834 = vld [vmem:[%s23 + $0x1b0] sm:$0xf]
    %v3835 = vld [vmem:[%s23 + $0x1b4] sm:$0xf]
    %v3836 = vld [vmem:[%s23 + $0x1b8] sm:$0xf]
    %v3837 = vld [vmem:[%s23 + $0x1bc] sm:$0xf]
    %v3838 = vld [vmem:[%s23 + $0x1c0] sm:$0xf]
    %v3839 = vld [vmem:[%s23 + $0x1c4] sm:$0xf]
    %v3840 = vld [vmem:[%s23 + $0x1c8] sm:$0xf]
    %v3841 = vld [vmem:[%s23 + $0x1cc] sm:$0xf]
    %v3842 = vld [vmem:[%s23 + $0x1d0] sm:$0xf]
    %v3843 = vld [vmem:[%s23 + $0x1d4] sm:$0xf]
    %v3844 = vld [vmem:[%s23 + $0x1d8] sm:$0xf]
    %v3845 = vld [vmem:[%s23 + $0x1dc] sm:$0xf]
    %v3846 = vld [vmem:[%s23 + $0x1e0] sm:$0xf]
    %v3847 = vld [vmem:[%s23 + $0x1e4] sm:$0xf]
    %v3848 = vld [vmem:[%s23 + $0x1e8] sm:$0xf]
    %v3849 = vld [vmem:[%s23 + $0x1ec] sm:$0xf]
    %v3850 = vld [vmem:[%s23 + $0x1f0] sm:$0xf]
    %v3851 = vld [vmem:[%s23 + $0x1f4] sm:$0xf]
    %v3852 = vld [vmem:[%s23 + $0x1f8] sm:$0xf]
    %v3853 = vld [vmem:[%s23 + $0x1fc] sm:$0xf]
    %v3854 = vmul.f32 %v3712, %v2622
    %v3855 = vmul.f32 %v3713, %v2622
    %v3856 = vmul.f32 %v3714, %v2627
    %v3857 = vmul.f32 %v3715, %v2627
    %v3858 = vmul.f32 %v3716, %v2632
    %v3859 = vmul.f32 %v3717, %v2632
    %v3860 = vmul.f32 %v3718, %v2637
    %v3861 = vmul.f32 %v3719, %v2637
    %v3862 = vmul.f32 %v3720, %v2642
    %v3863 = vmul.f32 %v3721, %v2642
    %v3864 = vmul.f32 %v3722, %v2647
    %v3865 = vmul.f32 %v3723, %v2647
    %v3866 = vmul.f32 %v3724, %v2652
    %v3867 = vmul.f32 %v3725, %v2652
    %v3868 = vadd.s32 %v94, 16
    %v3869 = vadd.s32 %v95, 16
    %v3870 = vadd.s32 %v96, 16
    %v3871 = vadd.s32 %v97, 16
    %v3872 = vadd.s32 %v98, 16
    %v3873 = vadd.s32 %v99, 16
    %v3874 = vadd.s32 %v100, 16
    %v3875 = vadd.s32 %v101, 16
    %vm3876 = vcmp.ge.s32.totalorder %v3868, 0
    %vm3877 = vcmp.ge.s32.totalorder %v3869, 0
    %vm3878 = vcmp.ge.s32.totalorder %v3870, 0
    %vm3879 = vcmp.ge.s32.totalorder %v3871, 0
    %vm3880 = vcmp.ge.s32.totalorder %v3872, 0
    %vm3881 = vcmp.ge.s32.totalorder %v3873, 0
    %vm3882 = vcmp.ge.s32.totalorder %v3874, 0
    %vm3883 = vcmp.ge.s32.totalorder %v3875, 0
    %vm3884 = vcmp.lt.s32.totalorder %v3868, 32
    %vm3885 = vcmp.lt.s32.totalorder %v3869, 32
    %vm3886 = vcmp.lt.s32.totalorder %v3870, 32
    %vm3887 = vcmp.lt.s32.totalorder %v3871, 32
    %vm3888 = vcmp.lt.s32.totalorder %v3872, 32
    %vm3889 = vcmp.lt.s32.totalorder %v3873, 32
    %vm3890 = vcmp.lt.s32.totalorder %v3874, 32
    %vm3891 = vcmp.lt.s32.totalorder %v3875, 32
    %vm3892 = vmand %vm3876, %vm3884
    %vm3893 = vmand %vm3877, %vm3885
    %vm3894 = vmand %vm3878, %vm3886
    %vm3895 = vmand %vm3879, %vm3887
    %vm3896 = vmand %vm3880, %vm3888
    %vm3897 = vmand %vm3881, %vm3889
    %vm3898 = vmand %vm3882, %vm3890
    %vm3899 = vmand %vm3883, %vm3891
    %v3900 = vsel %vm3892, 1, 0
    %v3901 = vsel %vm3893, 1, 0
    %v3902 = vsel %vm3894, 1, 0
    %v3903 = vsel %vm3895, 1, 0
    %v3904 = vsel %vm3896, 1, 0
    %v3905 = vsel %vm3897, 1, 0
    %v3906 = vsel %vm3898, 1, 0
    %v3907 = vsel %vm3899, 1, 0
    %v3908 = vcvt.s32.f32 %v3900
    %v3909 = vcvt.s32.f32 %v3901
    %v3910 = vcvt.s32.f32 %v3902
    %v3911 = vcvt.s32.f32 %v3903
    %v3912 = vcvt.s32.f32 %v3904
    %v3913 = vcvt.s32.f32 %v3905
    %v3914 = vcvt.s32.f32 %v3906
    %v3915 = vcvt.s32.f32 %v3907
    %3917 = vset.pattern.permute.xlu0 0
    %3918 = vperm.xlu0 %3917, %v3908
    %v3919 = vpop.permute.xlu0 %3918
    %3922 = vset.pattern.permute.xlu0 0
    %3923 = vperm.xlu0 %3922, %v3909
    %v3924 = vpop.permute.xlu0 %3923
    %3927 = vset.pattern.permute.xlu0 0
    %3928 = vperm.xlu0 %3927, %v3910
    %v3929 = vpop.permute.xlu0 %3928
    %3932 = vset.pattern.permute.xlu0 0
    %3933 = vperm.xlu0 %3932, %v3911
    %v3934 = vpop.permute.xlu0 %3933
    %3937 = vset.pattern.permute.xlu0 0
    %3938 = vperm.xlu0 %3937, %v3912
    %v3939 = vpop.permute.xlu0 %3938
    %3942 = vset.pattern.permute.xlu0 0
    %3943 = vperm.xlu0 %3942, %v3913
    %v3944 = vpop.permute.xlu0 %3943
    %3947 = vset.pattern.permute.xlu0 0
    %3948 = vperm.xlu0 %3947, %v3914
    %v3949 = vpop.permute.xlu0 %3948
    %3952 = vset.pattern.permute.xlu0 0
    %3953 = vperm.xlu0 %3952, %v3915
    %v3954 = vpop.permute.xlu0 %3953
    %v3956 = vmul.f32 %v3714, %v3919
    %v3957 = vmul.f32 %v3715, %v3919
    %v3958 = vmul.f32 %v3716, %v3924
    %v3959 = vmul.f32 %v3717, %v3924
    %v3960 = vmul.f32 %v3718, %v3929
    %v3961 = vmul.f32 %v3719, %v3929
    %v3962 = vmul.f32 %v3720, %v3934
    %v3963 = vmul.f32 %v3721, %v3934
    %v3964 = vmul.f32 %v3722, %v3939
    %v3965 = vmul.f32 %v3723, %v3939
    %v3966 = vmul.f32 %v3724, %v3944
    %v3967 = vmul.f32 %v3725, %v3944
    %v3968 = vmul.f32 %v3949, 0.0
    %v3969 = vmul.f32 %v3954, 0.0
    %v3970 = vadd.s32 %v94, 24
    %v3971 = vadd.s32 %v95, 24
    %v3972 = vadd.s32 %v96, 24
    %v3973 = vadd.s32 %v97, 24
    %v3974 = vadd.s32 %v98, 24
    %v3975 = vadd.s32 %v99, 24
    %v3976 = vadd.s32 %v100, 24
    %v3977 = vadd.s32 %v101, 24
    %vm3978 = vcmp.ge.s32.totalorder %v3970, 0
    %vm3979 = vcmp.ge.s32.totalorder %v3971, 0
    %vm3980 = vcmp.ge.s32.totalorder %v3972, 0
    %vm3981 = vcmp.ge.s32.totalorder %v3973, 0
    %vm3982 = vcmp.ge.s32.totalorder %v3974, 0
    %vm3983 = vcmp.ge.s32.totalorder %v3975, 0
    %vm3984 = vcmp.ge.s32.totalorder %v3976, 0
    %vm3985 = vcmp.ge.s32.totalorder %v3977, 0
    %vm3986 = vcmp.lt.s32.totalorder %v3970, 32
    %vm3987 = vcmp.lt.s32.totalorder %v3971, 32
    %vm3988 = vcmp.lt.s32.totalorder %v3972, 32
    %vm3989 = vcmp.lt.s32.totalorder %v3973, 32
    %vm3990 = vcmp.lt.s32.totalorder %v3974, 32
    %vm3991 = vcmp.lt.s32.totalorder %v3975, 32
    %vm3992 = vcmp.lt.s32.totalorder %v3976, 32
    %vm3993 = vcmp.lt.s32.totalorder %v3977, 32
    %vm3994 = vmand %vm3978, %vm3986
    %vm3995 = vmand %vm3979, %vm3987
    %vm3996 = vmand %vm3980, %vm3988
    %vm3997 = vmand %vm3981, %vm3989
    %vm3998 = vmand %vm3982, %vm3990
    %vm3999 = vmand %vm3983, %vm3991
    %vm4000 = vmand %vm3984, %vm3992
    %vm4001 = vmand %vm3985, %vm3993
    %v4002 = vsel %vm3994, 1, 0
    %v4003 = vsel %vm3995, 1, 0
    %v4004 = vsel %vm3996, 1, 0
    %v4005 = vsel %vm3997, 1, 0
    %v4006 = vsel %vm3998, 1, 0
    %v4007 = vsel %vm3999, 1, 0
    %v4008 = vsel %vm4000, 1, 0
    %v4009 = vsel %vm4001, 1, 0
    %v4010 = vcvt.s32.f32 %v4002
    %v4011 = vcvt.s32.f32 %v4003
    %v4012 = vcvt.s32.f32 %v4004
    %v4013 = vcvt.s32.f32 %v4005
    %v4014 = vcvt.s32.f32 %v4006
    %v4015 = vcvt.s32.f32 %v4007
    %v4016 = vcvt.s32.f32 %v4008
    %v4017 = vcvt.s32.f32 %v4009
    %4019 = vset.pattern.permute.xlu0 0
    %4020 = vperm.xlu0 %4019, %v4010
    %v4021 = vpop.permute.xlu0 %4020
    %4024 = vset.pattern.permute.xlu0 0
    %4025 = vperm.xlu0 %4024, %v4011
    %v4026 = vpop.permute.xlu0 %4025
    %4029 = vset.pattern.permute.xlu0 0
    %4030 = vperm.xlu0 %4029, %v4012
    %v4031 = vpop.permute.xlu0 %4030
    %4034 = vset.pattern.permute.xlu0 0
    %4035 = vperm.xlu0 %4034, %v4013
    %v4036 = vpop.permute.xlu0 %4035
    %4039 = vset.pattern.permute.xlu0 0
    %4040 = vperm.xlu0 %4039, %v4014
    %v4041 = vpop.permute.xlu0 %4040
    %4044 = vset.pattern.permute.xlu0 0
    %4045 = vperm.xlu0 %4044, %v4015
    %v4046 = vpop.permute.xlu0 %4045
    %4049 = vset.pattern.permute.xlu0 0
    %4050 = vperm.xlu0 %4049, %v4016
    %v4051 = vpop.permute.xlu0 %4050
    %4054 = vset.pattern.permute.xlu0 0
    %4055 = vperm.xlu0 %4054, %v4017
    %v4056 = vpop.permute.xlu0 %4055
    %v4058 = vmul.f32 %v3716, %v4021
    %v4059 = vmul.f32 %v3717, %v4021
    %v4060 = vmul.f32 %v3718, %v4026
    %v4061 = vmul.f32 %v3719, %v4026
    %v4062 = vmul.f32 %v3720, %v4031
    %v4063 = vmul.f32 %v3721, %v4031
    %v4064 = vmul.f32 %v3722, %v4036
    %v4065 = vmul.f32 %v3723, %v4036
    %v4066 = vmul.f32 %v3724, %v4041
    %v4067 = vmul.f32 %v3725, %v4041
    %v4068 = vmul.f32 %v4046, 0.0
    %v4069 = vmul.f32 %v4051, 0.0
    %v4070 = vmul.f32 %v4056, 0.0
    %v4071 = vpack.c.bf16 %v3712, %v3710
    %v4072 = vpack.c.bf16 %v3713, %v3711
    %v4073 = vpack.c.bf16 %v3856, %v3854
    %v4074 = vpack.c.bf16 %v3857, %v3855
    %v4075 = vpack.c.bf16 %v3958, %v3956
    %v4076 = vpack.c.bf16 %v3959, %v3957
    %v4077 = vpack.c.bf16 %v4060, %v4058
    %v4078 = vpack.c.bf16 %v4061, %v4059
    %v4079 = vpack.c.bf16 %v3716, %v3714
    %v4080 = vpack.c.bf16 %v3717, %v3715
    %v4081 = vpack.c.bf16 %v3860, %v3858
    %v4082 = vpack.c.bf16 %v3861, %v3859
    %v4083 = vpack.c.bf16 %v3962, %v3960
    %v4084 = vpack.c.bf16 %v3963, %v3961
    %v4085 = vpack.c.bf16 %v4064, %v4062
    %v4086 = vpack.c.bf16 %v4065, %v4063
    %v4087 = vpack.c.bf16 %v3720, %v3718
    %v4088 = vpack.c.bf16 %v3721, %v3719
    %v4089 = vpack.c.bf16 %v3864, %v3862
    %v4090 = vpack.c.bf16 %v3865, %v3863
    %v4091 = vpack.c.bf16 %v3966, %v3964
    %v4092 = vpack.c.bf16 %v3967, %v3965
    %v4093 = vpack.c.bf16 %v4068, %v4066
    %v4094 = vpack.c.bf16 %v4068, %v4067
    %v4095 = vpack.c.bf16 %v3724, %v3722
    %v4096 = vpack.c.bf16 %v3725, %v3723
    %v4097 = vpack.c.bf16 %v2666, %v3866
    %v4098 = vpack.c.bf16 %v2666, %v3867
    %v4099 = vpack.c.bf16 %v3969, %v3968
    %v4100 = vpack.c.bf16 %v4070, %v4069
    %v4229 = vunpack.c.l.b16 %v3726
    %v4230 = vunpack.c.l.b16 %v3727
    %v4231 = vunpack.c.l.b16 %v3728
    %v4232 = vunpack.c.l.b16 %v3729
    %v4233 = vunpack.c.l.b16 %v3730
    %v4234 = vunpack.c.l.b16 %v3731
    %v4235 = vunpack.c.l.b16 %v3732
    %v4236 = vunpack.c.l.b16 %v3733
    %v4237 = vunpack.c.l.b16 %v3734
    %v4238 = vunpack.c.l.b16 %v3735
    %v4239 = vunpack.c.l.b16 %v3736
    %v4240 = vunpack.c.l.b16 %v3737
    %v4241 = vunpack.c.l.b16 %v3738
    %v4242 = vunpack.c.l.b16 %v3739
    %v4243 = vunpack.c.l.b16 %v3740
    %v4244 = vunpack.c.l.b16 %v3741
    %v4245 = vunpack.c.l.b16 %v3742
    %v4246 = vunpack.c.l.b16 %v3743
    %v4247 = vunpack.c.l.b16 %v3744
    %v4248 = vunpack.c.l.b16 %v3745
    %v4249 = vunpack.c.l.b16 %v3746
    %v4250 = vunpack.c.l.b16 %v3747
    %v4251 = vunpack.c.l.b16 %v3748
    %v4252 = vunpack.c.l.b16 %v3749
    %v4253 = vunpack.c.l.b16 %v3750
    %v4254 = vunpack.c.l.b16 %v3751
    %v4255 = vunpack.c.l.b16 %v3752
    %v4256 = vunpack.c.l.b16 %v3753
    %v4257 = vunpack.c.l.b16 %v3754
    %v4258 = vunpack.c.l.b16 %v3755
    %v4259 = vunpack.c.l.b16 %v3756
    %v4260 = vunpack.c.l.b16 %v3757
    %v4261 = vunpack.c.l.b16 %v3758
    %v4262 = vunpack.c.l.b16 %v3759
    %v4263 = vunpack.c.l.b16 %v3760
    %v4264 = vunpack.c.l.b16 %v3761
    %v4265 = vunpack.c.l.b16 %v3762
    %v4266 = vunpack.c.l.b16 %v3763
    %v4267 = vunpack.c.l.b16 %v3764
    %v4268 = vunpack.c.l.b16 %v3765
    %v4269 = vunpack.c.l.b16 %v3766
    %v4270 = vunpack.c.l.b16 %v3767
    %v4271 = vunpack.c.l.b16 %v3768
    %v4272 = vunpack.c.l.b16 %v3769
    %v4273 = vunpack.c.l.b16 %v3770
    %v4274 = vunpack.c.l.b16 %v3771
    %v4275 = vunpack.c.l.b16 %v3772
    %v4276 = vunpack.c.l.b16 %v3773
    %v4277 = vunpack.c.l.b16 %v3774
    %v4278 = vunpack.c.l.b16 %v3775
    %v4279 = vunpack.c.l.b16 %v3776
    %v4280 = vunpack.c.l.b16 %v3777
    %v4281 = vunpack.c.l.b16 %v3778
    %v4282 = vunpack.c.l.b16 %v3779
    %v4283 = vunpack.c.l.b16 %v3780
    %v4284 = vunpack.c.l.b16 %v3781
    %v4285 = vunpack.c.l.b16 %v3782
    %v4286 = vunpack.c.l.b16 %v3783
    %v4287 = vunpack.c.l.b16 %v3784
    %v4288 = vunpack.c.l.b16 %v3785
    %v4289 = vunpack.c.l.b16 %v3786
    %v4290 = vunpack.c.l.b16 %v3787
    %v4291 = vunpack.c.l.b16 %v3788
    %v4292 = vunpack.c.l.b16 %v3789
    %v4293 = vunpack.c.l.b16 %v3790
    %v4294 = vunpack.c.l.b16 %v3791
    %v4295 = vunpack.c.l.b16 %v3792
    %v4296 = vunpack.c.l.b16 %v3793
    %v4297 = vunpack.c.l.b16 %v3794
    %v4298 = vunpack.c.l.b16 %v3795
    %v4299 = vunpack.c.l.b16 %v3796
    %v4300 = vunpack.c.l.b16 %v3797
    %v4301 = vunpack.c.l.b16 %v3798
    %v4302 = vunpack.c.l.b16 %v3799
    %v4303 = vunpack.c.l.b16 %v3800
    %v4304 = vunpack.c.l.b16 %v3801
    %v4305 = vunpack.c.l.b16 %v3802
    %v4306 = vunpack.c.l.b16 %v3803
    %v4307 = vunpack.c.l.b16 %v3804
    %v4308 = vunpack.c.l.b16 %v3805
    %v4309 = vunpack.c.l.b16 %v3806
    %v4310 = vunpack.c.l.b16 %v3807
    %v4311 = vunpack.c.l.b16 %v3808
    %v4312 = vunpack.c.l.b16 %v3809
    %v4313 = vunpack.c.l.b16 %v3810
    %v4314 = vunpack.c.l.b16 %v3811
    %v4315 = vunpack.c.l.b16 %v3812
    %v4316 = vunpack.c.l.b16 %v3813
    %v4317 = vunpack.c.l.b16 %v3814
    %v4318 = vunpack.c.l.b16 %v3815
    %v4319 = vunpack.c.l.b16 %v3816
    %v4320 = vunpack.c.l.b16 %v3817
    %v4321 = vunpack.c.l.b16 %v3818
    %v4322 = vunpack.c.l.b16 %v3819
    %v4323 = vunpack.c.l.b16 %v3820
    %v4324 = vunpack.c.l.b16 %v3821
    %v4325 = vunpack.c.l.b16 %v3822
    %v4326 = vunpack.c.l.b16 %v3823
    %v4327 = vunpack.c.l.b16 %v3824
    %v4328 = vunpack.c.l.b16 %v3825
    %v4329 = vunpack.c.l.b16 %v3826
    %v4330 = vunpack.c.l.b16 %v3827
    %v4331 = vunpack.c.l.b16 %v3828
    %v4332 = vunpack.c.l.b16 %v3829
    %v4333 = vunpack.c.l.b16 %v3830
    %v4334 = vunpack.c.l.b16 %v3831
    %v4335 = vunpack.c.l.b16 %v3832
    %v4336 = vunpack.c.l.b16 %v3833
    %v4337 = vunpack.c.l.b16 %v3834
    %v4338 = vunpack.c.l.b16 %v3835
    %v4339 = vunpack.c.l.b16 %v3836
    %v4340 = vunpack.c.l.b16 %v3837
    %v4341 = vunpack.c.l.b16 %v3838
    %v4342 = vunpack.c.l.b16 %v3839
    %v4343 = vunpack.c.l.b16 %v3840
    %v4344 = vunpack.c.l.b16 %v3841
    %v4345 = vunpack.c.l.b16 %v3842
    %v4346 = vunpack.c.l.b16 %v3843
    %v4347 = vunpack.c.l.b16 %v3844
    %v4348 = vunpack.c.l.b16 %v3845
    %v4349 = vunpack.c.l.b16 %v3846
    %v4350 = vunpack.c.l.b16 %v3847
    %v4351 = vunpack.c.l.b16 %v3848
    %v4352 = vunpack.c.l.b16 %v3849
    %v4353 = vunpack.c.l.b16 %v3850
    %v4354 = vunpack.c.l.b16 %v3851
    %v4355 = vunpack.c.l.b16 %v3852
    %v4356 = vunpack.c.l.b16 %v3853
    %v4357 = vpack.c.b16 %v4230, %v4229
    %v4358 = vpack.c.b16 %v4232, %v4231
    %v4359 = vpack.c.b16 %v4234, %v4233
    %v4360 = vpack.c.b16 %v4236, %v4235
    %v4361 = vpack.c.b16 %v4238, %v4237
    %v4362 = vpack.c.b16 %v4240, %v4239
    %v4363 = vpack.c.b16 %v4242, %v4241
    %v4364 = vpack.c.b16 %v4244, %v4243
    %v4365 = vpack.c.b16 %v4246, %v4245
    %v4366 = vpack.c.b16 %v4248, %v4247
    %v4367 = vpack.c.b16 %v4250, %v4249
    %v4368 = vpack.c.b16 %v4252, %v4251
    %v4369 = vpack.c.b16 %v4254, %v4253
    %v4370 = vpack.c.b16 %v4256, %v4255
    %v4371 = vpack.c.b16 %v4258, %v4257
    %v4372 = vpack.c.b16 %v4260, %v4259
    %v4373 = vpack.c.b16 %v4262, %v4261
    %v4374 = vpack.c.b16 %v4264, %v4263
    %v4375 = vpack.c.b16 %v4266, %v4265
    %v4376 = vpack.c.b16 %v4268, %v4267
    %v4377 = vpack.c.b16 %v4270, %v4269
    %v4378 = vpack.c.b16 %v4272, %v4271
    %v4379 = vpack.c.b16 %v4274, %v4273
    %v4380 = vpack.c.b16 %v4276, %v4275
    %v4381 = vpack.c.b16 %v4278, %v4277
    %v4382 = vpack.c.b16 %v4280, %v4279
    %v4383 = vpack.c.b16 %v4282, %v4281
    %v4384 = vpack.c.b16 %v4284, %v4283
    %v4385 = vpack.c.b16 %v4286, %v4285
    %v4386 = vpack.c.b16 %v4288, %v4287
    %v4387 = vpack.c.b16 %v4290, %v4289
    %v4388 = vpack.c.b16 %v4292, %v4291
    %v4389 = vpack.c.b16 %v4294, %v4293
    %v4390 = vpack.c.b16 %v4296, %v4295
    %v4391 = vpack.c.b16 %v4298, %v4297
    %v4392 = vpack.c.b16 %v4300, %v4299
    %v4393 = vpack.c.b16 %v4302, %v4301
    %v4394 = vpack.c.b16 %v4304, %v4303
    %v4395 = vpack.c.b16 %v4306, %v4305
    %v4396 = vpack.c.b16 %v4308, %v4307
    %v4397 = vpack.c.b16 %v4310, %v4309
    %v4398 = vpack.c.b16 %v4312, %v4311
    %v4399 = vpack.c.b16 %v4314, %v4313
    %v4400 = vpack.c.b16 %v4316, %v4315
    %v4401 = vpack.c.b16 %v4318, %v4317
    %v4402 = vpack.c.b16 %v4320, %v4319
    %v4403 = vpack.c.b16 %v4322, %v4321
    %v4404 = vpack.c.b16 %v4324, %v4323
    %v4405 = vpack.c.b16 %v4326, %v4325
    %v4406 = vpack.c.b16 %v4328, %v4327
    %v4407 = vpack.c.b16 %v4330, %v4329
    %v4408 = vpack.c.b16 %v4332, %v4331
    %v4409 = vpack.c.b16 %v4334, %v4333
    %v4410 = vpack.c.b16 %v4336, %v4335
    %v4411 = vpack.c.b16 %v4338, %v4337
    %v4412 = vpack.c.b16 %v4340, %v4339
    %v4413 = vpack.c.b16 %v4342, %v4341
    %v4414 = vpack.c.b16 %v4344, %v4343
    %v4415 = vpack.c.b16 %v4346, %v4345
    %v4416 = vpack.c.b16 %v4348, %v4347
    %v4417 = vpack.c.b16 %v4350, %v4349
    %v4418 = vpack.c.b16 %v4352, %v4351
    %v4419 = vpack.c.b16 %v4354, %v4353
    %v4420 = vpack.c.b16 %v4356, %v4355
    %4485 = vmatpush.bf16.msra.mxu0 %v4364
    %4486 = vmatpush.bf16.msra.mxu0 %v4363
    %4487 = vmatpush.bf16.msra.mxu0 %v4362
    %4488 = vmatpush.bf16.msra.mxu0 %v4361
    %4489 = vmatpush.bf16.msra.mxu0 %v4360
    %4490 = vmatpush.bf16.msra.mxu0 %v4359
    %4491 = vmatpush.bf16.msra.mxu0 %v4358
    %4492 = vmatpush.bf16.msra.mxu0 %v4357
    %4493 = vmatmul.bf16.gmra.mxu0 %v4071
    %v4494 = vpop.f32.mrf.mxu0
    %v4495 = vadd.f32 0.0, %v4494
    %v4496 = vpop.f32.mrf.mxu0
    %v4497 = vadd.f32 0.0, %v4496
    %4498 = vmatmul.bf16.gmra.mxu0 %v4079
    %v4499 = vpop.f32.mrf.mxu0
    %v4500 = vadd.f32 0.0, %v4499
    %v4501 = vpop.f32.mrf.mxu0
    %v4502 = vadd.f32 0.0, %v4501
    %4503 = vmatmul.bf16.gmra.mxu0 %v4087
    %v4504 = vpop.f32.mrf.mxu0
    %v4505 = vadd.f32 0.0, %v4504
    %v4506 = vpop.f32.mrf.mxu0
    %v4507 = vadd.f32 0.0, %v4506
    %4508 = vmatmul.bf16.gmra.mxu0 %v4095
    %v4509 = vpop.f32.mrf.mxu0
    %v4510 = vadd.f32 0.0, %v4509
    %v4511 = vpop.f32.mrf.mxu0
    %v4512 = vadd.f32 0.0, %v4511
    %4513 = vdwg.mxu0
    %4514 = vmatpush.bf16.msra.mxu0 %v4372
    %4515 = vmatpush.bf16.msra.mxu0 %v4371
    %4516 = vmatpush.bf16.msra.mxu0 %v4370
    %4517 = vmatpush.bf16.msra.mxu0 %v4369
    %4518 = vmatpush.bf16.msra.mxu0 %v4368
    %4519 = vmatpush.bf16.msra.mxu0 %v4367
    %4520 = vmatpush.bf16.msra.mxu0 %v4366
    %4521 = vmatpush.bf16.msra.mxu0 %v4365
    %4522 = vmatmul.bf16.gmra.mxu0 %v4072
    %v4523 = vpop.f32.mrf.mxu0
    %v4524 = vadd.f32 %v4495, %v4523
    %v4525 = vpop.f32.mrf.mxu0
    %v4526 = vadd.f32 %v4497, %v4525
    %4527 = vmatmul.bf16.gmra.mxu0 %v4080
    %v4528 = vpop.f32.mrf.mxu0
    %v4529 = vadd.f32 %v4500, %v4528
    %v4530 = vpop.f32.mrf.mxu0
    %v4531 = vadd.f32 %v4502, %v4530
    %4532 = vmatmul.bf16.gmra.mxu0 %v4088
    %v4533 = vpop.f32.mrf.mxu0
    %v4534 = vadd.f32 %v4505, %v4533
    %v4535 = vpop.f32.mrf.mxu0
    %v4536 = vadd.f32 %v4507, %v4535
    %4537 = vmatmul.bf16.gmra.mxu0 %v4096
    %v4538 = vpop.f32.mrf.mxu0
    %v4539 = vadd.f32 %v4510, %v4538
    %v4540 = vpop.f32.mrf.mxu0
    %v4541 = vadd.f32 %v4512, %v4540
    %4542 = vdwg.mxu0
    %4543 = vmatpush.bf16.msra.mxu0 %v4380
    %4544 = vmatpush.bf16.msra.mxu0 %v4379
    %4545 = vmatpush.bf16.msra.mxu0 %v4378
    %4546 = vmatpush.bf16.msra.mxu0 %v4377
    %4547 = vmatpush.bf16.msra.mxu0 %v4376
    %4548 = vmatpush.bf16.msra.mxu0 %v4375
    %4549 = vmatpush.bf16.msra.mxu0 %v4374
    %4550 = vmatpush.bf16.msra.mxu0 %v4373
    %4551 = vmatmul.bf16.gmra.mxu0 %v4073
    %v4552 = vpop.f32.mrf.mxu0
    %v4553 = vadd.f32 %v4524, %v4552
    %v4554 = vpop.f32.mrf.mxu0
    %v4555 = vadd.f32 %v4526, %v4554
    %4556 = vmatmul.bf16.gmra.mxu0 %v4081
    %v4557 = vpop.f32.mrf.mxu0
    %v4558 = vadd.f32 %v4529, %v4557
    %v4559 = vpop.f32.mrf.mxu0
    %v4560 = vadd.f32 %v4531, %v4559
    %4561 = vmatmul.bf16.gmra.mxu0 %v4089
    %v4562 = vpop.f32.mrf.mxu0
    %v4563 = vadd.f32 %v4534, %v4562
    %v4564 = vpop.f32.mrf.mxu0
    %v4565 = vadd.f32 %v4536, %v4564
    %4566 = vmatmul.bf16.gmra.mxu0 %v4097
    %v4567 = vpop.f32.mrf.mxu0
    %v4568 = vadd.f32 %v4539, %v4567
    %v4569 = vpop.f32.mrf.mxu0
    %v4570 = vadd.f32 %v4541, %v4569
    %4571 = vdwg.mxu0
    %4572 = vmatpush.bf16.msra.mxu0 %v4388
    %4573 = vmatpush.bf16.msra.mxu0 %v4387
    %4574 = vmatpush.bf16.msra.mxu0 %v4386
    %4575 = vmatpush.bf16.msra.mxu0 %v4385
    %4576 = vmatpush.bf16.msra.mxu0 %v4384
    %4577 = vmatpush.bf16.msra.mxu0 %v4383
    %4578 = vmatpush.bf16.msra.mxu0 %v4382
    %4579 = vmatpush.bf16.msra.mxu0 %v4381
    %4580 = vmatmul.bf16.gmra.mxu0 %v4074
    %v4581 = vpop.f32.mrf.mxu0
    %v4582 = vadd.f32 %v4553, %v4581
    %v4583 = vpop.f32.mrf.mxu0
    %v4584 = vadd.f32 %v4555, %v4583
    %4585 = vmatmul.bf16.gmra.mxu0 %v4082
    %v4586 = vpop.f32.mrf.mxu0
    %v4587 = vadd.f32 %v4558, %v4586
    %v4588 = vpop.f32.mrf.mxu0
    %v4589 = vadd.f32 %v4560, %v4588
    %4590 = vmatmul.bf16.gmra.mxu0 %v4090
    %v4591 = vpop.f32.mrf.mxu0
    %v4592 = vadd.f32 %v4563, %v4591
    %v4593 = vpop.f32.mrf.mxu0
    %v4594 = vadd.f32 %v4565, %v4593
    %4595 = vmatmul.bf16.gmra.mxu0 %v4098
    %v4596 = vpop.f32.mrf.mxu0
    %v4597 = vadd.f32 %v4568, %v4596
    %v4598 = vpop.f32.mrf.mxu0
    %v4599 = vadd.f32 %v4570, %v4598
    %4600 = vdwg.mxu0
    %4601 = vmatpush.bf16.msra.mxu0 %v4396
    %4602 = vmatpush.bf16.msra.mxu0 %v4395
    %4603 = vmatpush.bf16.msra.mxu0 %v4394
    %4604 = vmatpush.bf16.msra.mxu0 %v4393
    %4605 = vmatpush.bf16.msra.mxu0 %v4392
    %4606 = vmatpush.bf16.msra.mxu0 %v4391
    %4607 = vmatpush.bf16.msra.mxu0 %v4390
    %4608 = vmatpush.bf16.msra.mxu0 %v4389
    %4609 = vmatmul.bf16.gmra.mxu0 %v4075
    %v4610 = vpop.f32.mrf.mxu0
    %v4611 = vadd.f32 %v4582, %v4610
    %v4612 = vpop.f32.mrf.mxu0
    %v4613 = vadd.f32 %v4584, %v4612
    %4614 = vmatmul.bf16.gmra.mxu0 %v4083
    %v4615 = vpop.f32.mrf.mxu0
    %v4616 = vadd.f32 %v4587, %v4615
    %v4617 = vpop.f32.mrf.mxu0
    %v4618 = vadd.f32 %v4589, %v4617
    %4619 = vmatmul.bf16.gmra.mxu0 %v4091
    %v4620 = vpop.f32.mrf.mxu0
    %v4621 = vadd.f32 %v4592, %v4620
    %v4622 = vpop.f32.mrf.mxu0
    %v4623 = vadd.f32 %v4594, %v4622
    %4624 = vmatmul.bf16.gmra.mxu0 %v4099
    %v4625 = vpop.f32.mrf.mxu0
    %v4626 = vadd.f32 %v4597, %v4625
    %v4627 = vpop.f32.mrf.mxu0
    %v4628 = vadd.f32 %v4599, %v4627
    %4629 = vdwg.mxu0
    %4630 = vmatpush.bf16.msra.mxu0 %v4404
    %4631 = vmatpush.bf16.msra.mxu0 %v4403
    %4632 = vmatpush.bf16.msra.mxu0 %v4402
    %4633 = vmatpush.bf16.msra.mxu0 %v4401
    %4634 = vmatpush.bf16.msra.mxu0 %v4400
    %4635 = vmatpush.bf16.msra.mxu0 %v4399
    %4636 = vmatpush.bf16.msra.mxu0 %v4398
    %4637 = vmatpush.bf16.msra.mxu0 %v4397
    %4638 = vmatmul.bf16.gmra.mxu0 %v4076
    %v4639 = vpop.f32.mrf.mxu0
    %v4640 = vadd.f32 %v4611, %v4639
    %v4641 = vpop.f32.mrf.mxu0
    %v4642 = vadd.f32 %v4613, %v4641
    %4643 = vmatmul.bf16.gmra.mxu0 %v4084
    %v4644 = vpop.f32.mrf.mxu0
    %v4645 = vadd.f32 %v4616, %v4644
    %v4646 = vpop.f32.mrf.mxu0
    %v4647 = vadd.f32 %v4618, %v4646
    %4648 = vmatmul.bf16.gmra.mxu0 %v4092
    %v4649 = vpop.f32.mrf.mxu0
    %v4650 = vadd.f32 %v4621, %v4649
    %v4651 = vpop.f32.mrf.mxu0
    %v4652 = vadd.f32 %v4623, %v4651
    %4653 = vmatmul.bf16.gmra.mxu0 %v4099
    %v4654 = vpop.f32.mrf.mxu0
    %v4655 = vadd.f32 %v4626, %v4654
    %v4656 = vpop.f32.mrf.mxu0
    %v4657 = vadd.f32 %v4628, %v4656
    %4658 = vdwg.mxu0
    %4659 = vmatpush.bf16.msra.mxu0 %v4412
    %4660 = vmatpush.bf16.msra.mxu0 %v4411
    %4661 = vmatpush.bf16.msra.mxu0 %v4410
    %4662 = vmatpush.bf16.msra.mxu0 %v4409
    %4663 = vmatpush.bf16.msra.mxu0 %v4408
    %4664 = vmatpush.bf16.msra.mxu0 %v4407
    %4665 = vmatpush.bf16.msra.mxu0 %v4406
    %4666 = vmatpush.bf16.msra.mxu0 %v4405
    %4667 = vmatmul.bf16.gmra.mxu0 %v4077
    %v4668 = vpop.f32.mrf.mxu0
    %v4669 = vadd.f32 %v4640, %v4668
    %v4670 = vpop.f32.mrf.mxu0
    %v4671 = vadd.f32 %v4642, %v4670
    %4672 = vmatmul.bf16.gmra.mxu0 %v4085
    %v4673 = vpop.f32.mrf.mxu0
    %v4674 = vadd.f32 %v4645, %v4673
    %v4675 = vpop.f32.mrf.mxu0
    %v4676 = vadd.f32 %v4647, %v4675
    %4677 = vmatmul.bf16.gmra.mxu0 %v4093
    %v4678 = vpop.f32.mrf.mxu0
    %v4679 = vadd.f32 %v4650, %v4678
    %v4680 = vpop.f32.mrf.mxu0
    %v4681 = vadd.f32 %v4652, %v4680
    %4682 = vmatmul.bf16.gmra.mxu0 %v4100
    %v4683 = vpop.f32.mrf.mxu0
    %v4684 = vadd.f32 %v4655, %v4683
    %v4685 = vpop.f32.mrf.mxu0
    %v4686 = vadd.f32 %v4657, %v4685
    %4687 = vdwg.mxu0
    %4688 = vmatpush.bf16.msra.mxu0 %v4420
    %4689 = vmatpush.bf16.msra.mxu0 %v4419
    %4690 = vmatpush.bf16.msra.mxu0 %v4418
    %4691 = vmatpush.bf16.msra.mxu0 %v4417
    %4692 = vmatpush.bf16.msra.mxu0 %v4416
    %4693 = vmatpush.bf16.msra.mxu0 %v4415
    %4694 = vmatpush.bf16.msra.mxu0 %v4414
    %4695 = vmatpush.bf16.msra.mxu0 %v4413
    %4696 = vmatmul.bf16.gmra.mxu0 %v4078
    %v4697 = vpop.f32.mrf.mxu0
    %v4698 = vadd.f32 %v4669, %v4697
    %v4699 = vpop.f32.mrf.mxu0
    %v4700 = vadd.f32 %v4671, %v4699
    %4701 = vmatmul.bf16.gmra.mxu0 %v4086
    %v4702 = vpop.f32.mrf.mxu0
    %v4703 = vadd.f32 %v4674, %v4702
    %v4704 = vpop.f32.mrf.mxu0
    %v4705 = vadd.f32 %v4676, %v4704
    %4706 = vmatmul.bf16.gmra.mxu0 %v4094
    %v4707 = vpop.f32.mrf.mxu0
    %v4708 = vadd.f32 %v4679, %v4707
    %v4709 = vpop.f32.mrf.mxu0
    %v4710 = vadd.f32 %v4681, %v4709
    %4711 = vmatmul.bf16.gmra.mxu0 %v4100
    %v4712 = vpop.f32.mrf.mxu0
    %v4713 = vadd.f32 %v4684, %v4712
    %v4714 = vpop.f32.mrf.mxu0
    %v4715 = vadd.f32 %v4686, %v4714
    %4716 = vdwg.mxu0
    %vm4717 = vcmask 7168
    %4718 = vst.msk [vmem:[%s24] sm:$0xff] %vm4717, %v4698
    %4719 = vst.msk [vmem:[%s24 + $0x8] sm:$0xff] %vm4717, %v4700
    %4720 = vst.msk [vmem:[%s24 + $0x10] sm:$0xff] %vm4717, %v4703
    %4721 = vst.msk [vmem:[%s24 + $0x18] sm:$0xff] %vm4717, %v4705
    %4722 = vst.msk [vmem:[%s24 + $0x20] sm:$0xff] %vm4717, %v4708
    %4723 = vst.msk [vmem:[%s24 + $0x28] sm:$0xff] %vm4717, %v4710
    %4724 = vst.msk [vmem:[%s24 + $0x30] sm:$0xff] %vm4717, %v4713
    %4725 = vst.msk [vmem:[%s24 + $0x38] sm:$0xff] %vm4717, %v4715
    // Predicated region
    $region102: #{tpu_custom_call.1} parent=1 // pred_check
      _
    $region103: #{tpu_custom_call.1} parent=1 // pred_check_branch
      %4727 = sbr.rel (0) target = $region105
    $region104: #{tpu_custom_call.1} parent=1 // pred_region
      _
    $region105: #{tpu_custom_call.1} parent=1 // pred_fallthru
      _
    // Predicated region
    $region106: #{tpu_custom_call.1} parent=1 // pred_check
      _
    $region107: #{tpu_custom_call.1} parent=1 // pred_check_branch
      %4729 = sbr.rel (0) target = $region109
    $region108: #{tpu_custom_call.1} parent=1 // pred_region
      _
    $region109: #{tpu_custom_call.1} parent=1 // pred_fallthru
      _
    %4730 = vsyncpa [#allocation3], 1

</llo_original>
